<compile_context>
chip_gen: v7x
topology: tpu7x:2x2x1
jax: 0.10.0
libtpu: 0.0.40
codegen_flags: <defaults>
</compile_context>

<pallas_src>
import functools

import jax
import jax.numpy as jnp
import numpy as np
from jax import lax
from jax.experimental import pallas as pl
from jax.experimental.pallas import tpu as pltpu

HIDDEN_DIM = 256                     # self.hidden_dim = 256 (kept exact)
NUM_GROUPS = 32                      # nn.GroupNorm(32, hidden_dim)
GN_EPS = 1e-5
BACKBONE_CHANNELS = [32, 64, 128]    # scaled-down stand-in for [512, 1024, 2048]
NUM_FEATURE_LEVELS = 4

# VMEM budgeting: per-step working set (double-buffered bf16 x tile + out tile + resident
# weight block) is kept under 12 MiB so the same tile choice fits v5e's 16 MiB scoped-VMEM
# default, v6e's 32 MiB default and v7x's 64 MiB physical VMEM.  The scoped limit is still
# set explicitly on every call (review item).
_VMEM_BUDGET_BYTES = 12 * 1024 * 1024
_VMEM_LIMIT_BYTES = 32 * 1024 * 1024


def _round_up(v, m):
    return ((v + m - 1) // m) * m


def make_group_mats(cout=HIDDEN_DIM, groups=NUM_GROUPS):
    cg = cout // groups
    gmat = np.zeros((cout, groups), np.float32)
    gmat[np.arange(cout), np.arange(cout) // cg] = 1.0
    return jnp.asarray(gmat), jnp.asarray(gmat.T)


# ----------------------------------------------------------------------------
# GroupNorm(32) statistics -> per-channel (scale, shift) fold (shared by both kernels).
# ----------------------------------------------------------------------------
def _gn_fold_scale_shift(colsum, colsq, bias, gamma, beta, gmat, gmat_t, n_rows):
    """Fold GroupNorm stats + conv bias + GN affine into per-channel scale/shift.

    Statistics are computed from PRE-BIAS per-column sums (zero-padded rows contribute
    exactly 0 -> no row mask needed); the conv bias is folded analytically:
        z = y + b :  sum_g z  = sum_{c in g} (colsum_c + N*b_c)
                     sum_g z2 = sum_{c in g} (colsq_c + 2*b_c*colsum_c + N*b_c^2)
    Final output is  y * scale + shift  (one mul + one add on the big tile; no bias add).
    Group reductions stay lane-dense via one stacked M=2 matmul each way.
    """
    cg = HIDDEN_DIM // NUM_GROUPS
    inv_cnt = jnp.float32(1.0 / (n_rows * cg))
    n = jnp.float32(n_rows)
    q1 = colsum + n * bias                                   # per-channel sum of (y + b)
    q2 = colsq + 2.0 * bias * colsum + n * (bias * bias)     # per-channel sum of (y + b)^2
    s_g = jnp.dot(jnp.concatenate([q1, q2], axis=0), gmat,
                  preferred_element_type=jnp.float32)        # (2, G)
    mean_g = s_g[0:1] * inv_cnt
    # one-pass E[z^2]-E[z]^2 can dip slightly negative in f32 -> clamp before rsqrt
    var_g = jnp.maximum(s_g[1:2] * inv_cnt - mean_g * mean_g, 0.0)
    rstd_g = lax.rsqrt(var_g + GN_EPS)
    stats_c = jnp.dot(jnp.concatenate([mean_g, rstd_g], axis=0), gmat_t,
                      preferred_element_type=jnp.float32)    # (2, Cout)
    scale = stats_c[1:2] * gamma                             # rstd * gamma
    shift = beta + (bias - stats_c[0:1]) * scale             # beta + (b - mean)*rstd*gamma
    return scale, shift


# ----------------------------------------------------------------------------
# Kernel 1: single-phase fused 1x1-conv (matmul) + GroupNorm; grid = (batch,).
# Used whenever the whole (N, Cin) level fits the VMEM budget (always true at toy shapes).
# ----------------------------------------------------------------------------
def _conv_gn_single_kernel(n_rows, x_ref, w_ref, b_ref, gamma_ref, beta_ref,
                           gmat_ref, gmat_t_ref, o_ref):
    y = jnp.dot(x_ref[...], w_ref[...], preferred_element_type=jnp.float32)   # f32 MXU acc
    colsum = jnp.sum(y, axis=0, keepdims=True)
    colsq = jnp.sum(y * y, axis=0, keepdims=True)
    scale, shift = _gn_fold_scale_shift(colsum, colsq, b_ref[...], gamma_ref[...],
                                        beta_ref[...], gmat_ref[...], gmat_t_ref[...],
                                        n_rows)
    o_ref[...] = (y * scale + shift).astype(o_ref.dtype)


# ----------------------------------------------------------------------------
# Kernel 2: two-phase (N-tiled) fused 1x1-conv + GroupNorm; grid = (batch, phase, tile).
#   phase 0: matmul the tile, accumulate per-column sum / sum-of-squares (pre-bias).
#   phase 1: fold stats -> (scale, shift) on the first tile, then every tile recomputes the
#            matmul and writes y*scale + shift.
# This is the VMEM-safe path for production feature-map sizes (v7x 64 MiB / v5e 16 MiB).
# ----------------------------------------------------------------------------
def _conv_gn_tiled_kernel(n_rows, x_ref, w_ref, b_ref, gamma_ref, beta_ref,
                          gmat_ref, gmat_t_ref, o_ref, stats_ref, ss_ref):
    phase = pl.program_id(1)
    tile = pl.program_id(2)

    y = jnp.dot(x_ref[...], w_ref[...], preferred_element_type=jnp.float32)

    @pl.when(jnp.logical_and(phase == 0, tile == 0))
    def _init():
        stats_ref[...] = jnp.zeros_like(stats_ref)

    @pl.when(phase == 0)
    def _accumulate():
        stats_ref[...] += jnp.concatenate(
            [jnp.sum(y, axis=0, keepdims=True),
             jnp.sum(y * y, axis=0, keepdims=True)], axis=0)

    @pl.when(jnp.logical_and(phase == 1, tile == 0))
    def _fold():
        scale, shift = _gn_fold_scale_shift(stats_ref[0:1], stats_ref[1:2], b_ref[...],
                                            gamma_ref[...], beta_ref[...],
                                            gmat_ref[...], gmat_t_ref[...], n_rows)
        ss_ref[...] = jnp.concatenate([scale, shift], axis=0)

    @pl.when(phase == 1)
    def _normalize():
        o_ref[...] = (y * ss_ref[0:1] + ss_ref[1:2]).astype(o_ref.dtype)


# ----------------------------------------------------------------------------
# Wrapper: fused 1x1-conv + GroupNorm for one pyramid level (native Cin, native N).
# ----------------------------------------------------------------------------
def _pick_tile_rows(n_pad, cin):
    """Largest 16-aligned N tile whose double-buffered working set fits the VMEM budget."""
    w_bytes = cin * HIDDEN_DIM * 2                              # resident bf16 weight block
    per_row = 2 * 2 * cin + 2 * 2 * HIDDEN_DIM                  # dbl-buffered bf16 x + out row
    avail = _VMEM_BUDGET_BYTES - w_bytes - (128 << 10)          # misc refs / scratch headroom
    rows = max(16, (avail // per_row) // 16 * 16)
    return min(rows, n_pad)


def fused_conv1x1_gn(x, w, bias, gamma, beta, gmat, gmat_t, *, tile_rows=None):
    """x: (B, N, Cin) bf16 flattened NHWC features.  Returns (B, N, 256) bf16."""
    B, N, cin = x.shape
    n_pad = _round_up(N, 16)                                    # bf16 sublane-pair alignment
    if tile_rows is None:
        tile_rows = _pick_tile_rows(n_pad, cin)
    tile_rows = min(_round_up(int(tile_rows), 16), n_pad)
    n_tiles = pl.cdiv(n_pad, tile_rows)
    n_pad = n_tiles * tile_rows
    x_p = x if n_pad == N else jnp.pad(x, ((0, 0), (0, n_pad - N), (0, 0)))

    if n_tiles == 1:
        out = pl.pallas_call(
            functools.partial(_conv_gn_single_kernel, float(N)),
            out_shape=jax.ShapeDtypeStruct((B, n_pad, HIDDEN_DIM), jnp.bfloat16),
            grid=(B,),
            in_specs=[
                pl.BlockSpec((pl.Squeezed(), n_pad, cin), lambda b: (b, 0, 0)),
                pl.BlockSpec((cin, HIDDEN_DIM), lambda b: (0, 0)),
                pl.BlockSpec((1, HIDDEN_DIM), lambda b: (0, 0)),
                pl.BlockSpec((1, HIDDEN_DIM), lambda b: (0, 0)),
                pl.BlockSpec((1, HIDDEN_DIM), lambda b: (0, 0)),
                pl.BlockSpec((HIDDEN_DIM, NUM_GROUPS), lambda b: (0, 0)),
                pl.BlockSpec((NUM_GROUPS, HIDDEN_DIM), lambda b: (0, 0)),
            ],
            out_specs=pl.BlockSpec((pl.Squeezed(), n_pad, HIDDEN_DIM), lambda b: (b, 0, 0)),
            compiler_params=pltpu.CompilerParams(
                dimension_semantics=("parallel",),
                vmem_limit_bytes=_VMEM_LIMIT_BYTES),
        )(x_p, w, bias, gamma, beta, gmat, gmat_t)
    else:
        out = pl.pallas_call(
            functools.partial(_conv_gn_tiled_kernel, float(N)),
            out_shape=jax.ShapeDtypeStruct((B, n_pad, HIDDEN_DIM), jnp.bfloat16),
            grid=(B, 2, n_tiles),
            in_specs=[
                pl.BlockSpec((pl.Squeezed(), tile_rows, cin), lambda b, p, t: (b, t, 0)),
                pl.BlockSpec((cin, HIDDEN_DIM), lambda b, p, t: (0, 0)),
                pl.BlockSpec((1, HIDDEN_DIM), lambda b, p, t: (0, 0)),
                pl.BlockSpec((1, HIDDEN_DIM), lambda b, p, t: (0, 0)),
                pl.BlockSpec((1, HIDDEN_DIM), lambda b, p, t: (0, 0)),
                pl.BlockSpec((HIDDEN_DIM, NUM_GROUPS), lambda b, p, t: (0, 0)),
                pl.BlockSpec((NUM_GROUPS, HIDDEN_DIM), lambda b, p, t: (0, 0)),
            ],
            # Phase-0 steps write nothing; mapping them onto block (b, 0) means every output
            # block is DMA'd to HBM exactly once, carrying the final phase-1 value.
            out_specs=pl.BlockSpec((pl.Squeezed(), tile_rows, HIDDEN_DIM),
                                   lambda b, p, t: (b, t * p, 0)),
            scratch_shapes=[pltpu.VMEM((2, HIDDEN_DIM), jnp.float32),   # colsum / colsumsq
                            pltpu.VMEM((2, HIDDEN_DIM), jnp.float32)],  # scale / shift
            compiler_params=pltpu.CompilerParams(
                dimension_semantics=("parallel", "arbitrary", "arbitrary"),
                vmem_limit_bytes=_VMEM_LIMIT_BYTES),
        )(x_p, w, bias, gamma, beta, gmat, gmat_t)
        # TODO(synk): the revisit recomputes the matmul (2x MXU on the reduction levels); when
        # the raw-y HBM round-trip is cheaper than the re-matmul, spill bf16 y instead.

    return out[:, :N, :] if n_pad != N else out


# ----------------------------------------------------------------------------
# Extra level: Conv2d(3x3, stride=2, pad=1) folded into one matmul per batch image.
# ----------------------------------------------------------------------------
def _im2col_3x3_s2(feat):
    """(B, H, W, C) -> (B, (H//2)*(W//2), 9*C) tap-major im2col of a 3x3/s2/p1 conv."""
    B, H, W, C = feat.shape
    ho, wo = H // 2, W // 2
    xp = jnp.pad(feat, ((0, 0), (1, 1), (1, 1), (0, 0)))
    cols = [xp[:, ky:ky + 2 * ho:2, kx:kx + 2 * wo:2, :].reshape(B, ho * wo, C)
            for ky in range(3) for kx in range(3)]
    return jnp.concatenate(cols, axis=-1), ho, wo


# ----------------------------------------------------------------------------
# Parameters (deterministic synthetic init — no checkpoint loading)
# ----------------------------------------------------------------------------
def init_params(key):
    keys = jax.random.split(key, 4 * len(BACKBONE_CHANNELS) + 8)
    kit = iter(keys)
    gmat, gmat_t = make_group_mats()

    # backbone stub: 3 -> C_l channel projections
    backbone = [0.1 * jax.random.normal(next(kit), (3, c), jnp.float32)
                for c in BACKBONE_CHANNELS]

    # per-level fused 1x1-conv + GN params at NATIVE Cin (no lane / max-Cin padding)
    levels = []
    for c in BACKBONE_CHANNELS:
        levels.append(dict(
            w=(0.02 * jax.random.normal(next(kit), (c, HIDDEN_DIM), jnp.float32)
               ).astype(jnp.bfloat16),
            b=0.1 * jax.random.normal(next(kit), (1, HIDDEN_DIM), jnp.float32),
            gamma=1.0 + 0.1 * jax.random.normal(next(kit), (1, HIDDEN_DIM), jnp.float32),
            beta=0.1 * jax.random.normal(next(kit), (1, HIDDEN_DIM), jnp.float32)))

    # extra level: 3x3/s2 conv with the 9 taps folded into the contraction dim (tap-major)
    c_last = BACKBONE_CHANNELS[-1]
    extra = dict(
        w=(0.02 * jax.random.normal(next(kit), (9 * c_last, HIDDEN_DIM), jnp.float32)
           ).astype(jnp.bfloat16),
        b=0.1 * jax.random.normal(next(kit), (1, HIDDEN_DIM), jnp.float32),
        gamma=1.0 + 0.1 * jax.random.normal(next(kit), (1, HIDDEN_DIM), jnp.float32),
        beta=0.1 * jax.random.normal(next(kit), (1, HIDDEN_DIM), jnp.float32))

    return {"backbone": backbone, "levels": levels, "extra": extra,
            "gmat": gmat, "gmat_t": gmat_t}


# ----------------------------------------------------------------------------
# Stand-in backbone (black box in the original module): pooled pyramid, plain JAX glue.
# ----------------------------------------------------------------------------
def mock_backbone(x_nchw, proj_list):
    x_nhwc = jnp.transpose(x_nchw, (0, 2, 3, 1))               # NCHW -> NHWC
    B, H, W, C = x_nhwc.shape
    feats = []
    for lvl, proj in enumerate(proj_list):
        s = 2 ** (lvl + 1)
        pooled = x_nhwc.reshape(B, H // s, s, W // s, s, C).mean(axis=(2, 4))
        feats.append(jnp.einsum("bhwc,cd->bhwd", pooled, proj))
    return feats


# ----------------------------------------------------------------------------
# VisOpenDet.forward (kernel-backed)
# ----------------------------------------------------------------------------
def vis_open_det_forward(x_nchw, x_mask, params):
    # x = x.tensors ; x_mask = x.mask   (NestedTensor unpacking)
    # TODO(synk): multi_scale random resize only applies in training mode; eval path skips it.
    feats = mock_backbone(x_nchw, params["backbone"])          # external module (stub)
    # feat.permute(0, 3, 1, 2): we keep NHWC so channels sit on the 128-wide lane axis.
    feats = [f.astype(jnp.bfloat16) for f in feats]            # bf16 storage halves HBM traffic

    gmat, gmat_t = params["gmat"], params["gmat_t"]
    srcs, masks = [], []
    for lvl, f in enumerate(feats):
        B, H, W, C = f.shape
        p = params["levels"][lvl]
        y = fused_conv1x1_gn(f.reshape(B, H * W, C), p["w"], p["b"], p["gamma"], p["beta"],
                             gmat, gmat_t)
        srcs.append(y.reshape(B, H, W, HIDDEN_DIM))
        # TODO(synk): strided-slice nearest stand-in for F.interpolate(mask); exact only when
        # shapes divide evenly.
        masks.append(x_mask[:, ::x_mask.shape[1] // H, ::x_mask.shape[2] // W])

    # extra level: 3x3/s2 conv as ONE matmul per batch (taps on the contraction axis) + GN,
    # reusing the same fused kernel with Cin = 9*C.
    # TODO(synk): the im2col gather is built host-side (~2.25x of the coarsest level's bytes);
    # an in-kernel shifted-window DMA from HBM (memory_space=pl.ANY) would reach ~1x.
    e = params["extra"]
    x_taps, ho, wo = _im2col_3x3_s2(feats[-1])
    B = x_taps.shape[0]
    y = fused_conv1x1_gn(x_taps, e["w"], e["b"], e["gamma"], e["beta"], gmat, gmat_t)
    srcs.append(y.reshape(B, ho, wo, HIDDEN_DIM))
    masks.append(masks[-1][:, ::2, ::2])

    # TODO(synk): transformer encoder (visual prompts) and decoder are externally injected
    # modules with no definition in this class; return projected multi-scale features.
    return srcs, masks


# ----------------------------------------------------------------------------
# Pure-JAX references (correctness checks)
# ----------------------------------------------------------------------------
def _ref_groupnorm(y, gamma, beta):
    B, N, C = y.shape
    yg = y.reshape(B, N, NUM_GROUPS, C // NUM_GROUPS)
    mean = yg.mean(axis=(1, 3), keepdims=True)
    var = ((yg - mean) ** 2).mean(axis=(1, 3), keepdims=True)
    yn = (yg - mean) * lax.rsqrt(var + GN_EPS)
    return yn.reshape(B, N, C) * gamma + beta


def ref_conv_gn(x_flat, w, b, gamma, beta):
    y = jnp.einsum("bnc,cd->bnd", x_flat, w, preferred_element_type=jnp.float32) + b
    return _ref_groupnorm(y, gamma, beta)


def ref_extra_conv_gn(feat, w_flat, b, gamma, beta):
    B, H, W, C = feat.shape
    ho, wo = H // 2, W // 2
    w9 = w_flat.reshape(9, C, HIDDEN_DIM)
    xp = jnp.pad(feat, ((0, 0), (1, 1), (1, 1), (0, 0)))
    y = jnp.zeros((B, ho * wo, HIDDEN_DIM), jnp.float32)
    for ky in range(3):
        for kx in range(3):
            xt = xp[:, ky:ky + 2 * ho:2, kx:kx + 2 * wo:2, :].reshape(B, ho * wo, C)
            y = y + jnp.einsum("bnc,cd->bnd", xt, w9[ky * 3 + kx],
                               preferred_element_type=jnp.float32)
    return _ref_groupnorm(y + b, gamma, beta)


if __name__ == "__main__":
    key = jax.random.PRNGKey(0)
    k_x, k_p = jax.random.split(key)
    params = init_params(k_p)

    # small input consistent with the module's NCHW conv convention
    x = jax.random.normal(k_x, (2, 3, 32, 32), jnp.float32)    # NestedTensor.tensors
    x_mask = jnp.zeros((2, 32, 32), jnp.bool_)                 # NestedTensor.mask

    fwd = jax.jit(vis_open_det_forward)
    srcs, masks = jax.block_until_ready(fwd(x, x_mask, params))

    # ---- verify the Pallas hot paths against pure-JAX references ----
    feats = mock_backbone(x, params["backbone"])
    feats_bf = [f.astype(jnp.bfloat16) for f in feats]

    for lvl, f in enumerate(feats_bf):
        B, H, W, C = f.shape
        p = params["levels"][lvl]
        ref = ref_conv_gn(f.reshape(B, H * W, C), p["w"], p["b"], p["gamma"], p["beta"])
        got = srcs[lvl].reshape(B, H * W, HIDDEN_DIM).astype(jnp.float32)
        np.testing.assert_allclose(np.asarray(got), np.asarray(ref), rtol=3e-2, atol=3e-2)

    e = params["extra"]
    ref3 = ref_extra_conv_gn(feats_bf[-1], e["w"], e["b"], e["gamma"], e["beta"])
    got3 = srcs[3].reshape(2, -1, HIDDEN_DIM).astype(jnp.float32)
    np.testing.assert_allclose(np.asarray(got3), np.asarray(ref3), rtol=3e-2, atol=3e-2)

    # ---- also exercise the two-phase (N-tiled) GroupNorm path used at production sizes ----
    lvl0 = feats_bf[0]
    B, H, W, C = lvl0.shape
    p0 = params["levels"][0]
    got_tiled = fused_conv1x1_gn(lvl0.reshape(B, H * W, C), p0["w"], p0["b"], p0["gamma"],
                                 p0["beta"], params["gmat"], params["gmat_t"], tile_rows=64)
    ref0 = ref_conv_gn(lvl0.reshape(B, H * W, C), p0["w"], p0["b"], p0["gamma"], p0["beta"])
    np.testing.assert_allclose(np.asarray(got_tiled.astype(jnp.float32)), np.asarray(ref0),
                               rtol=3e-2, atol=3e-2)

    assert [s.shape for s in srcs] == [(2, 16, 16, 256), (2, 8, 8, 256),
                                       (2, 4, 4, 256), (2, 2, 2, 256)]
    assert [m.shape for m in masks] == [(2, 16, 16), (2, 8, 8), (2, 4, 4), (2, 2, 2)]
    print("KERNEL_OK")
</pallas_src>

<mosaic_0001>
module attributes {stable_mosaic.version = 11 : i64} {
  func.func @_conv_gn_single_kernel(%arg0: i32, %arg1: memref<1x256x32xbf16, #tpu.memory_space<vmem>>, %arg2: memref<32x256xbf16, #tpu.memory_space<vmem>>, %arg3: memref<1x256xf32, #tpu.memory_space<vmem>>, %arg4: memref<1x256xf32, #tpu.memory_space<vmem>>, %arg5: memref<1x256xf32, #tpu.memory_space<vmem>>, %arg6: memref<256x32xf32, #tpu.memory_space<vmem>>, %arg7: memref<32x256xf32, #tpu.memory_space<vmem>>, %arg8: memref<1x256x256xbf16, #tpu.memory_space<vmem>>) attributes {dimension_semantics = [#tpu.dimension_semantics<parallel>], iteration_bounds = array<i64: 2>, scalar_prefetch = 0 : i64, scratch_operands = 0 : i64, tpu.core_type = #tpu.core_type<tc>, window_params = [{transform_indices = @transform_0, window_bounds = array<i64: 1, 256, 32>}, {pipeline_mode = #tpu.pipeline_mode<synchronous>, transform_indices = @transform_1, window_bounds = array<i64: 32, 256>}, {pipeline_mode = #tpu.pipeline_mode<synchronous>, transform_indices = @transform_2, window_bounds = array<i64: 1, 256>}, {pipeline_mode = #tpu.pipeline_mode<synchronous>, transform_indices = @transform_3, window_bounds = array<i64: 1, 256>}, {pipeline_mode = #tpu.pipeline_mode<synchronous>, transform_indices = @transform_4, window_bounds = array<i64: 1, 256>}, {pipeline_mode = #tpu.pipeline_mode<synchronous>, transform_indices = @transform_5, window_bounds = array<i64: 256, 32>}, {pipeline_mode = #tpu.pipeline_mode<synchronous>, transform_indices = @transform_6, window_bounds = array<i64: 32, 256>}, {transform_indices = @transform_7, window_bounds = array<i64: 1, 256, 256>}]} {
    %c0 = arith.constant 0 : index
    %c0_0 = arith.constant 0 : index
    %c0_1 = arith.constant 0 : index
    %0 = vector.load %arg1[%c0, %c0_0, %c0_1] : memref<1x256x32xbf16, #tpu.memory_space<vmem>>, vector<1x256x32xbf16>
    %1 = vector.shape_cast %0 : vector<1x256x32xbf16> to vector<256x32xbf16>
    %c0_2 = arith.constant 0 : index
    %c0_3 = arith.constant 0 : index
    %2 = vector.load %arg2[%c0_2, %c0_3] : memref<32x256xbf16, #tpu.memory_space<vmem>>, vector<32x256xbf16>
    %cst = arith.constant dense<0.000000e+00> : vector<256x256xf32>
    %3 = tpu.matmul %1, %2, %cst {dimension_numbers = #tpu.dot_dimension_numbers<[1], [0], [0], [1], [0, 0, 1, 1], [], []>} : vector<256x32xbf16>, vector<32x256xbf16>, vector<256x256xf32> -> vector<256x256xf32>
    %cst_4 = arith.constant dense<0.000000e+00> : vector<256xf32>
    %4 = vector.multi_reduction <add>, %3, %cst_4 [0] : vector<256x256xf32> to vector<256xf32>
    %5 = vector.shape_cast %4 : vector<256xf32> to vector<1x256xf32>
    %6 = arith.mulf %3, %3 : vector<256x256xf32>
    %cst_5 = arith.constant dense<0.000000e+00> : vector<256xf32>
    %7 = vector.multi_reduction <add>, %6, %cst_5 [0] : vector<256x256xf32> to vector<256xf32>
    %8 = vector.shape_cast %7 : vector<256xf32> to vector<1x256xf32>
    %c0_6 = arith.constant 0 : index
    %c0_7 = arith.constant 0 : index
    %9 = vector.load %arg3[%c0_6, %c0_7] : memref<1x256xf32, #tpu.memory_space<vmem>>, vector<1x256xf32>
    %c0_8 = arith.constant 0 : index
    %c0_9 = arith.constant 0 : index
    %10 = vector.load %arg4[%c0_8, %c0_9] : memref<1x256xf32, #tpu.memory_space<vmem>>, vector<1x256xf32>
    %c0_10 = arith.constant 0 : index
    %c0_11 = arith.constant 0 : index
    %11 = vector.load %arg5[%c0_10, %c0_11] : memref<1x256xf32, #tpu.memory_space<vmem>>, vector<1x256xf32>
    %c0_12 = arith.constant 0 : index
    %c0_13 = arith.constant 0 : index
    %12 = vector.load %arg6[%c0_12, %c0_13] : memref<256x32xf32, #tpu.memory_space<vmem>>, vector<256x32xf32>
    %c0_14 = arith.constant 0 : index
    %c0_15 = arith.constant 0 : index
    %13 = vector.load %arg7[%c0_14, %c0_15] : memref<32x256xf32, #tpu.memory_space<vmem>>, vector<32x256xf32>
    %cst_16 = arith.constant 2.560000e+02 : f32
    %14 = vector.broadcast %cst_16 : f32 to vector<1x256xf32>
    %15 = arith.mulf %14, %9 : vector<1x256xf32>
    %16 = arith.addf %5, %15 : vector<1x256xf32>
    %cst_17 = arith.constant 2.000000e+00 : f32
    %17 = vector.broadcast %cst_17 : f32 to vector<1x256xf32>
    %18 = arith.mulf %17, %9 : vector<1x256xf32>
    %19 = arith.mulf %18, %5 : vector<1x256xf32>
    %20 = arith.addf %8, %19 : vector<1x256xf32>
    %21 = arith.mulf %9, %9 : vector<1x256xf32>
    %cst_18 = arith.constant 2.560000e+02 : f32
    %22 = vector.broadcast %cst_18 : f32 to vector<1x256xf32>
    %23 = arith.mulf %22, %21 : vector<1x256xf32>
    %24 = arith.addf %20, %23 : vector<1x256xf32>
    %25 = tpu.concatenate %16, %24 in 0 : vector<1x256xf32>, vector<1x256xf32> -> vector<2x256xf32>
    %cst_19 = arith.constant dense<0.000000e+00> : vector<2x32xf32>
    %26 = tpu.matmul %25, %12, %cst_19 {dimension_numbers = #tpu.dot_dimension_numbers<[1], [0], [0], [1], [0, 0, 1, 1], [], []>} : vector<2x256xf32>, vector<256x32xf32>, vector<2x32xf32> -> vector<2x32xf32>
    %27 = vector.extract_strided_slice %26 {offsets = [0, 0], sizes = [1, 32], strides = [1, 1]} : vector<2x32xf32> to vector<1x32xf32>
    %cst_20 = arith.constant 4.8828125E-4 : f32
    %28 = vector.broadcast %cst_20 : f32 to vector<1x32xf32>
    %29 = arith.mulf %27, %28 : vector<1x32xf32>
    %30 = vector.extract_strided_slice %26 {offsets = [1, 0], sizes = [1, 32], strides = [1, 1]} : vector<2x32xf32> to vector<1x32xf32>
    %cst_21 = arith.constant 4.8828125E-4 : f32
    %31 = vector.broadcast %cst_21 : f32 to vector<1x32xf32>
    %32 = arith.mulf %30, %31 : vector<1x32xf32>
    %33 = arith.mulf %29, %29 : vector<1x32xf32>
    %34 = arith.subf %32, %33 : vector<1x32xf32>
    %cst_22 = arith.constant 0.000000e+00 : f32
    %35 = vector.broadcast %cst_22 : f32 to vector<1x32xf32>
    %36 = arith.maximumf %34, %35 : vector<1x32xf32>
    %cst_23 = arith.constant 9.99999974E-6 : f32
    %37 = vector.broadcast %cst_23 : f32 to vector<1x32xf32>
    %38 = arith.addf %36, %37 : vector<1x32xf32>
    %39 = math.rsqrt %38 : vector<1x32xf32>
    %40 = tpu.concatenate %29, %39 in 0 : vector<1x32xf32>, vector<1x32xf32> -> vector<2x32xf32>
    %cst_24 = arith.constant dense<0.000000e+00> : vector<2x256xf32>
    %41 = tpu.matmul %40, %13, %cst_24 {dimension_numbers = #tpu.dot_dimension_numbers<[1], [0], [0], [1], [0, 0, 1, 1], [], []>} : vector<2x32xf32>, vector<32x256xf32>, vector<2x256xf32> -> vector<2x256xf32>
    %42 = vector.extract_strided_slice %41 {offsets = [1, 0], sizes = [1, 256], strides = [1, 1]} : vector<2x256xf32> to vector<1x256xf32>
    %43 = arith.mulf %42, %10 : vector<1x256xf32>
    %44 = vector.extract_strided_slice %41 {offsets = [0, 0], sizes = [1, 256], strides = [1, 1]} : vector<2x256xf32> to vector<1x256xf32>
    %45 = arith.subf %9, %44 : vector<1x256xf32>
    %46 = arith.mulf %45, %43 : vector<1x256xf32>
    %47 = arith.addf %11, %46 : vector<1x256xf32>
    %48 = vector.broadcast %43 : vector<1x256xf32> to vector<256x256xf32>
    %49 = arith.mulf %3, %48 : vector<256x256xf32>
    %50 = vector.broadcast %47 : vector<1x256xf32> to vector<256x256xf32>
    %51 = arith.addf %49, %50 : vector<256x256xf32>
    %52 = arith.truncf %51 : vector<256x256xf32> to vector<256x256xbf16>
    %c0_25 = arith.constant 0 : index
    %c0_26 = arith.constant 0 : index
    %c0_27 = arith.constant 0 : index
    %53 = vector.load %arg8[%c0_25, %c0_26, %c0_27] : memref<1x256x256xbf16, #tpu.memory_space<vmem>>, vector<1x256x256xbf16>
    %54 = vector.shape_cast %53 : vector<1x256x256xbf16> to vector<256x256xbf16>
    %55 = vector.shape_cast %52 : vector<256x256xbf16> to vector<1x256x256xbf16>
    tpu.vector_store %arg8[%c0_25, %c0_26, %c0_27], %55 {strides = array<i32>} : memref<1x256x256xbf16, #tpu.memory_space<vmem>>, vector<1x256x256xbf16>,
    return
  }
  func.func @transform_0(%arg0: i32) -> (i32, i32, i32) {
    %c0_i32 = arith.constant 0 : i32
    %c0_i32_0 = arith.constant 0 : i32
    %c0_i32_1 = arith.constant 0 : i32
    return %arg0, %c0_i32, %c0_i32_0 : i32, i32, i32
  }
  func.func @transform_1(%arg0: i32) -> (i32, i32) {
    %c0_i32 = arith.constant 0 : i32
    %c0_i32_0 = arith.constant 0 : i32
    %c0_i32_1 = arith.constant 0 : i32
    return %c0_i32, %c0_i32_0 : i32, i32
  }
  func.func @transform_2(%arg0: i32) -> (i32, i32) {
    %c0_i32 = arith.constant 0 : i32
    %c0_i32_0 = arith.constant 0 : i32
    %c0_i32_1 = arith.constant 0 : i32
    return %c0_i32, %c0_i32_0 : i32, i32
  }
  func.func @transform_3(%arg0: i32) -> (i32, i32) {
    %c0_i32 = arith.constant 0 : i32
    %c0_i32_0 = arith.constant 0 : i32
    %c0_i32_1 = arith.constant 0 : i32
    return %c0_i32, %c0_i32_0 : i32, i32
  }
  func.func @transform_4(%arg0: i32) -> (i32, i32) {
    %c0_i32 = arith.constant 0 : i32
    %c0_i32_0 = arith.constant 0 : i32
    %c0_i32_1 = arith.constant 0 : i32
    return %c0_i32, %c0_i32_0 : i32, i32
  }
  func.func @transform_5(%arg0: i32) -> (i32, i32) {
    %c0_i32 = arith.constant 0 : i32
    %c0_i32_0 = arith.constant 0 : i32
    %c0_i32_1 = arith.constant 0 : i32
    return %c0_i32, %c0_i32_0 : i32, i32
  }
  func.func @transform_6(%arg0: i32) -> (i32, i32) {
    %c0_i32 = arith.constant 0 : i32
    %c0_i32_0 = arith.constant 0 : i32
    %c0_i32_1 = arith.constant 0 : i32
    return %c0_i32, %c0_i32_0 : i32, i32
  }
  func.func @transform_7(%arg0: i32) -> (i32, i32, i32) {
    %c0_i32 = arith.constant 0 : i32
    %c0_i32_0 = arith.constant 0 : i32
    %c0_i32_1 = arith.constant 0 : i32
    return %arg0, %c0_i32, %c0_i32_0 : i32, i32, i32
  }
}

module attributes {stable_mosaic.version = 11 : i64} {
  func.func @_conv_gn_single_kernel(%arg0: i32, %arg1: memref<1x64x64xbf16, #tpu.memory_space<vmem>>, %arg2: memref<64x256xbf16, #tpu.memory_space<vmem>>, %arg3: memref<1x256xf32, #tpu.memory_space<vmem>>, %arg4: memref<1x256xf32, #tpu.memory_space<vmem>>, %arg5: memref<1x256xf32, #tpu.memory_space<vmem>>, %arg6: memref<256x32xf32, #tpu.memory_space<vmem>>, %arg7: memref<32x256xf32, #tpu.memory_space<vmem>>, %arg8: memref<1x64x256xbf16, #tpu.memory_space<vmem>>) attributes {dimension_semantics = [#tpu.dimension_semantics<parallel>], iteration_bounds = array<i64: 2>, scalar_prefetch = 0 : i64, scratch_operands = 0 : i64, tpu.core_type = #tpu.core_type<tc>, window_params = [{transform_indices = @transform_0, window_bounds = array<i64: 1, 64, 64>}, {pipeline_mode = #tpu.pipeline_mode<synchronous>, transform_indices = @transform_1, window_bounds = array<i64: 64, 256>}, {pipeline_mode = #tpu.pipeline_mode<synchronous>, transform_indices = @transform_2, window_bounds = array<i64: 1, 256>}, {pipeline_mode = #tpu.pipeline_mode<synchronous>, transform_indices = @transform_3, window_bounds = array<i64: 1, 256>}, {pipeline_mode = #tpu.pipeline_mode<synchronous>, transform_indices = @transform_4, window_bounds = array<i64: 1, 256>}, {pipeline_mode = #tpu.pipeline_mode<synchronous>, transform_indices = @transform_5, window_bounds = array<i64: 256, 32>}, {pipeline_mode = #tpu.pipeline_mode<synchronous>, transform_indices = @transform_6, window_bounds = array<i64: 32, 256>}, {transform_indices = @transform_7, window_bounds = array<i64: 1, 64, 256>}]} {
    %c0 = arith.constant 0 : index
    %c0_0 = arith.constant 0 : index
    %c0_1 = arith.constant 0 : index
    %0 = vector.load %arg1[%c0, %c0_0, %c0_1] : memref<1x64x64xbf16, #tpu.memory_space<vmem>>, vector<1x64x64xbf16>
    %1 = vector.shape_cast %0 : vector<1x64x64xbf16> to vector<64x64xbf16>
    %c0_2 = arith.constant 0 : index
    %c0_3 = arith.constant 0 : index
    %2 = vector.load %arg2[%c0_2, %c0_3] : memref<64x256xbf16, #tpu.memory_space<vmem>>, vector<64x256xbf16>
    %cst = arith.constant dense<0.000000e+00> : vector<64x256xf32>
    %3 = tpu.matmul %1, %2, %cst {dimension_numbers = #tpu.dot_dimension_numbers<[1], [0], [0], [1], [0, 0, 1, 1], [], []>} : vector<64x64xbf16>, vector<64x256xbf16>, vector<64x256xf32> -> vector<64x256xf32>
    %cst_4 = arith.constant dense<0.000000e+00> : vector<256xf32>
    %4 = vector.multi_reduction <add>, %3, %cst_4 [0] : vector<64x256xf32> to vector<256xf32>
    %5 = vector.shape_cast %4 : vector<256xf32> to vector<1x256xf32>
    %6 = arith.mulf %3, %3 : vector<64x256xf32>
    %cst_5 = arith.constant dense<0.000000e+00> : vector<256xf32>
    %7 = vector.multi_reduction <add>, %6, %cst_5 [0] : vector<64x256xf32> to vector<256xf32>
    %8 = vector.shape_cast %7 : vector<256xf32> to vector<1x256xf32>
    %c0_6 = arith.constant 0 : index
    %c0_7 = arith.constant 0 : index
    %9 = vector.load %arg3[%c0_6, %c0_7] : memref<1x256xf32, #tpu.memory_space<vmem>>, vector<1x256xf32>
    %c0_8 = arith.constant 0 : index
    %c0_9 = arith.constant 0 : index
    %10 = vector.load %arg4[%c0_8, %c0_9] : memref<1x256xf32, #tpu.memory_space<vmem>>, vector<1x256xf32>
    %c0_10 = arith.constant 0 : index
    %c0_11 = arith.constant 0 : index
    %11 = vector.load %arg5[%c0_10, %c0_11] : memref<1x256xf32, #tpu.memory_space<vmem>>, vector<1x256xf32>
    %c0_12 = arith.constant 0 : index
    %c0_13 = arith.constant 0 : index
    %12 = vector.load %arg6[%c0_12, %c0_13] : memref<256x32xf32, #tpu.memory_space<vmem>>, vector<256x32xf32>
    %c0_14 = arith.constant 0 : index
    %c0_15 = arith.constant 0 : index
    %13 = vector.load %arg7[%c0_14, %c0_15] : memref<32x256xf32, #tpu.memory_space<vmem>>, vector<32x256xf32>
    %cst_16 = arith.constant 6.400000e+01 : f32
    %14 = vector.broadcast %cst_16 : f32 to vector<1x256xf32>
    %15 = arith.mulf %14, %9 : vector<1x256xf32>
    %16 = arith.addf %5, %15 : vector<1x256xf32>
    %cst_17 = arith.constant 2.000000e+00 : f32
    %17 = vector.broadcast %cst_17 : f32 to vector<1x256xf32>
    %18 = arith.mulf %17, %9 : vector<1x256xf32>
    %19 = arith.mulf %18, %5 : vector<1x256xf32>
    %20 = arith.addf %8, %19 : vector<1x256xf32>
    %21 = arith.mulf %9, %9 : vector<1x256xf32>
    %cst_18 = arith.constant 6.400000e+01 : f32
    %22 = vector.broadcast %cst_18 : f32 to vector<1x256xf32>
    %23 = arith.mulf %22, %21 : vector<1x256xf32>
    %24 = arith.addf %20, %23 : vector<1x256xf32>
    %25 = tpu.concatenate %16, %24 in 0 : vector<1x256xf32>, vector<1x256xf32> -> vector<2x256xf32>
    %cst_19 = arith.constant dense<0.000000e+00> : vector<2x32xf32>
    %26 = tpu.matmul %25, %12, %cst_19 {dimension_numbers = #tpu.dot_dimension_numbers<[1], [0], [0], [1], [0, 0, 1, 1], [], []>} : vector<2x256xf32>, vector<256x32xf32>, vector<2x32xf32> -> vector<2x32xf32>
    %27 = vector.extract_strided_slice %26 {offsets = [0, 0], sizes = [1, 32], strides = [1, 1]} : vector<2x32xf32> to vector<1x32xf32>
    %cst_20 = arith.constant 0.001953125 : f32
    %28 = vector.broadcast %cst_20 : f32 to vector<1x32xf32>
    %29 = arith.mulf %27, %28 : vector<1x32xf32>
    %30 = vector.extract_strided_slice %26 {offsets = [1, 0], sizes = [1, 32], strides = [1, 1]} : vector<2x32xf32> to vector<1x32xf32>
    %cst_21 = arith.constant 0.001953125 : f32
    %31 = vector.broadcast %cst_21 : f32 to vector<1x32xf32>
    %32 = arith.mulf %30, %31 : vector<1x32xf32>
    %33 = arith.mulf %29, %29 : vector<1x32xf32>
    %34 = arith.subf %32, %33 : vector<1x32xf32>
    %cst_22 = arith.constant 0.000000e+00 : f32
    %35 = vector.broadcast %cst_22 : f32 to vector<1x32xf32>
    %36 = arith.maximumf %34, %35 : vector<1x32xf32>
    %cst_23 = arith.constant 9.99999974E-6 : f32
    %37 = vector.broadcast %cst_23 : f32 to vector<1x32xf32>
    %38 = arith.addf %36, %37 : vector<1x32xf32>
    %39 = math.rsqrt %38 : vector<1x32xf32>
    %40 = tpu.concatenate %29, %39 in 0 : vector<1x32xf32>, vector<1x32xf32> -> vector<2x32xf32>
    %cst_24 = arith.constant dense<0.000000e+00> : vector<2x256xf32>
    %41 = tpu.matmul %40, %13, %cst_24 {dimension_numbers = #tpu.dot_dimension_numbers<[1], [0], [0], [1], [0, 0, 1, 1], [], []>} : vector<2x32xf32>, vector<32x256xf32>, vector<2x256xf32> -> vector<2x256xf32>
    %42 = vector.extract_strided_slice %41 {offsets = [1, 0], sizes = [1, 256], strides = [1, 1]} : vector<2x256xf32> to vector<1x256xf32>
    %43 = arith.mulf %42, %10 : vector<1x256xf32>
    %44 = vector.extract_strided_slice %41 {offsets = [0, 0], sizes = [1, 256], strides = [1, 1]} : vector<2x256xf32> to vector<1x256xf32>
    %45 = arith.subf %9, %44 : vector<1x256xf32>
    %46 = arith.mulf %45, %43 : vector<1x256xf32>
    %47 = arith.addf %11, %46 : vector<1x256xf32>
    %48 = vector.broadcast %43 : vector<1x256xf32> to vector<64x256xf32>
    %49 = arith.mulf %3, %48 : vector<64x256xf32>
    %50 = vector.broadcast %47 : vector<1x256xf32> to vector<64x256xf32>
    %51 = arith.addf %49, %50 : vector<64x256xf32>
    %52 = arith.truncf %51 : vector<64x256xf32> to vector<64x256xbf16>
    %c0_25 = arith.constant 0 : index
    %c0_26 = arith.constant 0 : index
    %c0_27 = arith.constant 0 : index
    %53 = vector.load %arg8[%c0_25, %c0_26, %c0_27] : memref<1x64x256xbf16, #tpu.memory_space<vmem>>, vector<1x64x256xbf16>
    %54 = vector.shape_cast %53 : vector<1x64x256xbf16> to vector<64x256xbf16>
    %55 = vector.shape_cast %52 : vector<64x256xbf16> to vector<1x64x256xbf16>
    tpu.vector_store %arg8[%c0_25, %c0_26, %c0_27], %55 {strides = array<i32>} : memref<1x64x256xbf16, #tpu.memory_space<vmem>>, vector<1x64x256xbf16>,
    return
  }
  func.func @transform_0(%arg0: i32) -> (i32, i32, i32) {
    %c0_i32 = arith.constant 0 : i32
    %c0_i32_0 = arith.constant 0 : i32
    %c0_i32_1 = arith.constant 0 : i32
    return %arg0, %c0_i32, %c0_i32_0 : i32, i32, i32
  }
  func.func @transform_1(%arg0: i32) -> (i32, i32) {
    %c0_i32 = arith.constant 0 : i32
    %c0_i32_0 = arith.constant 0 : i32
    %c0_i32_1 = arith.constant 0 : i32
    return %c0_i32, %c0_i32_0 : i32, i32
  }
  func.func @transform_2(%arg0: i32) -> (i32, i32) {
    %c0_i32 = arith.constant 0 : i32
    %c0_i32_0 = arith.constant 0 : i32
    %c0_i32_1 = arith.constant 0 : i32
    return %c0_i32, %c0_i32_0 : i32, i32
  }
  func.func @transform_3(%arg0: i32) -> (i32, i32) {
    %c0_i32 = arith.constant 0 : i32
    %c0_i32_0 = arith.constant 0 : i32
    %c0_i32_1 = arith.constant 0 : i32
    return %c0_i32, %c0_i32_0 : i32, i32
  }
  func.func @transform_4(%arg0: i32) -> (i32, i32) {
    %c0_i32 = arith.constant 0 : i32
    %c0_i32_0 = arith.constant 0 : i32
    %c0_i32_1 = arith.constant 0 : i32
    return %c0_i32, %c0_i32_0 : i32, i32
  }
  func.func @transform_5(%arg0: i32) -> (i32, i32) {
    %c0_i32 = arith.constant 0 : i32
    %c0_i32_0 = arith.constant 0 : i32
    %c0_i32_1 = arith.constant 0 : i32
    return %c0_i32, %c0_i32_0 : i32, i32
  }
  func.func @transform_6(%arg0: i32) -> (i32, i32) {
    %c0_i32 = arith.constant 0 : i32
    %c0_i32_0 = arith.constant 0 : i32
    %c0_i32_1 = arith.constant 0 : i32
    return %c0_i32, %c0_i32_0 : i32, i32
  }
  func.func @transform_7(%arg0: i32) -> (i32, i32, i32) {
    %c0_i32 = arith.constant 0 : i32
    %c0_i32_0 = arith.constant 0 : i32
    %c0_i32_1 = arith.constant 0 : i32
    return %arg0, %c0_i32, %c0_i32_0 : i32, i32, i32
  }
}

module attributes {stable_mosaic.version = 11 : i64} {
  func.func @_conv_gn_single_kernel(%arg0: i32, %arg1: memref<1x16x128xbf16, #tpu.memory_space<vmem>>, %arg2: memref<128x256xbf16, #tpu.memory_space<vmem>>, %arg3: memref<1x256xf32, #tpu.memory_space<vmem>>, %arg4: memref<1x256xf32, #tpu.memory_space<vmem>>, %arg5: memref<1x256xf32, #tpu.memory_space<vmem>>, %arg6: memref<256x32xf32, #tpu.memory_space<vmem>>, %arg7: memref<32x256xf32, #tpu.memory_space<vmem>>, %arg8: memref<1x16x256xbf16, #tpu.memory_space<vmem>>) attributes {dimension_semantics = [#tpu.dimension_semantics<parallel>], iteration_bounds = array<i64: 2>, scalar_prefetch = 0 : i64, scratch_operands = 0 : i64, tpu.core_type = #tpu.core_type<tc>, window_params = [{transform_indices = @transform_0, window_bounds = array<i64: 1, 16, 128>}, {pipeline_mode = #tpu.pipeline_mode<synchronous>, transform_indices = @transform_1, window_bounds = array<i64: 128, 256>}, {pipeline_mode = #tpu.pipeline_mode<synchronous>, transform_indices = @transform_2, window_bounds = array<i64: 1, 256>}, {pipeline_mode = #tpu.pipeline_mode<synchronous>, transform_indices = @transform_3, window_bounds = array<i64: 1, 256>}, {pipeline_mode = #tpu.pipeline_mode<synchronous>, transform_indices = @transform_4, window_bounds = array<i64: 1, 256>}, {pipeline_mode = #tpu.pipeline_mode<synchronous>, transform_indices = @transform_5, window_bounds = array<i64: 256, 32>}, {pipeline_mode = #tpu.pipeline_mode<synchronous>, transform_indices = @transform_6, window_bounds = array<i64: 32, 256>}, {transform_indices = @transform_7, window_bounds = array<i64: 1, 16, 256>}]} {
    %c0 = arith.constant 0 : index
    %c0_0 = arith.constant 0 : index
    %c0_1 = arith.constant 0 : index
    %0 = vector.load %arg1[%c0, %c0_0, %c0_1] : memref<1x16x128xbf16, #tpu.memory_space<vmem>>, vector<1x16x128xbf16>
    %1 = vector.shape_cast %0 : vector<1x16x128xbf16> to vector<16x128xbf16>
    %c0_2 = arith.constant 0 : index
    %c0_3 = arith.constant 0 : index
    %2 = vector.load %arg2[%c0_2, %c0_3] : memref<128x256xbf16, #tpu.memory_space<vmem>>, vector<128x256xbf16>
    %cst = arith.constant dense<0.000000e+00> : vector<16x256xf32>
    %3 = tpu.matmul %1, %2, %cst {dimension_numbers = #tpu.dot_dimension_numbers<[1], [0], [0], [1], [0, 0, 1, 1], [], []>} : vector<16x128xbf16>, vector<128x256xbf16>, vector<16x256xf32> -> vector<16x256xf32>
    %cst_4 = arith.constant dense<0.000000e+00> : vector<256xf32>
    %4 = vector.multi_reduction <add>, %3, %cst_4 [0] : vector<16x256xf32> to vector<256xf32>
    %5 = vector.shape_cast %4 : vector<256xf32> to vector<1x256xf32>
    %6 = arith.mulf %3, %3 : vector<16x256xf32>
    %cst_5 = arith.constant dense<0.000000e+00> : vector<256xf32>
    %7 = vector.multi_reduction <add>, %6, %cst_5 [0] : vector<16x256xf32> to vector<256xf32>
    %8 = vector.shape_cast %7 : vector<256xf32> to vector<1x256xf32>
    %c0_6 = arith.constant 0 : index
    %c0_7 = arith.constant 0 : index
    %9 = vector.load %arg3[%c0_6, %c0_7] : memref<1x256xf32, #tpu.memory_space<vmem>>, vector<1x256xf32>
    %c0_8 = arith.constant 0 : index
    %c0_9 = arith.constant 0 : index
    %10 = vector.load %arg4[%c0_8, %c0_9] : memref<1x256xf32, #tpu.memory_space<vmem>>, vector<1x256xf32>
    %c0_10 = arith.constant 0 : index
    %c0_11 = arith.constant 0 : index
    %11 = vector.load %arg5[%c0_10, %c0_11] : memref<1x256xf32, #tpu.memory_space<vmem>>, vector<1x256xf32>
    %c0_12 = arith.constant 0 : index
    %c0_13 = arith.constant 0 : index
    %12 = vector.load %arg6[%c0_12, %c0_13] : memref<256x32xf32, #tpu.memory_space<vmem>>, vector<256x32xf32>
    %c0_14 = arith.constant 0 : index
    %c0_15 = arith.constant 0 : index
    %13 = vector.load %arg7[%c0_14, %c0_15] : memref<32x256xf32, #tpu.memory_space<vmem>>, vector<32x256xf32>
    %cst_16 = arith.constant 1.600000e+01 : f32
    %14 = vector.broadcast %cst_16 : f32 to vector<1x256xf32>
    %15 = arith.mulf %14, %9 : vector<1x256xf32>
    %16 = arith.addf %5, %15 : vector<1x256xf32>
    %cst_17 = arith.constant 2.000000e+00 : f32
    %17 = vector.broadcast %cst_17 : f32 to vector<1x256xf32>
    %18 = arith.mulf %17, %9 : vector<1x256xf32>
    %19 = arith.mulf %18, %5 : vector<1x256xf32>
    %20 = arith.addf %8, %19 : vector<1x256xf32>
    %21 = arith.mulf %9, %9 : vector<1x256xf32>
    %cst_18 = arith.constant 1.600000e+01 : f32
    %22 = vector.broadcast %cst_18 : f32 to vector<1x256xf32>
    %23 = arith.mulf %22, %21 : vector<1x256xf32>
    %24 = arith.addf %20, %23 : vector<1x256xf32>
    %25 = tpu.concatenate %16, %24 in 0 : vector<1x256xf32>, vector<1x256xf32> -> vector<2x256xf32>
    %cst_19 = arith.constant dense<0.000000e+00> : vector<2x32xf32>
    %26 = tpu.matmul %25, %12, %cst_19 {dimension_numbers = #tpu.dot_dimension_numbers<[1], [0], [0], [1], [0, 0, 1, 1], [], []>} : vector<2x256xf32>, vector<256x32xf32>, vector<2x32xf32> -> vector<2x32xf32>
    %27 = vector.extract_strided_slice %26 {offsets = [0, 0], sizes = [1, 32], strides = [1, 1]} : vector<2x32xf32> to vector<1x32xf32>
    %cst_20 = arith.constant 7.812500e-03 : f32
    %28 = vector.broadcast %cst_20 : f32 to vector<1x32xf32>
    %29 = arith.mulf %27, %28 : vector<1x32xf32>
    %30 = vector.extract_strided_slice %26 {offsets = [1, 0], sizes = [1, 32], strides = [1, 1]} : vector<2x32xf32> to vector<1x32xf32>
    %cst_21 = arith.constant 7.812500e-03 : f32
    %31 = vector.broadcast %cst_21 : f32 to vector<1x32xf32>
    %32 = arith.mulf %30, %31 : vector<1x32xf32>
    %33 = arith.mulf %29, %29 : vector<1x32xf32>
    %34 = arith.subf %32, %33 : vector<1x32xf32>
    %cst_22 = arith.constant 0.000000e+00 : f32
    %35 = vector.broadcast %cst_22 : f32 to vector<1x32xf32>
    %36 = arith.maximumf %34, %35 : vector<1x32xf32>
    %cst_23 = arith.constant 9.99999974E-6 : f32
    %37 = vector.broadcast %cst_23 : f32 to vector<1x32xf32>
    %38 = arith.addf %36, %37 : vector<1x32xf32>
    %39 = math.rsqrt %38 : vector<1x32xf32>
    %40 = tpu.concatenate %29, %39 in 0 : vector<1x32xf32>, vector<1x32xf32> -> vector<2x32xf32>
    %cst_24 = arith.constant dense<0.000000e+00> : vector<2x256xf32>
    %41 = tpu.matmul %40, %13, %cst_24 {dimension_numbers = #tpu.dot_dimension_numbers<[1], [0], [0], [1], [0, 0, 1, 1], [], []>} : vector<2x32xf32>, vector<32x256xf32>, vector<2x256xf32> -> vector<2x256xf32>
    %42 = vector.extract_strided_slice %41 {offsets = [1, 0], sizes = [1, 256], strides = [1, 1]} : vector<2x256xf32> to vector<1x256xf32>
    %43 = arith.mulf %42, %10 : vector<1x256xf32>
    %44 = vector.extract_strided_slice %41 {offsets = [0, 0], sizes = [1, 256], strides = [1, 1]} : vector<2x256xf32> to vector<1x256xf32>
    %45 = arith.subf %9, %44 : vector<1x256xf32>
    %46 = arith.mulf %45, %43 : vector<1x256xf32>
    %47 = arith.addf %11, %46 : vector<1x256xf32>
    %48 = vector.broadcast %43 : vector<1x256xf32> to vector<16x256xf32>
    %49 = arith.mulf %3, %48 : vector<16x256xf32>
    %50 = vector.broadcast %47 : vector<1x256xf32> to vector<16x256xf32>
    %51 = arith.addf %49, %50 : vector<16x256xf32>
    %52 = arith.truncf %51 : vector<16x256xf32> to vector<16x256xbf16>
    %c0_25 = arith.constant 0 : index
    %c0_26 = arith.constant 0 : index
    %c0_27 = arith.constant 0 : index
    %53 = vector.load %arg8[%c0_25, %c0_26, %c0_27] : memref<1x16x256xbf16, #tpu.memory_space<vmem>>, vector<1x16x256xbf16>
    %54 = vector.shape_cast %53 : vector<1x16x256xbf16> to vector<16x256xbf16>
    %55 = vector.shape_cast %52 : vector<16x256xbf16> to vector<1x16x256xbf16>
    tpu.vector_store %arg8[%c0_25, %c0_26, %c0_27], %55 {strides = array<i32>} : memref<1x16x256xbf16, #tpu.memory_space<vmem>>, vector<1x16x256xbf16>,
    return
  }
  func.func @transform_0(%arg0: i32) -> (i32, i32, i32) {
    %c0_i32 = arith.constant 0 : i32
    %c0_i32_0 = arith.constant 0 : i32
    %c0_i32_1 = arith.constant 0 : i32
    return %arg0, %c0_i32, %c0_i32_0 : i32, i32, i32
  }
  func.func @transform_1(%arg0: i32) -> (i32, i32) {
    %c0_i32 = arith.constant 0 : i32
    %c0_i32_0 = arith.constant 0 : i32
    %c0_i32_1 = arith.constant 0 : i32
    return %c0_i32, %c0_i32_0 : i32, i32
  }
  func.func @transform_2(%arg0: i32) -> (i32, i32) {
    %c0_i32 = arith.constant 0 : i32
    %c0_i32_0 = arith.constant 0 : i32
    %c0_i32_1 = arith.constant 0 : i32
    return %c0_i32, %c0_i32_0 : i32, i32
  }
  func.func @transform_3(%arg0: i32) -> (i32, i32) {
    %c0_i32 = arith.constant 0 : i32
    %c0_i32_0 = arith.constant 0 : i32
    %c0_i32_1 = arith.constant 0 : i32
    return %c0_i32, %c0_i32_0 : i32, i32
  }
  func.func @transform_4(%arg0: i32) -> (i32, i32) {
    %c0_i32 = arith.constant 0 : i32
    %c0_i32_0 = arith.constant 0 : i32
    %c0_i32_1 = arith.constant 0 : i32
    return %c0_i32, %c0_i32_0 : i32, i32
  }
  func.func @transform_5(%arg0: i32) -> (i32, i32) {
    %c0_i32 = arith.constant 0 : i32
    %c0_i32_0 = arith.constant 0 : i32
    %c0_i32_1 = arith.constant 0 : i32
    return %c0_i32, %c0_i32_0 : i32, i32
  }
  func.func @transform_6(%arg0: i32) -> (i32, i32) {
    %c0_i32 = arith.constant 0 : i32
    %c0_i32_0 = arith.constant 0 : i32
    %c0_i32_1 = arith.constant 0 : i32
    return %c0_i32, %c0_i32_0 : i32, i32
  }
  func.func @transform_7(%arg0: i32) -> (i32, i32, i32) {
    %c0_i32 = arith.constant 0 : i32
    %c0_i32_0 = arith.constant 0 : i32
    %c0_i32_1 = arith.constant 0 : i32
    return %arg0, %c0_i32, %c0_i32_0 : i32, i32, i32
  }
}

module attributes {stable_mosaic.version = 11 : i64} {
  func.func @_conv_gn_single_kernel(%arg0: i32, %arg1: memref<1x16x1152xbf16, #tpu.memory_space<vmem>>, %arg2: memref<1152x256xbf16, #tpu.memory_space<vmem>>, %arg3: memref<1x256xf32, #tpu.memory_space<vmem>>, %arg4: memref<1x256xf32, #tpu.memory_space<vmem>>, %arg5: memref<1x256xf32, #tpu.memory_space<vmem>>, %arg6: memref<256x32xf32, #tpu.memory_space<vmem>>, %arg7: memref<32x256xf32, #tpu.memory_space<vmem>>, %arg8: memref<1x16x256xbf16, #tpu.memory_space<vmem>>) attributes {dimension_semantics = [#tpu.dimension_semantics<parallel>], iteration_bounds = array<i64: 2>, scalar_prefetch = 0 : i64, scratch_operands = 0 : i64, tpu.core_type = #tpu.core_type<tc>, window_params = [{transform_indices = @transform_0, window_bounds = array<i64: 1, 16, 1152>}, {pipeline_mode = #tpu.pipeline_mode<synchronous>, transform_indices = @transform_1, window_bounds = array<i64: 1152, 256>}, {pipeline_mode = #tpu.pipeline_mode<synchronous>, transform_indices = @transform_2, window_bounds = array<i64: 1, 256>}, {pipeline_mode = #tpu.pipeline_mode<synchronous>, transform_indices = @transform_3, window_bounds = array<i64: 1, 256>}, {pipeline_mode = #tpu.pipeline_mode<synchronous>, transform_indices = @transform_4, window_bounds = array<i64: 1, 256>}, {pipeline_mode = #tpu.pipeline_mode<synchronous>, transform_indices = @transform_5, window_bounds = array<i64: 256, 32>}, {pipeline_mode = #tpu.pipeline_mode<synchronous>, transform_indices = @transform_6, window_bounds = array<i64: 32, 256>}, {transform_indices = @transform_7, window_bounds = array<i64: 1, 16, 256>}]} {
    %c0 = arith.constant 0 : index
    %c0_0 = arith.constant 0 : index
    %c0_1 = arith.constant 0 : index
    %0 = vector.load %arg1[%c0, %c0_0, %c0_1] : memref<1x16x1152xbf16, #tpu.memory_space<vmem>>, vector<1x16x1152xbf16>
    %1 = vector.shape_cast %0 : vector<1x16x1152xbf16> to vector<16x1152xbf16>
    %c0_2 = arith.constant 0 : index
    %c0_3 = arith.constant 0 : index
    %2 = vector.load %arg2[%c0_2, %c0_3] : memref<1152x256xbf16, #tpu.memory_space<vmem>>, vector<1152x256xbf16>
    %cst = arith.constant dense<0.000000e+00> : vector<16x256xf32>
    %3 = tpu.matmul %1, %2, %cst {dimension_numbers = #tpu.dot_dimension_numbers<[1], [0], [0], [1], [0, 0, 1, 1], [], []>} : vector<16x1152xbf16>, vector<1152x256xbf16>, vector<16x256xf32> -> vector<16x256xf32>
    %cst_4 = arith.constant dense<0.000000e+00> : vector<256xf32>
    %4 = vector.multi_reduction <add>, %3, %cst_4 [0] : vector<16x256xf32> to vector<256xf32>
    %5 = vector.shape_cast %4 : vector<256xf32> to vector<1x256xf32>
    %6 = arith.mulf %3, %3 : vector<16x256xf32>
    %cst_5 = arith.constant dense<0.000000e+00> : vector<256xf32>
    %7 = vector.multi_reduction <add>, %6, %cst_5 [0] : vector<16x256xf32> to vector<256xf32>
    %8 = vector.shape_cast %7 : vector<256xf32> to vector<1x256xf32>
    %c0_6 = arith.constant 0 : index
    %c0_7 = arith.constant 0 : index
    %9 = vector.load %arg3[%c0_6, %c0_7] : memref<1x256xf32, #tpu.memory_space<vmem>>, vector<1x256xf32>
    %c0_8 = arith.constant 0 : index
    %c0_9 = arith.constant 0 : index
    %10 = vector.load %arg4[%c0_8, %c0_9] : memref<1x256xf32, #tpu.memory_space<vmem>>, vector<1x256xf32>
    %c0_10 = arith.constant 0 : index
    %c0_11 = arith.constant 0 : index
    %11 = vector.load %arg5[%c0_10, %c0_11] : memref<1x256xf32, #tpu.memory_space<vmem>>, vector<1x256xf32>
    %c0_12 = arith.constant 0 : index
    %c0_13 = arith.constant 0 : index
    %12 = vector.load %arg6[%c0_12, %c0_13] : memref<256x32xf32, #tpu.memory_space<vmem>>, vector<256x32xf32>
    %c0_14 = arith.constant 0 : index
    %c0_15 = arith.constant 0 : index
    %13 = vector.load %arg7[%c0_14, %c0_15] : memref<32x256xf32, #tpu.memory_space<vmem>>, vector<32x256xf32>
    %cst_16 = arith.constant 4.000000e+00 : f32
    %14 = vector.broadcast %cst_16 : f32 to vector<1x256xf32>
    %15 = arith.mulf %14, %9 : vector<1x256xf32>
    %16 = arith.addf %5, %15 : vector<1x256xf32>
    %cst_17 = arith.constant 2.000000e+00 : f32
    %17 = vector.broadcast %cst_17 : f32 to vector<1x256xf32>
    %18 = arith.mulf %17, %9 : vector<1x256xf32>
    %19 = arith.mulf %18, %5 : vector<1x256xf32>
    %20 = arith.addf %8, %19 : vector<1x256xf32>
    %21 = arith.mulf %9, %9 : vector<1x256xf32>
    %cst_18 = arith.constant 4.000000e+00 : f32
    %22 = vector.broadcast %cst_18 : f32 to vector<1x256xf32>
    %23 = arith.mulf %22, %21 : vector<1x256xf32>
    %24 = arith.addf %20, %23 : vector<1x256xf32>
    %25 = tpu.concatenate %16, %24 in 0 : vector<1x256xf32>, vector<1x256xf32> -> vector<2x256xf32>
    %cst_19 = arith.constant dense<0.000000e+00> : vector<2x32xf32>
    %26 = tpu.matmul %25, %12, %cst_19 {dimension_numbers = #tpu.dot_dimension_numbers<[1], [0], [0], [1], [0, 0, 1, 1], [], []>} : vector<2x256xf32>, vector<256x32xf32>, vector<2x32xf32> -> vector<2x32xf32>
    %27 = vector.extract_strided_slice %26 {offsets = [0, 0], sizes = [1, 32], strides = [1, 1]} : vector<2x32xf32> to vector<1x32xf32>
    %cst_20 = arith.constant 3.125000e-02 : f32
    %28 = vector.broadcast %cst_20 : f32 to vector<1x32xf32>
    %29 = arith.mulf %27, %28 : vector<1x32xf32>
    %30 = vector.extract_strided_slice %26 {offsets = [1, 0], sizes = [1, 32], strides = [1, 1]} : vector<2x32xf32> to vector<1x32xf32>
    %cst_21 = arith.constant 3.125000e-02 : f32
    %31 = vector.broadcast %cst_21 : f32 to vector<1x32xf32>
    %32 = arith.mulf %30, %31 : vector<1x32xf32>
    %33 = arith.mulf %29, %29 : vector<1x32xf32>
    %34 = arith.subf %32, %33 : vector<1x32xf32>
    %cst_22 = arith.constant 0.000000e+00 : f32
    %35 = vector.broadcast %cst_22 : f32 to vector<1x32xf32>
    %36 = arith.maximumf %34, %35 : vector<1x32xf32>
    %cst_23 = arith.constant 9.99999974E-6 : f32
    %37 = vector.broadcast %cst_23 : f32 to vector<1x32xf32>
    %38 = arith.addf %36, %37 : vector<1x32xf32>
    %39 = math.rsqrt %38 : vector<1x32xf32>
    %40 = tpu.concatenate %29, %39 in 0 : vector<1x32xf32>, vector<1x32xf32> -> vector<2x32xf32>
    %cst_24 = arith.constant dense<0.000000e+00> : vector<2x256xf32>
    %41 = tpu.matmul %40, %13, %cst_24 {dimension_numbers = #tpu.dot_dimension_numbers<[1], [0], [0], [1], [0, 0, 1, 1], [], []>} : vector<2x32xf32>, vector<32x256xf32>, vector<2x256xf32> -> vector<2x256xf32>
    %42 = vector.extract_strided_slice %41 {offsets = [1, 0], sizes = [1, 256], strides = [1, 1]} : vector<2x256xf32> to vector<1x256xf32>
    %43 = arith.mulf %42, %10 : vector<1x256xf32>
    %44 = vector.extract_strided_slice %41 {offsets = [0, 0], sizes = [1, 256], strides = [1, 1]} : vector<2x256xf32> to vector<1x256xf32>
    %45 = arith.subf %9, %44 : vector<1x256xf32>
    %46 = arith.mulf %45, %43 : vector<1x256xf32>
    %47 = arith.addf %11, %46 : vector<1x256xf32>
    %48 = vector.broadcast %43 : vector<1x256xf32> to vector<16x256xf32>
    %49 = arith.mulf %3, %48 : vector<16x256xf32>
    %50 = vector.broadcast %47 : vector<1x256xf32> to vector<16x256xf32>
    %51 = arith.addf %49, %50 : vector<16x256xf32>
    %52 = arith.truncf %51 : vector<16x256xf32> to vector<16x256xbf16>
    %c0_25 = arith.constant 0 : index
    %c0_26 = arith.constant 0 : index
    %c0_27 = arith.constant 0 : index
    %53 = vector.load %arg8[%c0_25, %c0_26, %c0_27] : memref<1x16x256xbf16, #tpu.memory_space<vmem>>, vector<1x16x256xbf16>
    %54 = vector.shape_cast %53 : vector<1x16x256xbf16> to vector<16x256xbf16>
    %55 = vector.shape_cast %52 : vector<16x256xbf16> to vector<1x16x256xbf16>
    tpu.vector_store %arg8[%c0_25, %c0_26, %c0_27], %55 {strides = array<i32>} : memref<1x16x256xbf16, #tpu.memory_space<vmem>>, vector<1x16x256xbf16>,
    return
  }
  func.func @transform_0(%arg0: i32) -> (i32, i32, i32) {
    %c0_i32 = arith.constant 0 : i32
    %c0_i32_0 = arith.constant 0 : i32
    %c0_i32_1 = arith.constant 0 : i32
    return %arg0, %c0_i32, %c0_i32_0 : i32, i32, i32
  }
  func.func @transform_1(%arg0: i32) -> (i32, i32) {
    %c0_i32 = arith.constant 0 : i32
    %c0_i32_0 = arith.constant 0 : i32
    %c0_i32_1 = arith.constant 0 : i32
    return %c0_i32, %c0_i32_0 : i32, i32
  }
  func.func @transform_2(%arg0: i32) -> (i32, i32) {
    %c0_i32 = arith.constant 0 : i32
    %c0_i32_0 = arith.constant 0 : i32
    %c0_i32_1 = arith.constant 0 : i32
    return %c0_i32, %c0_i32_0 : i32, i32
  }
  func.func @transform_3(%arg0: i32) -> (i32, i32) {
    %c0_i32 = arith.constant 0 : i32
    %c0_i32_0 = arith.constant 0 : i32
    %c0_i32_1 = arith.constant 0 : i32
    return %c0_i32, %c0_i32_0 : i32, i32
  }
  func.func @transform_4(%arg0: i32) -> (i32, i32) {
    %c0_i32 = arith.constant 0 : i32
    %c0_i32_0 = arith.constant 0 : i32
    %c0_i32_1 = arith.constant 0 : i32
    return %c0_i32, %c0_i32_0 : i32, i32
  }
  func.func @transform_5(%arg0: i32) -> (i32, i32) {
    %c0_i32 = arith.constant 0 : i32
    %c0_i32_0 = arith.constant 0 : i32
    %c0_i32_1 = arith.constant 0 : i32
    return %c0_i32, %c0_i32_0 : i32, i32
  }
  func.func @transform_6(%arg0: i32) -> (i32, i32) {
    %c0_i32 = arith.constant 0 : i32
    %c0_i32_0 = arith.constant 0 : i32
    %c0_i32_1 = arith.constant 0 : i32
    return %c0_i32, %c0_i32_0 : i32, i32
  }
  func.func @transform_7(%arg0: i32) -> (i32, i32, i32) {
    %c0_i32 = arith.constant 0 : i32
    %c0_i32_0 = arith.constant 0 : i32
    %c0_i32_1 = arith.constant 0 : i32
    return %arg0, %c0_i32, %c0_i32_0 : i32, i32, i32
  }
}

</mosaic_0001>

<llo_original>
// kernel: vis_open_det_forward.4
$region0: #{vis_open_det_forward.4}
  #allocation0 [shape = 'u32[]', space=smem, size = 0x4, offset = 0x4, fixed_abs, tag = 'smem constant byte address 0x4 - core index']
  #allocation1 [shape = 'u32[144,128]{1,0:T(1,128)}', space=vmem, size = 0x12000, scoped, tag = 'internal scratch']
  %s0 = inlined_call_operand.vmem [shape: bf16[2,256,32], index: 0, kind: input, shape index: {}]
  %s1 = inlined_call_operand.vmem [shape: bf16[32,256], index: 1, kind: input, shape index: {}]
  %s2 = inlined_call_operand.vmem [shape: f32[1,256], index: 2, kind: input, shape index: {}]
  %s3 = inlined_call_operand.vmem [shape: f32[1,256], index: 3, kind: input, shape index: {}]
  %s4 = inlined_call_operand.vmem [shape: f32[1,256], index: 4, kind: input, shape index: {}]
  %s5 = inlined_call_operand.vmem [shape: f32[256,32], index: 5, kind: input, shape index: {}]
  %s6 = inlined_call_operand.vmem [shape: f32[32,256], index: 6, kind: input, shape index: {}]
  %s7 = inlined_call_operand.hbm [shape: bf16[2,256,256], index: 7, kind: output, shape index: {}]
  %s8 = sld [smem:[#allocation0]]
  $region61: #{vis_open_det_forward.4} parent=0
    _
  %s10 = ssub.s32 1, %s8
  %s11 = scalar_select 0, %s10, %s8
  $region1: #{vis_open_det_forward.4} parent=0
    #allocation2 [shape = 'u8[262144]{0}', space=vmem, size = 0x40000, scoped, tag = 'output window, operand 0']
    #allocation3 [shape = 's32[2]{0}', space=sflag, size = 0x8, scoped, tag = 'scoped memory for vis_open_det_forward.4']
    %12 = vsyncpa [#allocation3], 0
    %s13 = scalar_lea.sflag [#allocation3], 1
    %14 = vsyncpa %s13, 0
    loop: start=0, step=1, limit=4
    $region2: #{vis_open_det_forward.4} parent=1 // loop_pre_header
      _
    $region3: #{vis_open_det_forward.4} parent=1 // loop_header
      %s16 = sphi 0, %s20
      %p17 = scmp.ge.s32.totalorder %s16, 4
      %s26 = sphi 0, %s28
      %s29 = sphi 0, %s26
      %s30 = sphi 0, %s29
      %s46 = sphi 0, %s30
      %s50 = sphi 0, %s50
      %s52 = sphi 0, %s50
      %s53 = sphi 0, %s52
      %s67 = sphi 0, %s53
      %s71 = sphi 0, %s71
      %s73 = sphi 0, %s71
      %s74 = sphi 0, %s73
      %s88 = sphi 0, %s74
      %s92 = sphi 0, %s92
      %s94 = sphi 0, %s92
      %s95 = sphi 0, %s94
      %s109 = sphi 0, %s95
      %s113 = sphi 0, %s113
      %s115 = sphi 0, %s113
      %s116 = sphi 0, %s115
      %s130 = sphi 0, %s116
      %s134 = sphi 0, %s134
      %s136 = sphi 0, %s134
      %s137 = sphi 0, %s136
      %s151 = sphi 0, %s137
      %s155 = sphi 0, %s155
      %s157 = sphi 0, %s155
      %s158 = sphi 0, %s157
      %s172 = sphi 0, %s158
      %s178 = sphi 0, %s180
      %s181 = sphi 0, %s178
      %s182 = sphi 0, %s181
      %s198 = sphi 0, %s182
    $region4: #{vis_open_det_forward.4} parent=1 // loop_header_branch
      %19 = sbr.rel (%p17) target = $region8
    $region5: #{vis_open_det_forward.4} parent=1 // loop_body
      %s21 = ssub.s32 %s16, 1
      %s22 = ssub.s32 %s16, 2
      %s23 = sadd.s32 %s16, 1
      %s24 = ssub.s32 %s16, %s23
      %p25 = scmp.eq.s32.totalorder %s24, 0
      %s27 = sadd.s32 %s26, 1
      %s28 = scalar_select %p25, %s26, %s27
      %p31 = pneg %p25
      %p32 = scmp.eq.s32.totalorder %s16, 1
      %p33 = por %p31, %p32
      %p34 = scmp.ne.s32.totalorder %s26, %s29
      %p35 = scmp.eq.s32.totalorder %s16, 0
      %p36 = por %p34, %p35
      %p37 = scmp.ne.s32.totalorder %s26, %s29
      %p38 = scmp.eq.s32.totalorder %s21, 1
      %p39 = por %p37, %p38
      %p40 = scmp.ne.s32.totalorder %s29, %s30
      %p41 = scmp.eq.s32.totalorder %s21, 0
      %p42 = por %p40, %p41
      %p43 = scmp.ne.s32.totalorder %s29, %s30
      %p44 = scmp.eq.s32.totalorder %s22, 1
      %p45 = por %p43, %p44
      %p47 = scmp.ne.s32.totalorder %s30, %s46
      %p48 = scmp.eq.s32.totalorder %s22, 0
      %p49 = por %p47, %p48
      %s51 = sadd.s32 %s50, 1
      %p54 = scmp.eq.s32.totalorder %s16, 1
      %p55 = scmp.ne.s32.totalorder %s50, %s52
      %p56 = scmp.eq.s32.totalorder %s16, 0
      %p57 = por %p55, %p56
      %p58 = scmp.ne.s32.totalorder %s50, %s52
      %p59 = scmp.eq.s32.totalorder %s21, 1
      %p60 = por %p58, %p59
      %p61 = scmp.ne.s32.totalorder %s52, %s53
      %p62 = scmp.eq.s32.totalorder %s21, 0
      %p63 = por %p61, %p62
      %p64 = scmp.ne.s32.totalorder %s52, %s53
      %p65 = scmp.eq.s32.totalorder %s22, 1
      %p66 = por %p64, %p65
      %p68 = scmp.ne.s32.totalorder %s53, %s67
      %p69 = scmp.eq.s32.totalorder %s22, 0
      %p70 = por %p68, %p69
      %s72 = sadd.s32 %s71, 1
      %p75 = scmp.eq.s32.totalorder %s16, 1
      %p76 = scmp.ne.s32.totalorder %s71, %s73
      %p77 = scmp.eq.s32.totalorder %s16, 0
      %p78 = por %p76, %p77
      %p79 = scmp.ne.s32.totalorder %s71, %s73
      %p80 = scmp.eq.s32.totalorder %s21, 1
      %p81 = por %p79, %p80
      %p82 = scmp.ne.s32.totalorder %s73, %s74
      %p83 = scmp.eq.s32.totalorder %s21, 0
      %p84 = por %p82, %p83
      %p85 = scmp.ne.s32.totalorder %s73, %s74
      %p86 = scmp.eq.s32.totalorder %s22, 1
      %p87 = por %p85, %p86
      %p89 = scmp.ne.s32.totalorder %s74, %s88
      %p90 = scmp.eq.s32.totalorder %s22, 0
      %p91 = por %p89, %p90
      %s93 = sadd.s32 %s92, 1
      %p96 = scmp.eq.s32.totalorder %s16, 1
      %p97 = scmp.ne.s32.totalorder %s92, %s94
      %p98 = scmp.eq.s32.totalorder %s16, 0
      %p99 = por %p97, %p98
      %p100 = scmp.ne.s32.totalorder %s92, %s94
      %p101 = scmp.eq.s32.totalorder %s21, 1
      %p102 = por %p100, %p101
      %p103 = scmp.ne.s32.totalorder %s94, %s95
      %p104 = scmp.eq.s32.totalorder %s21, 0
      %p105 = por %p103, %p104
      %p106 = scmp.ne.s32.totalorder %s94, %s95
      %p107 = scmp.eq.s32.totalorder %s22, 1
      %p108 = por %p106, %p107
      %p110 = scmp.ne.s32.totalorder %s95, %s109
      %p111 = scmp.eq.s32.totalorder %s22, 0
      %p112 = por %p110, %p111
      %s114 = sadd.s32 %s113, 1
      %p117 = scmp.eq.s32.totalorder %s16, 1
      %p118 = scmp.ne.s32.totalorder %s113, %s115
      %p119 = scmp.eq.s32.totalorder %s16, 0
      %p120 = por %p118, %p119
      %p121 = scmp.ne.s32.totalorder %s113, %s115
      %p122 = scmp.eq.s32.totalorder %s21, 1
      %p123 = por %p121, %p122
      %p124 = scmp.ne.s32.totalorder %s115, %s116
      %p125 = scmp.eq.s32.totalorder %s21, 0
      %p126 = por %p124, %p125
      %p127 = scmp.ne.s32.totalorder %s115, %s116
      %p128 = scmp.eq.s32.totalorder %s22, 1
      %p129 = por %p127, %p128
      %p131 = scmp.ne.s32.totalorder %s116, %s130
      %p132 = scmp.eq.s32.totalorder %s22, 0
      %p133 = por %p131, %p132
      %s135 = sadd.s32 %s134, 1
      %p138 = scmp.eq.s32.totalorder %s16, 1
      %p139 = scmp.ne.s32.totalorder %s134, %s136
      %p140 = scmp.eq.s32.totalorder %s16, 0
      %p141 = por %p139, %p140
      %p142 = scmp.ne.s32.totalorder %s134, %s136
      %p143 = scmp.eq.s32.totalorder %s21, 1
      %p144 = por %p142, %p143
      %p145 = scmp.ne.s32.totalorder %s136, %s137
      %p146 = scmp.eq.s32.totalorder %s21, 0
      %p147 = por %p145, %p146
      %p148 = scmp.ne.s32.totalorder %s136, %s137
      %p149 = scmp.eq.s32.totalorder %s22, 1
      %p150 = por %p148, %p149
      %p152 = scmp.ne.s32.totalorder %s137, %s151
      %p153 = scmp.eq.s32.totalorder %s22, 0
      %p154 = por %p152, %p153
      %s156 = sadd.s32 %s155, 1
      %p159 = scmp.eq.s32.totalorder %s16, 1
      %p160 = scmp.ne.s32.totalorder %s155, %s157
      %p161 = scmp.eq.s32.totalorder %s16, 0
      %p162 = por %p160, %p161
      %p163 = scmp.ne.s32.totalorder %s155, %s157
      %p164 = scmp.eq.s32.totalorder %s21, 1
      %p165 = por %p163, %p164
      %p166 = scmp.ne.s32.totalorder %s157, %s158
      %p167 = scmp.eq.s32.totalorder %s21, 0
      %p168 = por %p166, %p167
      %p169 = scmp.ne.s32.totalorder %s157, %s158
      %p170 = scmp.eq.s32.totalorder %s22, 1
      %p171 = por %p169, %p170
      %p173 = scmp.ne.s32.totalorder %s158, %s172
      %p174 = scmp.eq.s32.totalorder %s22, 0
      %p175 = por %p173, %p174
      %s176 = ssub.s32 %s16, %s23
      %p177 = scmp.eq.s32.totalorder %s176, 0
      %s179 = sadd.s32 %s178, 1
      %s180 = scalar_select %p177, %s178, %s179
      %p183 = pneg %p177
      %p184 = scmp.eq.s32.totalorder %s16, 1
      %p185 = por %p183, %p184
      %p186 = scmp.ne.s32.totalorder %s178, %s181
      %p187 = scmp.eq.s32.totalorder %s16, 0
      %p188 = por %p186, %p187
      %p189 = scmp.ne.s32.totalorder %s178, %s181
      %p190 = scmp.eq.s32.totalorder %s21, 1
      %p191 = por %p189, %p190
      %p192 = scmp.ne.s32.totalorder %s181, %s182
      %p193 = scmp.eq.s32.totalorder %s21, 0
      %p194 = por %p192, %p193
      %p195 = scmp.ne.s32.totalorder %s181, %s182
      %p196 = scmp.eq.s32.totalorder %s22, 1
      %p197 = por %p195, %p196
      %p199 = scmp.ne.s32.totalorder %s182, %s198
      %p200 = scmp.eq.s32.totalorder %s22, 0
      %p201 = por %p199, %p200
      %p202 = scmp.le.s32.totalorder 1, %s16
      %p203 = scmp.lt.s32.totalorder %s16, 3
      %p204 = pnand %p202, %p203
      %p205 = pneg %p204
      // Predicated region
      $region9: #{vis_open_det_forward.4} parent=5 // pred_check
        _
      $region10: #{vis_open_det_forward.4} parent=5 // pred_check_branch
        %207 = sbr.rel (%p204) target = $region12
      $region11: #{vis_open_det_forward.4} parent=5 // pred_region
        %s208 = ssub.s32 %s16, 1
        // Predicated region
        $region13: #{vis_open_det_forward.4} parent=11 // pred_check
          %p209 = pneg %p63
        $region14: #{vis_open_det_forward.4} parent=11 // pred_check_branch
          %211 = sbr.rel (%p209) target = $region16
        $region15: #{vis_open_det_forward.4} parent=11 // pred_region
          _
        $region16: #{vis_open_det_forward.4} parent=11 // pred_fallthru
          _
        // Predicated region
        $region17: #{vis_open_det_forward.4} parent=11 // pred_check
          %p212 = pneg %p84
        $region18: #{vis_open_det_forward.4} parent=11 // pred_check_branch
          %214 = sbr.rel (%p212) target = $region20
        $region19: #{vis_open_det_forward.4} parent=11 // pred_region
          _
        $region20: #{vis_open_det_forward.4} parent=11 // pred_fallthru
          _
        // Predicated region
        $region21: #{vis_open_det_forward.4} parent=11 // pred_check
          %p215 = pneg %p105
        $region22: #{vis_open_det_forward.4} parent=11 // pred_check_branch
          %217 = sbr.rel (%p215) target = $region24
        $region23: #{vis_open_det_forward.4} parent=11 // pred_region
          _
        $region24: #{vis_open_det_forward.4} parent=11 // pred_fallthru
          _
        // Predicated region
        $region25: #{vis_open_det_forward.4} parent=11 // pred_check
          %p218 = pneg %p126
        $region26: #{vis_open_det_forward.4} parent=11 // pred_check_branch
          %220 = sbr.rel (%p218) target = $region28
        $region27: #{vis_open_det_forward.4} parent=11 // pred_region
          _
        $region28: #{vis_open_det_forward.4} parent=11 // pred_fallthru
          _
        // Predicated region
        $region29: #{vis_open_det_forward.4} parent=11 // pred_check
          %p221 = pneg %p147
        $region30: #{vis_open_det_forward.4} parent=11 // pred_check_branch
          %223 = sbr.rel (%p221) target = $region32
        $region31: #{vis_open_det_forward.4} parent=11 // pred_region
          _
        $region32: #{vis_open_det_forward.4} parent=11 // pred_fallthru
          _
        // Predicated region
        $region33: #{vis_open_det_forward.4} parent=11 // pred_check
          %p224 = pneg %p168
        $region34: #{vis_open_det_forward.4} parent=11 // pred_check_branch
          %226 = sbr.rel (%p224) target = $region36
        $region35: #{vis_open_det_forward.4} parent=11 // pred_region
          _
        $region36: #{vis_open_det_forward.4} parent=11 // pred_fallthru
          _
      $region12: #{vis_open_det_forward.4} parent=5 // pred_fallthru
        _
      %p227 = scmp.lt.s32.totalorder %s16, 2
      // Predicated region
      $region37: #{vis_open_det_forward.4} parent=5 // pred_check
        %p228 = pneg %p227
      $region38: #{vis_open_det_forward.4} parent=5 // pred_check_branch
        %230 = sbr.rel (%p228) target = $region40
      $region39: #{vis_open_det_forward.4} parent=5 // pred_region
        // Predicated region
        $region41: #{vis_open_det_forward.4} parent=39 // pred_check
          %p231 = pneg %p36
        $region42: #{vis_open_det_forward.4} parent=39 // pred_check_branch
          %233 = sbr.rel (%p231) target = $region44
        $region43: #{vis_open_det_forward.4} parent=39 // pred_region
          %p234 = scmp.lt.s32.totalorder %s16, 1
          %s235 = scalar_select %p234, %s16, 1
          %s236 = smul.addr %s235, 32
          %s237 = smul.addr %s236, 4
          %s238 = scalar_lea.vmem %s0, %s237
        $region44: #{vis_open_det_forward.4} parent=39 // pred_fallthru
          _
      $region40: #{vis_open_det_forward.4} parent=5 // pred_fallthru
        _
      %p239 = scmp.le.s32.totalorder 1, %s16
      %p240 = scmp.lt.s32.totalorder %s16, 3
      %p241 = pnand %p239, %p240
      %p242 = pneg %p241
      // Predicated region
      $region45: #{vis_open_det_forward.4} parent=5 // pred_check
        _
      $region46: #{vis_open_det_forward.4} parent=5 // pred_check_branch
        %244 = sbr.rel (%p241) target = $region48
      $region47: #{vis_open_det_forward.4} parent=5 // pred_region
        %s245 = ssub.s32 %s16, 1
        %p246 = scmp.lt.s32.totalorder %s21, 1
        %s247 = scalar_select %p246, %s21, 1
        %s248 = smul.addr %s247, 32
        %s249 = smul.addr %s248, 4
        %s250 = scalar_lea.vmem %s0, %s249
        %p251 = pneg %p42
        %p252 = pneg %p39
        %p253 = pneg %p63
        %p254 = pneg %p60
        %p255 = pneg %p84
        %p256 = pneg %p81
        %p257 = pneg %p105
        %p258 = pneg %p102
        %p259 = pneg %p126
        %p260 = pneg %p123
        %p261 = pneg %p147
        %p262 = pneg %p144
        %p263 = pneg %p168
        %p264 = pneg %p165
        %p265 = pneg %p194
        %p266 = pneg %p191
        %s267 = sand.u32 %s181, 1
        %s268 = scalar_lea.sflag [#allocation3], %s267
        %s269 = sand.u32 %s181, 1
        %s270 = smul.addr %s269, 256
        %s271 = scalar_lea.vmem [#allocation2], %s270
        %p272 = scmp.lt.s32.totalorder %s21, 1
        %s273 = scalar_select %p272, %s21, 1
        %s274 = smul.addr %s273, 32
        %s275 = smul.addr %s274, 4
        %s276 = scalar_lea.vmem %s0, %s275
        %v278 = vld [vmem:[%s276] sm:$0xf]
        %v279 = vld [vmem:[%s276 + $0x4] sm:$0xf]
        %v280 = vld [vmem:[%s276 + $0x8] sm:$0xf]
        %v281 = vld [vmem:[%s276 + $0xc] sm:$0xf]
        %v282 = vld [vmem:[%s276 + $0x10] sm:$0xf]
        %v283 = vld [vmem:[%s276 + $0x14] sm:$0xf]
        %v284 = vld [vmem:[%s276 + $0x18] sm:$0xf]
        %v285 = vld [vmem:[%s276 + $0x1c] sm:$0xf]
        %v286 = vld [vmem:[%s276 + $0x20] sm:$0xf]
        %v287 = vld [vmem:[%s276 + $0x24] sm:$0xf]
        %v288 = vld [vmem:[%s276 + $0x28] sm:$0xf]
        %v289 = vld [vmem:[%s276 + $0x2c] sm:$0xf]
        %v290 = vld [vmem:[%s276 + $0x30] sm:$0xf]
        %v291 = vld [vmem:[%s276 + $0x34] sm:$0xf]
        %v292 = vld [vmem:[%s276 + $0x38] sm:$0xf]
        %v293 = vld [vmem:[%s276 + $0x3c] sm:$0xf]
        %v294 = vld [vmem:[%s276 + $0x40] sm:$0xf]
        %v295 = vld [vmem:[%s276 + $0x44] sm:$0xf]
        %v296 = vld [vmem:[%s276 + $0x48] sm:$0xf]
        %v297 = vld [vmem:[%s276 + $0x4c] sm:$0xf]
        %v298 = vld [vmem:[%s276 + $0x50] sm:$0xf]
        %v299 = vld [vmem:[%s276 + $0x54] sm:$0xf]
        %v300 = vld [vmem:[%s276 + $0x58] sm:$0xf]
        %v301 = vld [vmem:[%s276 + $0x5c] sm:$0xf]
        %v302 = vld [vmem:[%s276 + $0x60] sm:$0xf]
        %v303 = vld [vmem:[%s276 + $0x64] sm:$0xf]
        %v304 = vld [vmem:[%s276 + $0x68] sm:$0xf]
        %v305 = vld [vmem:[%s276 + $0x6c] sm:$0xf]
        %v306 = vld [vmem:[%s276 + $0x70] sm:$0xf]
        %v307 = vld [vmem:[%s276 + $0x74] sm:$0xf]
        %v308 = vld [vmem:[%s276 + $0x78] sm:$0xf]
        %v309 = vld [vmem:[%s276 + $0x7c] sm:$0xf]
        %v310 = vld [vmem:[%s1] sm:$0xff]
        %v311 = vld [vmem:[%s1 + $0x8] sm:$0xff]
        %v312 = vld [vmem:[%s1 + $0x10] sm:$0xff]
        %v313 = vld [vmem:[%s1 + $0x18] sm:$0xff]
        %v346 = vunpack.c.l.b16 %v278
        %v347 = vunpack.c.l.b16 %v279
        %v348 = vunpack.c.l.b16 %v280
        %v349 = vunpack.c.l.b16 %v281
        %v350 = vunpack.c.l.b16 %v282
        %v351 = vunpack.c.l.b16 %v283
        %v352 = vunpack.c.l.b16 %v284
        %v353 = vunpack.c.l.b16 %v285
        %v354 = vunpack.c.l.b16 %v286
        %v355 = vunpack.c.l.b16 %v287
        %v356 = vunpack.c.l.b16 %v288
        %v357 = vunpack.c.l.b16 %v289
        %v358 = vunpack.c.l.b16 %v290
        %v359 = vunpack.c.l.b16 %v291
        %v360 = vunpack.c.l.b16 %v292
        %v361 = vunpack.c.l.b16 %v293
        %v362 = vunpack.c.l.b16 %v294
        %v363 = vunpack.c.l.b16 %v295
        %v364 = vunpack.c.l.b16 %v296
        %v365 = vunpack.c.l.b16 %v297
        %v366 = vunpack.c.l.b16 %v298
        %v367 = vunpack.c.l.b16 %v299
        %v368 = vunpack.c.l.b16 %v300
        %v369 = vunpack.c.l.b16 %v301
        %v370 = vunpack.c.l.b16 %v302
        %v371 = vunpack.c.l.b16 %v303
        %v372 = vunpack.c.l.b16 %v304
        %v373 = vunpack.c.l.b16 %v305
        %v374 = vunpack.c.l.b16 %v306
        %v375 = vunpack.c.l.b16 %v307
        %v376 = vunpack.c.l.b16 %v308
        %v377 = vunpack.c.l.b16 %v309
        %v378 = vpack.c.b16 %v347, %v346
        %v379 = vpack.c.b16 %v349, %v348
        %v380 = vpack.c.b16 %v351, %v350
        %v381 = vpack.c.b16 %v353, %v352
        %v382 = vpack.c.b16 %v355, %v354
        %v383 = vpack.c.b16 %v357, %v356
        %v384 = vpack.c.b16 %v359, %v358
        %v385 = vpack.c.b16 %v361, %v360
        %v386 = vpack.c.b16 %v363, %v362
        %v387 = vpack.c.b16 %v365, %v364
        %v388 = vpack.c.b16 %v367, %v366
        %v389 = vpack.c.b16 %v369, %v368
        %v390 = vpack.c.b16 %v371, %v370
        %v391 = vpack.c.b16 %v373, %v372
        %v392 = vpack.c.b16 %v375, %v374
        %v393 = vpack.c.b16 %v377, %v376
        %v398 = vunpack.c.l.b16 %v310
        %v399 = vunpack.c.h.b16 %v310
        %v400 = vunpack.c.l.b16 %v311
        %v401 = vunpack.c.h.b16 %v311
        %v402 = vunpack.c.l.b16 %v312
        %v403 = vunpack.c.h.b16 %v312
        %v404 = vunpack.c.l.b16 %v313
        %v405 = vunpack.c.h.b16 %v313
        %v406 = vpack.c.b16 %v400, %v398
        %v407 = vpack.c.b16 %v401, %v399
        %v408 = vpack.c.b16 %v404, %v402
        %v409 = vpack.c.b16 %v405, %v403
        %vm414 = vcmask 261120
        %v416 = vsel %vm414, %v378, 0
        %v419 = vsel %vm414, %v379, 0
        %v422 = vsel %vm414, %v380, 0
        %v425 = vsel %vm414, %v381, 0
        %v428 = vsel %vm414, %v382, 0
        %v431 = vsel %vm414, %v383, 0
        %v434 = vsel %vm414, %v384, 0
        %v437 = vsel %vm414, %v385, 0
        %v440 = vsel %vm414, %v386, 0
        %v443 = vsel %vm414, %v387, 0
        %v446 = vsel %vm414, %v388, 0
        %v449 = vsel %vm414, %v389, 0
        %v452 = vsel %vm414, %v390, 0
        %v455 = vsel %vm414, %v391, 0
        %v458 = vsel %vm414, %v392, 0
        %v461 = vsel %vm414, %v393, 0
        %463 = vmatprep.subr.bf16.mxu0 %v407
        %464 = vmatpush1.bf16.msra.mxu0 %v406
        %465 = vmatprep.subr.bf16.mxu0 %v409
        %466 = vmatpush1.bf16.msra.mxu0 %v408
        %467 = vmatprep.subr.bf16.mxu0 0
        %468 = vmatpush1.bf16.msra.mxu0 0
        %469 = vmatprep.subr.bf16.mxu0 0
        %470 = vmatpush1.bf16.msra.mxu0 0
        %471 = vmatprep.subr.bf16.mxu0 0
        %472 = vmatpush1.bf16.msra.mxu0 0
        %473 = vmatprep.subr.bf16.mxu0 0
        %474 = vmatpush1.bf16.msra.mxu0 0
        %475 = vmatprep.subr.bf16.mxu0 0
        %476 = vmatpush1.bf16.msra.mxu0 0
        %477 = vmatprep.subr.bf16.mxu0 0
        %478 = vmatpush1.bf16.msra.mxu0 0
        %479 = vmatprep.subr.bf16.mxu0 0
        %480 = vmatpush1.bf16.msra.mxu0 0
        %481 = vmatprep.subr.bf16.mxu0 0
        %482 = vmatpush1.bf16.msra.mxu0 0
        %483 = vmatprep.subr.bf16.mxu0 0
        %484 = vmatpush1.bf16.msra.mxu0 0
        %485 = vmatprep.subr.bf16.mxu0 0
        %486 = vmatpush1.bf16.msra.mxu0 0
        %487 = vmatprep.subr.bf16.mxu0 0
        %488 = vmatpush1.bf16.msra.mxu0 0
        %489 = vmatprep.subr.bf16.mxu0 0
        %490 = vmatpush1.bf16.msra.mxu0 0
        %491 = vmatprep.subr.bf16.mxu0 0
        %492 = vmatpush1.bf16.msra.mxu0 0
        %493 = vmatprep.subr.bf16.mxu0 0
        %494 = vmatpush1.bf16.msra.mxu0 0
        %495 = vmatprep.mubr.bf16.mxu0 0
        %496 = vmatmul.mubr.bf16.gmra.mrb[0].mxu0 %v416
        %v497 = vpop.f32.mrb[0].mxu0
        %v498 = vadd.f32 0.0, %v497
        %v499 = vpop.f32.mrb[0].mxu0
        %v500 = vadd.f32 0.0, %v499
        %v501 = vpop.f32.mrb[0].mxu0
        %v502 = vadd.f32 0.0, %v501
        %v503 = vpop.f32.mrb[0].mxu0
        %v504 = vadd.f32 0.0, %v503
        %505 = vmatprep.mubr.bf16.mxu0 0
        %506 = vmatmul.mubr.bf16.gmra.mrb[0].mxu0 %v419
        %v507 = vpop.f32.mrb[0].mxu0
        %v508 = vadd.f32 0.0, %v507
        %v509 = vpop.f32.mrb[0].mxu0
        %v510 = vadd.f32 0.0, %v509
        %v511 = vpop.f32.mrb[0].mxu0
        %v512 = vadd.f32 0.0, %v511
        %v513 = vpop.f32.mrb[0].mxu0
        %v514 = vadd.f32 0.0, %v513
        %515 = vmatprep.mubr.bf16.mxu0 0
        %516 = vmatmul.mubr.bf16.gmra.mrb[0].mxu0 %v422
        %v517 = vpop.f32.mrb[0].mxu0
        %v518 = vadd.f32 0.0, %v517
        %v519 = vpop.f32.mrb[0].mxu0
        %v520 = vadd.f32 0.0, %v519
        %v521 = vpop.f32.mrb[0].mxu0
        %v522 = vadd.f32 0.0, %v521
        %v523 = vpop.f32.mrb[0].mxu0
        %v524 = vadd.f32 0.0, %v523
        %525 = vmatprep.mubr.bf16.mxu0 0
        %526 = vmatmul.mubr.bf16.gmra.mrb[0].mxu0 %v425
        %v527 = vpop.f32.mrb[0].mxu0
        %v528 = vadd.f32 0.0, %v527
        %v529 = vpop.f32.mrb[0].mxu0
        %v530 = vadd.f32 0.0, %v529
        %v531 = vpop.f32.mrb[0].mxu0
        %v532 = vadd.f32 0.0, %v531
        %v533 = vpop.f32.mrb[0].mxu0
        %v534 = vadd.f32 0.0, %v533
        %535 = vmatprep.mubr.bf16.mxu0 0
        %536 = vmatmul.mubr.bf16.gmra.mrb[0].mxu0 %v428
        %v537 = vpop.f32.mrb[0].mxu0
        %v538 = vadd.f32 0.0, %v537
        %v539 = vpop.f32.mrb[0].mxu0
        %v540 = vadd.f32 0.0, %v539
        %v541 = vpop.f32.mrb[0].mxu0
        %v542 = vadd.f32 0.0, %v541
        %v543 = vpop.f32.mrb[0].mxu0
        %v544 = vadd.f32 0.0, %v543
        %545 = vmatprep.mubr.bf16.mxu0 0
        %546 = vmatmul.mubr.bf16.gmra.mrb[0].mxu0 %v431
        %v547 = vpop.f32.mrb[0].mxu0
        %v548 = vadd.f32 0.0, %v547
        %v549 = vpop.f32.mrb[0].mxu0
        %v550 = vadd.f32 0.0, %v549
        %v551 = vpop.f32.mrb[0].mxu0
        %v552 = vadd.f32 0.0, %v551
        %v553 = vpop.f32.mrb[0].mxu0
        %v554 = vadd.f32 0.0, %v553
        %555 = vmatprep.mubr.bf16.mxu0 0
        %556 = vmatmul.mubr.bf16.gmra.mrb[0].mxu0 %v434
        %v557 = vpop.f32.mrb[0].mxu0
        %v558 = vadd.f32 0.0, %v557
        %v559 = vpop.f32.mrb[0].mxu0
        %v560 = vadd.f32 0.0, %v559
        %v561 = vpop.f32.mrb[0].mxu0
        %v562 = vadd.f32 0.0, %v561
        %v563 = vpop.f32.mrb[0].mxu0
        %v564 = vadd.f32 0.0, %v563
        %565 = vmatprep.mubr.bf16.mxu0 0
        %566 = vmatmul.mubr.bf16.gmra.mrb[0].mxu0 %v437
        %v567 = vpop.f32.mrb[0].mxu0
        %v568 = vadd.f32 0.0, %v567
        %v569 = vpop.f32.mrb[0].mxu0
        %v570 = vadd.f32 0.0, %v569
        %v571 = vpop.f32.mrb[0].mxu0
        %v572 = vadd.f32 0.0, %v571
        %v573 = vpop.f32.mrb[0].mxu0
        %v574 = vadd.f32 0.0, %v573
        %575 = vmatprep.mubr.bf16.mxu0 0
        %576 = vmatmul.mubr.bf16.gmra.mrb[0].mxu0 %v440
        %v577 = vpop.f32.mrb[0].mxu0
        %v578 = vadd.f32 0.0, %v577
        %v579 = vpop.f32.mrb[0].mxu0
        %v580 = vadd.f32 0.0, %v579
        %v581 = vpop.f32.mrb[0].mxu0
        %v582 = vadd.f32 0.0, %v581
        %v583 = vpop.f32.mrb[0].mxu0
        %v584 = vadd.f32 0.0, %v583
        %585 = vmatprep.mubr.bf16.mxu0 0
        %586 = vmatmul.mubr.bf16.gmra.mrb[0].mxu0 %v443
        %v587 = vpop.f32.mrb[0].mxu0
        %v588 = vadd.f32 0.0, %v587
        %v589 = vpop.f32.mrb[0].mxu0
        %v590 = vadd.f32 0.0, %v589
        %v591 = vpop.f32.mrb[0].mxu0
        %v592 = vadd.f32 0.0, %v591
        %v593 = vpop.f32.mrb[0].mxu0
        %v594 = vadd.f32 0.0, %v593
        %595 = vmatprep.mubr.bf16.mxu0 0
        %596 = vmatmul.mubr.bf16.gmra.mrb[0].mxu0 %v446
        %v597 = vpop.f32.mrb[0].mxu0
        %v598 = vadd.f32 0.0, %v597
        %v599 = vpop.f32.mrb[0].mxu0
        %v600 = vadd.f32 0.0, %v599
        %v601 = vpop.f32.mrb[0].mxu0
        %v602 = vadd.f32 0.0, %v601
        %v603 = vpop.f32.mrb[0].mxu0
        %v604 = vadd.f32 0.0, %v603
        %605 = vmatprep.mubr.bf16.mxu0 0
        %606 = vmatmul.mubr.bf16.gmra.mrb[0].mxu0 %v449
        %v607 = vpop.f32.mrb[0].mxu0
        %v608 = vadd.f32 0.0, %v607
        %v609 = vpop.f32.mrb[0].mxu0
        %v610 = vadd.f32 0.0, %v609
        %v611 = vpop.f32.mrb[0].mxu0
        %v612 = vadd.f32 0.0, %v611
        %v613 = vpop.f32.mrb[0].mxu0
        %v614 = vadd.f32 0.0, %v613
        %615 = vmatprep.mubr.bf16.mxu0 0
        %616 = vmatmul.mubr.bf16.gmra.mrb[0].mxu0 %v452
        %v617 = vpop.f32.mrb[0].mxu0
        %v618 = vadd.f32 0.0, %v617
        %v619 = vpop.f32.mrb[0].mxu0
        %v620 = vadd.f32 0.0, %v619
        %v621 = vpop.f32.mrb[0].mxu0
        %v622 = vadd.f32 0.0, %v621
        %v623 = vpop.f32.mrb[0].mxu0
        %v624 = vadd.f32 0.0, %v623
        %625 = vmatprep.mubr.bf16.mxu0 0
        %626 = vmatmul.mubr.bf16.gmra.mrb[0].mxu0 %v455
        %v627 = vpop.f32.mrb[0].mxu0
        %v628 = vadd.f32 0.0, %v627
        %v629 = vpop.f32.mrb[0].mxu0
        %v630 = vadd.f32 0.0, %v629
        %v631 = vpop.f32.mrb[0].mxu0
        %v632 = vadd.f32 0.0, %v631
        %v633 = vpop.f32.mrb[0].mxu0
        %v634 = vadd.f32 0.0, %v633
        %635 = vmatprep.mubr.bf16.mxu0 0
        %636 = vmatmul.mubr.bf16.gmra.mrb[0].mxu0 %v458
        %v637 = vpop.f32.mrb[0].mxu0
        %v638 = vadd.f32 0.0, %v637
        %v639 = vpop.f32.mrb[0].mxu0
        %v640 = vadd.f32 0.0, %v639
        %v641 = vpop.f32.mrb[0].mxu0
        %v642 = vadd.f32 0.0, %v641
        %v643 = vpop.f32.mrb[0].mxu0
        %v644 = vadd.f32 0.0, %v643
        %645 = vmatprep.mubr.bf16.mxu0 0
        %646 = vmatmul.mubr.bf16.gmra.mrb[0].mxu0 %v461
        %v647 = vpop.f32.mrb[0].mxu0
        %v648 = vadd.f32 0.0, %v647
        %v649 = vpop.f32.mrb[0].mxu0
        %v650 = vadd.f32 0.0, %v649
        %v651 = vpop.f32.mrb[0].mxu0
        %v652 = vadd.f32 0.0, %v651
        %v653 = vpop.f32.mrb[0].mxu0
        %v654 = vadd.f32 0.0, %v653
        %655 = vdwg.mxu0
        %v656 = vadd.f32 %v498, %v502
        %v657 = vadd.f32 %v656, %v508
        %v658 = vadd.f32 %v657, %v512
        %v659 = vadd.f32 %v658, %v518
        %v660 = vadd.f32 %v659, %v522
        %v661 = vadd.f32 %v660, %v528
        %v662 = vadd.f32 %v661, %v532
        %v663 = vadd.f32 %v662, %v538
        %v664 = vadd.f32 %v663, %v542
        %v665 = vadd.f32 %v664, %v548
        %v666 = vadd.f32 %v665, %v552
        %v667 = vadd.f32 %v666, %v558
        %v668 = vadd.f32 %v667, %v562
        %v669 = vadd.f32 %v668, %v568
        %v670 = vadd.f32 %v669, %v572
        %v671 = vadd.f32 %v670, %v578
        %v672 = vadd.f32 %v671, %v582
        %v673 = vadd.f32 %v672, %v588
        %v674 = vadd.f32 %v673, %v592
        %v675 = vadd.f32 %v674, %v598
        %v676 = vadd.f32 %v675, %v602
        %v677 = vadd.f32 %v676, %v608
        %v678 = vadd.f32 %v677, %v612
        %v679 = vadd.f32 %v678, %v618
        %v680 = vadd.f32 %v679, %v622
        %v681 = vadd.f32 %v680, %v628
        %v682 = vadd.f32 %v681, %v632
        %v683 = vadd.f32 %v682, %v638
        %v684 = vadd.f32 %v683, %v642
        %v685 = vadd.f32 %v684, %v648
        %v686 = vadd.f32 %v685, %v652
        %v687 = vrot.slane %v686, 4
        %v688 = vadd.f32 %v686, %v687
        %v689 = vrot.slane %v688, 2
        %v690 = vadd.f32 %v688, %v689
        %v691 = vrot.slane %v690, 1
        %v692 = vadd.f32 %v690, %v691
        %v693 = vadd.f32 %v500, %v504
        %v694 = vadd.f32 %v693, %v510
        %v695 = vadd.f32 %v694, %v514
        %v696 = vadd.f32 %v695, %v520
        %v697 = vadd.f32 %v696, %v524
        %v698 = vadd.f32 %v697, %v530
        %v699 = vadd.f32 %v698, %v534
        %v700 = vadd.f32 %v699, %v540
        %v701 = vadd.f32 %v700, %v544
        %v702 = vadd.f32 %v701, %v550
        %v703 = vadd.f32 %v702, %v554
        %v704 = vadd.f32 %v703, %v560
        %v705 = vadd.f32 %v704, %v564
        %v706 = vadd.f32 %v705, %v570
        %v707 = vadd.f32 %v706, %v574
        %v708 = vadd.f32 %v707, %v580
        %v709 = vadd.f32 %v708, %v584
        %v710 = vadd.f32 %v709, %v590
        %v711 = vadd.f32 %v710, %v594
        %v712 = vadd.f32 %v711, %v600
        %v713 = vadd.f32 %v712, %v604
        %v714 = vadd.f32 %v713, %v610
        %v715 = vadd.f32 %v714, %v614
        %v716 = vadd.f32 %v715, %v620
        %v717 = vadd.f32 %v716, %v624
        %v718 = vadd.f32 %v717, %v630
        %v719 = vadd.f32 %v718, %v634
        %v720 = vadd.f32 %v719, %v640
        %v721 = vadd.f32 %v720, %v644
        %v722 = vadd.f32 %v721, %v650
        %v723 = vadd.f32 %v722, %v654
        %v724 = vrot.slane %v723, 4
        %v725 = vadd.f32 %v723, %v724
        %v726 = vrot.slane %v725, 2
        %v727 = vadd.f32 %v725, %v726
        %v728 = vrot.slane %v727, 1
        %v729 = vadd.f32 %v727, %v728
        %v730 = vmul.f32 %v498, %v498
        %v731 = vmul.f32 %v500, %v500
        %v732 = vmul.f32 %v502, %v502
        %v733 = vmul.f32 %v504, %v504
        %v734 = vmul.f32 %v508, %v508
        %v735 = vmul.f32 %v510, %v510
        %v736 = vmul.f32 %v512, %v512
        %v737 = vmul.f32 %v514, %v514
        %v738 = vmul.f32 %v518, %v518
        %v739 = vmul.f32 %v520, %v520
        %v740 = vmul.f32 %v522, %v522
        %v741 = vmul.f32 %v524, %v524
        %v742 = vmul.f32 %v528, %v528
        %v743 = vmul.f32 %v530, %v530
        %v744 = vmul.f32 %v532, %v532
        %v745 = vmul.f32 %v534, %v534
        %v746 = vmul.f32 %v538, %v538
        %v747 = vmul.f32 %v540, %v540
        %v748 = vmul.f32 %v542, %v542
        %v749 = vmul.f32 %v544, %v544
        %v750 = vmul.f32 %v548, %v548
        %v751 = vmul.f32 %v550, %v550
        %v752 = vmul.f32 %v552, %v552
        %v753 = vmul.f32 %v554, %v554
        %v754 = vmul.f32 %v558, %v558
        %v755 = vmul.f32 %v560, %v560
        %v756 = vmul.f32 %v562, %v562
        %v757 = vmul.f32 %v564, %v564
        %v758 = vmul.f32 %v568, %v568
        %v759 = vmul.f32 %v570, %v570
        %v760 = vmul.f32 %v572, %v572
        %v761 = vmul.f32 %v574, %v574
        %v762 = vmul.f32 %v578, %v578
        %v763 = vmul.f32 %v580, %v580
        %v764 = vmul.f32 %v582, %v582
        %v765 = vmul.f32 %v584, %v584
        %v766 = vmul.f32 %v588, %v588
        %v767 = vmul.f32 %v590, %v590
        %v768 = vmul.f32 %v592, %v592
        %v769 = vmul.f32 %v594, %v594
        %v770 = vmul.f32 %v598, %v598
        %v771 = vmul.f32 %v600, %v600
        %v772 = vmul.f32 %v602, %v602
        %v773 = vmul.f32 %v604, %v604
        %v774 = vmul.f32 %v608, %v608
        %v775 = vmul.f32 %v610, %v610
        %v776 = vmul.f32 %v612, %v612
        %v777 = vmul.f32 %v614, %v614
        %v778 = vmul.f32 %v618, %v618
        %v779 = vmul.f32 %v620, %v620
        %v780 = vmul.f32 %v622, %v622
        %v781 = vmul.f32 %v624, %v624
        %v782 = vmul.f32 %v628, %v628
        %v783 = vmul.f32 %v630, %v630
        %v784 = vmul.f32 %v632, %v632
        %v785 = vmul.f32 %v634, %v634
        %v786 = vmul.f32 %v638, %v638
        %v787 = vmul.f32 %v640, %v640
        %v788 = vmul.f32 %v642, %v642
        %v789 = vmul.f32 %v644, %v644
        %v790 = vmul.f32 %v648, %v648
        %v791 = vmul.f32 %v650, %v650
        %v792 = vmul.f32 %v652, %v652
        %v793 = vmul.f32 %v654, %v654
        %v794 = vadd.f32 %v730, %v732
        %v795 = vadd.f32 %v794, %v734
        %v796 = vadd.f32 %v795, %v736
        %v797 = vadd.f32 %v796, %v738
        %v798 = vadd.f32 %v797, %v740
        %v799 = vadd.f32 %v798, %v742
        %v800 = vadd.f32 %v799, %v744
        %v801 = vadd.f32 %v800, %v746
        %v802 = vadd.f32 %v801, %v748
        %v803 = vadd.f32 %v802, %v750
        %v804 = vadd.f32 %v803, %v752
        %v805 = vadd.f32 %v804, %v754
        %v806 = vadd.f32 %v805, %v756
        %v807 = vadd.f32 %v806, %v758
        %v808 = vadd.f32 %v807, %v760
        %v809 = vadd.f32 %v808, %v762
        %v810 = vadd.f32 %v809, %v764
        %v811 = vadd.f32 %v810, %v766
        %v812 = vadd.f32 %v811, %v768
        %v813 = vadd.f32 %v812, %v770
        %v814 = vadd.f32 %v813, %v772
        %v815 = vadd.f32 %v814, %v774
        %v816 = vadd.f32 %v815, %v776
        %v817 = vadd.f32 %v816, %v778
        %v818 = vadd.f32 %v817, %v780
        %v819 = vadd.f32 %v818, %v782
        %v820 = vadd.f32 %v819, %v784
        %v821 = vadd.f32 %v820, %v786
        %v822 = vadd.f32 %v821, %v788
        %v823 = vadd.f32 %v822, %v790
        %v824 = vadd.f32 %v823, %v792
        %v825 = vrot.slane %v824, 4
        %v826 = vadd.f32 %v824, %v825
        %v827 = vrot.slane %v826, 2
        %v828 = vadd.f32 %v826, %v827
        %v829 = vrot.slane %v828, 1
        %v830 = vadd.f32 %v828, %v829
        %v831 = vadd.f32 %v731, %v733
        %v832 = vadd.f32 %v831, %v735
        %v833 = vadd.f32 %v832, %v737
        %v834 = vadd.f32 %v833, %v739
        %v835 = vadd.f32 %v834, %v741
        %v836 = vadd.f32 %v835, %v743
        %v837 = vadd.f32 %v836, %v745
        %v838 = vadd.f32 %v837, %v747
        %v839 = vadd.f32 %v838, %v749
        %v840 = vadd.f32 %v839, %v751
        %v841 = vadd.f32 %v840, %v753
        %v842 = vadd.f32 %v841, %v755
        %v843 = vadd.f32 %v842, %v757
        %v844 = vadd.f32 %v843, %v759
        %v845 = vadd.f32 %v844, %v761
        %v846 = vadd.f32 %v845, %v763
        %v847 = vadd.f32 %v846, %v765
        %v848 = vadd.f32 %v847, %v767
        %v849 = vadd.f32 %v848, %v769
        %v850 = vadd.f32 %v849, %v771
        %v851 = vadd.f32 %v850, %v773
        %v852 = vadd.f32 %v851, %v775
        %v853 = vadd.f32 %v852, %v777
        %v854 = vadd.f32 %v853, %v779
        %v855 = vadd.f32 %v854, %v781
        %v856 = vadd.f32 %v855, %v783
        %v857 = vadd.f32 %v856, %v785
        %v858 = vadd.f32 %v857, %v787
        %v859 = vadd.f32 %v858, %v789
        %v860 = vadd.f32 %v859, %v791
        %v861 = vadd.f32 %v860, %v793
        %v862 = vrot.slane %v861, 4
        %v863 = vadd.f32 %v861, %v862
        %v864 = vrot.slane %v863, 2
        %v865 = vadd.f32 %v863, %v864
        %v866 = vrot.slane %v865, 1
        %v867 = vadd.f32 %v865, %v866
        %v868 = vld [vmem:[%s2] sm:$0x3]
        %v869 = vld [vmem:[%s3] sm:$0x3]
        %v870 = vld [vmem:[%s4] sm:$0x3]
        %v871 = vld [vmem:[%s5] sm:$0xff]
        %v872 = vld [vmem:[%s5 + $0x8] sm:$0xff]
        %v873 = vld [vmem:[%s5 + $0x10] sm:$0xff]
        %v874 = vld [vmem:[%s5 + $0x18] sm:$0xff]
        %v875 = vld [vmem:[%s5 + $0x20] sm:$0xff]
        %v876 = vld [vmem:[%s5 + $0x28] sm:$0xff]
        %v877 = vld [vmem:[%s5 + $0x30] sm:$0xff]
        %v878 = vld [vmem:[%s5 + $0x38] sm:$0xff]
        %v879 = vld [vmem:[%s5 + $0x40] sm:$0xff]
        %v880 = vld [vmem:[%s5 + $0x48] sm:$0xff]
        %v881 = vld [vmem:[%s5 + $0x50] sm:$0xff]
        %v882 = vld [vmem:[%s5 + $0x58] sm:$0xff]
        %v883 = vld [vmem:[%s5 + $0x60] sm:$0xff]
        %v884 = vld [vmem:[%s5 + $0x68] sm:$0xff]
        %v885 = vld [vmem:[%s5 + $0x70] sm:$0xff]
        %v886 = vld [vmem:[%s5 + $0x78] sm:$0xff]
        %v887 = vld [vmem:[%s5 + $0x80] sm:$0xff]
        %v888 = vld [vmem:[%s5 + $0x88] sm:$0xff]
        %v889 = vld [vmem:[%s5 + $0x90] sm:$0xff]
        %v890 = vld [vmem:[%s5 + $0x98] sm:$0xff]
        %v891 = vld [vmem:[%s5 + $0xa0] sm:$0xff]
        %v892 = vld [vmem:[%s5 + $0xa8] sm:$0xff]
        %v893 = vld [vmem:[%s5 + $0xb0] sm:$0xff]
        %v894 = vld [vmem:[%s5 + $0xb8] sm:$0xff]
        %v895 = vld [vmem:[%s5 + $0xc0] sm:$0xff]
        %v896 = vld [vmem:[%s5 + $0xc8] sm:$0xff]
        %v897 = vld [vmem:[%s5 + $0xd0] sm:$0xff]
        %v898 = vld [vmem:[%s5 + $0xd8] sm:$0xff]
        %v899 = vld [vmem:[%s5 + $0xe0] sm:$0xff]
        %v900 = vld [vmem:[%s5 + $0xe8] sm:$0xff]
        %v901 = vld [vmem:[%s5 + $0xf0] sm:$0xff]
        %v902 = vld [vmem:[%s5 + $0xf8] sm:$0xff]
        %v903 = vld [vmem:[%s6] sm:$0xff]
        %v904 = vld [vmem:[%s6 + $0x8] sm:$0xff]
        %v905 = vld [vmem:[%s6 + $0x10] sm:$0xff]
        %v906 = vld [vmem:[%s6 + $0x18] sm:$0xff]
        %v907 = vld [vmem:[%s6 + $0x20] sm:$0xff]
        %v908 = vld [vmem:[%s6 + $0x28] sm:$0xff]
        %v909 = vld [vmem:[%s6 + $0x30] sm:$0xff]
        %v910 = vld [vmem:[%s6 + $0x38] sm:$0xff]
        %v911 = vmul.f32 %v868, 256.0
        %v913 = vlaneseq
        %v914 = vshrl.u32 %v913, 7
        %v915 = vsub.s32 0, %v914
        %v916 = vrot.slane %v911, %v915
        %v917 = vlaneseq
        %v918 = vshrl.u32 %v917, 7
        %v919 = vsub.s32 1, %v918
        %v920 = vrot.slane %v911, %v919
        %v923 = vadd.f32 %v692, %v916
        %v924 = vadd.f32 %v729, %v920
        %v925 = vmul.f32 %v868, 2.0
        %v928 = vcombine.low %v692, %v729
        %v930 = vunpack.c.l.s4 1966171168
        %v931 = vunpack.c.0.s8 %v930
        %v932 = vlaneseq
        %v933 = vshrl.u32 %v932, 7
        %v934 = vsub.s32 %v931, %v933
        %v935 = vrot.slane %v928, %v934
        %v937 = vunpack.c.l.s4 1966171168
        %v938 = vunpack.c.0.s8 %v937
        %v939 = vlaneseq
        %v940 = vshrl.u32 %v939, 7
        %v941 = vsub.s32 %v938, %v940
        %v942 = vrot.slane %v935, %v941
        %v944 = vmul.f32 %v925, %v942
        %v946 = vlaneseq
        %v947 = vshrl.u32 %v946, 7
        %v948 = vsub.s32 0, %v947
        %v949 = vrot.slane %v944, %v948
        %v950 = vlaneseq
        %v951 = vshrl.u32 %v950, 7
        %v952 = vsub.s32 1, %v951
        %v953 = vrot.slane %v944, %v952
        %v956 = vadd.f32 %v830, %v949
        %v957 = vadd.f32 %v867, %v953
        %v958 = vmul.f32 %v868, %v868
        %v959 = vmul.f32 %v958, 256.0
        %v961 = vlaneseq
        %v962 = vshrl.u32 %v961, 7
        %v963 = vsub.s32 0, %v962
        %v964 = vrot.slane %v959, %v963
        %v965 = vlaneseq
        %v966 = vshrl.u32 %v965, 7
        %v967 = vsub.s32 1, %v966
        %v968 = vrot.slane %v959, %v967
        %v971 = vadd.f32 %v956, %v964
        %v972 = vadd.f32 %v957, %v968
        %v975 = vrot.slane %v971, 7
        %v976 = vrot.slane %v972, 7
        %vm979 = vcmask 1040384
        %v980 = vsel %vm979, %v923, %v975
        %v981 = vsel %vm979, %v924, %v976
        %982 = vmatprep.subr.mxu0 0.0
        %983 = vmatpush1.msra.mxu0 %v871
        %984 = vmatprep.subr.mxu0 0.0
        %985 = vmatpush1.msra.mxu0 %v872
        %986 = vmatprep.subr.mxu0 0.0
        %987 = vmatpush1.msra.mxu0 %v873
        %988 = vmatprep.subr.mxu0 0.0
        %989 = vmatpush1.msra.mxu0 %v874
        %990 = vmatprep.subr.mxu0 0.0
        %991 = vmatpush1.msra.mxu0 %v875
        %992 = vmatprep.subr.mxu0 0.0
        %993 = vmatpush1.msra.mxu0 %v876
        %994 = vmatprep.subr.mxu0 0.0
        %995 = vmatpush1.msra.mxu0 %v877
        %996 = vmatprep.subr.mxu0 0.0
        %997 = vmatpush1.msra.mxu0 %v878
        %998 = vmatprep.subr.mxu0 0.0
        %999 = vmatpush1.msra.mxu0 %v879
        %1000 = vmatprep.subr.mxu0 0.0
        %1001 = vmatpush1.msra.mxu0 %v880
        %1002 = vmatprep.subr.mxu0 0.0
        %1003 = vmatpush1.msra.mxu0 %v881
        %1004 = vmatprep.subr.mxu0 0.0
        %1005 = vmatpush1.msra.mxu0 %v882
        %1006 = vmatprep.subr.mxu0 0.0
        %1007 = vmatpush1.msra.mxu0 %v883
        %1008 = vmatprep.subr.mxu0 0.0
        %1009 = vmatpush1.msra.mxu0 %v884
        %1010 = vmatprep.subr.mxu0 0.0
        %1011 = vmatpush1.msra.mxu0 %v885
        %1012 = vmatprep.subr.mxu0 0.0
        %1013 = vmatpush1.msra.mxu0 %v886
        %1014 = vmatprep.subr.mxu0 0.0
        %1015 = vmatpush1.msra.mxu0 %v887
        %1016 = vmatprep.subr.mxu0 0.0
        %1017 = vmatpush1.msra.mxu0 %v888
        %1018 = vmatprep.subr.mxu0 0.0
        %1019 = vmatpush1.msra.mxu0 %v889
        %1020 = vmatprep.subr.mxu0 0.0
        %1021 = vmatpush1.msra.mxu0 %v890
        %1022 = vmatprep.subr.mxu0 0.0
        %1023 = vmatpush1.msra.mxu0 %v891
        %1024 = vmatprep.subr.mxu0 0.0
        %1025 = vmatpush1.msra.mxu0 %v892
        %1026 = vmatprep.subr.mxu0 0.0
        %1027 = vmatpush1.msra.mxu0 %v893
        %1028 = vmatprep.subr.mxu0 0.0
        %1029 = vmatpush1.msra.mxu0 %v894
        %1030 = vmatprep.subr.mxu0 0.0
        %1031 = vmatpush1.msra.mxu0 %v895
        %1032 = vmatprep.subr.mxu0 0.0
        %1033 = vmatpush1.msra.mxu0 %v896
        %1034 = vmatprep.subr.mxu0 0.0
        %1035 = vmatpush1.msra.mxu0 %v897
        %1036 = vmatprep.subr.mxu0 0.0
        %1037 = vmatpush1.msra.mxu0 %v898
        %1038 = vmatprep.subr.mxu0 0.0
        %1039 = vmatpush1.msra.mxu0 %v899
        %1040 = vmatprep.subr.mxu0 0.0
        %1041 = vmatpush1.msra.mxu0 %v900
        %1042 = vmatprep.subr.mxu0 0.0
        %1043 = vmatpush1.msra.mxu0 %v901
        %1044 = vmatprep.subr.mxu0 0.0
        %1045 = vmatpush1.msra.mxu0 %v902
        %1046 = vmatprep.mubr.f32.mxu0 %v981
        %1047 = vmatmul.mubr.f32.gmra.mrb[0].mxu0 %v980
        %v1048 = vpop.f32.mrb[0].mxu0
        %v1049 = vadd.f32 0.0, %v1048
        %v1050 = vpop.f32.mrb[0].mxu0
        %1051 = vdwg.mxu0
        %v1052 = vmul.f32 %v1049, 0.00048828125
        %v1053 = vmul.f32 %v1052, %v1052
        %v1055 = vrot.slane %v1053, 7
        %v1057 = vsub.f32 %v1052, %v1055
        %v1058 = vmax.f32 %v1057, 0.0
        %v1059 = vadd.f32 %v1058, 1e-05
        %v1060 = vrsqrt.pop %v1059
        %v1061 = vsel %vm979, %v1052, %v1060
        %v1063 = vsel %vm414, %v1061, 0
        %1065 = vmatprep.subr.mxu0 %v904
        %1066 = vmatpush1.msra.mxu0 %v903
        %1067 = vmatprep.subr.mxu0 %v906
        %1068 = vmatpush1.msra.mxu0 %v905
        %1069 = vmatprep.subr.mxu0 %v908
        %1070 = vmatpush1.msra.mxu0 %v907
        %1071 = vmatprep.subr.mxu0 %v910
        %1072 = vmatpush1.msra.mxu0 %v909
        %1073 = vmatprep.subr.mxu0 0.0
        %1074 = vmatpush1.msra.mxu0 0.0
        %1075 = vmatprep.subr.mxu0 0.0
        %1076 = vmatpush1.msra.mxu0 0.0
        %1077 = vmatprep.subr.mxu0 0.0
        %1078 = vmatpush1.msra.mxu0 0.0
        %1079 = vmatprep.subr.mxu0 0.0
        %1080 = vmatpush1.msra.mxu0 0.0
        %1081 = vmatprep.subr.mxu0 0.0
        %1082 = vmatpush1.msra.mxu0 0.0
        %1083 = vmatprep.subr.mxu0 0.0
        %1084 = vmatpush1.msra.mxu0 0.0
        %1085 = vmatprep.subr.mxu0 0.0
        %1086 = vmatpush1.msra.mxu0 0.0
        %1087 = vmatprep.subr.mxu0 0.0
        %1088 = vmatpush1.msra.mxu0 0.0
        %1089 = vmatprep.subr.mxu0 0.0
        %1090 = vmatpush1.msra.mxu0 0.0
        %1091 = vmatprep.subr.mxu0 0.0
        %1092 = vmatpush1.msra.mxu0 0.0
        %1093 = vmatprep.subr.mxu0 0.0
        %1094 = vmatpush1.msra.mxu0 0.0
        %1095 = vmatprep.subr.mxu0 0.0
        %1096 = vmatpush1.msra.mxu0 0.0
        %1097 = vmatprep.subr.mxu0 0.0
        %1098 = vmatpush1.msra.mxu0 0.0
        %1099 = vmatprep.subr.mxu0 0.0
        %1100 = vmatpush1.msra.mxu0 0.0
        %1101 = vmatprep.subr.mxu0 0.0
        %1102 = vmatpush1.msra.mxu0 0.0
        %1103 = vmatprep.subr.mxu0 0.0
        %1104 = vmatpush1.msra.mxu0 0.0
        %1105 = vmatprep.subr.mxu0 0.0
        %1106 = vmatpush1.msra.mxu0 0.0
        %1107 = vmatprep.subr.mxu0 0.0
        %1108 = vmatpush1.msra.mxu0 0.0
        %1109 = vmatprep.subr.mxu0 0.0
        %1110 = vmatpush1.msra.mxu0 0.0
        %1111 = vmatprep.subr.mxu0 0.0
        %1112 = vmatpush1.msra.mxu0 0.0
        %1113 = vmatprep.subr.mxu0 0.0
        %1114 = vmatpush1.msra.mxu0 0.0
        %1115 = vmatprep.subr.mxu0 0.0
        %1116 = vmatpush1.msra.mxu0 0.0
        %1117 = vmatprep.subr.mxu0 0.0
        %1118 = vmatpush1.msra.mxu0 0.0
        %1119 = vmatprep.subr.mxu0 0.0
        %1120 = vmatpush1.msra.mxu0 0.0
        %1121 = vmatprep.subr.mxu0 0.0
        %1122 = vmatpush1.msra.mxu0 0.0
        %1123 = vmatprep.subr.mxu0 0.0
        %1124 = vmatpush1.msra.mxu0 0.0
        %1125 = vmatprep.subr.mxu0 0.0
        %1126 = vmatpush1.msra.mxu0 0.0
        %1127 = vmatprep.subr.mxu0 0.0
        %1128 = vmatpush1.msra.mxu0 0.0
        %1129 = vmatprep.mubr.f32.mxu0 0.0
        %1130 = vmatmul.mubr.f32.gmra.mrb[0].mxu0 %v1063
        %v1131 = vpop.f32.mrb[0].mxu0
        %v1132 = vadd.f32 0.0, %v1131
        %v1133 = vpop.f32.mrb[0].mxu0
        %v1134 = vadd.f32 0.0, %v1133
        %1135 = vdwg.mxu0
        %v1137 = vlaneseq
        %v1138 = vshrl.u32 %v1137, 7
        %v1139 = vsub.s32 0, %v1138
        %v1140 = vrot.slane %v869, %v1139
        %v1141 = vlaneseq
        %v1142 = vshrl.u32 %v1141, 7
        %v1143 = vsub.s32 1, %v1142
        %v1144 = vrot.slane %v869, %v1143
        %v1147 = vmul.f32 %v1132, %v1140
        %v1148 = vmul.f32 %v1134, %v1144
        %v1151 = vcombine.low %v1132, %v1134
        %v1153 = vunpack.c.l.s4 1966171168
        %v1154 = vunpack.c.0.s8 %v1153
        %v1155 = vlaneseq
        %v1156 = vshrl.u32 %v1155, 7
        %v1157 = vsub.s32 %v1154, %v1156
        %v1158 = vrot.slane %v1151, %v1157
        %v1160 = vunpack.c.l.s4 1966171168
        %v1161 = vunpack.c.0.s8 %v1160
        %v1162 = vlaneseq
        %v1163 = vshrl.u32 %v1162, 7
        %v1164 = vsub.s32 %v1161, %v1163
        %v1165 = vrot.slane %v1158, %v1164
        %v1167 = vsub.f32 %v868, %v1165
        %v1170 = vcombine.low %v1147, %v1148
        %v1172 = vunpack.c.l.s4 1966171168
        %v1173 = vunpack.c.0.s8 %v1172
        %v1174 = vlaneseq
        %v1175 = vshrl.u32 %v1174, 7
        %v1176 = vsub.s32 %v1173, %v1175
        %v1177 = vrot.slane %v1170, %v1176
        %v1178 = vcombine.high %v1177, %v1177
        %v1180 = vunpack.c.l.s4 1966171168
        %v1181 = vunpack.c.0.s8 %v1180
        %v1182 = vlaneseq
        %v1183 = vshrl.u32 %v1182, 7
        %v1184 = vsub.s32 %v1181, %v1183
        %v1185 = vrot.slane %v1178, %v1184
        %v1187 = vmul.f32 %v1167, %v1185
        %v1188 = vadd.f32 %v870, %v1187
        %v1189 = vlaneseq
        %v1190 = vshrl.u32 %v1189, 7
        %v1191 = vsub.s32 1, %v1190
        %v1192 = vrot.slane %v1147, %v1191
        %v1193 = vlaneseq
        %v1194 = vshrl.u32 %v1193, 7
        %v1195 = vsub.s32 1, %v1194
        %v1196 = vrot.slane %v1148, %v1195
        %v1197 = vmul.f32 %v498, %v1192
        %v1198 = vmul.f32 %v500, %v1196
        %v1199 = vmul.f32 %v502, %v1192
        %v1200 = vmul.f32 %v504, %v1196
        %v1201 = vmul.f32 %v508, %v1192
        %v1202 = vmul.f32 %v510, %v1196
        %v1203 = vmul.f32 %v512, %v1192
        %v1204 = vmul.f32 %v514, %v1196
        %v1205 = vmul.f32 %v518, %v1192
        %v1206 = vmul.f32 %v520, %v1196
        %v1207 = vmul.f32 %v522, %v1192
        %v1208 = vmul.f32 %v524, %v1196
        %v1209 = vmul.f32 %v528, %v1192
        %v1210 = vmul.f32 %v530, %v1196
        %v1211 = vmul.f32 %v532, %v1192
        %v1212 = vmul.f32 %v534, %v1196
        %v1213 = vmul.f32 %v538, %v1192
        %v1214 = vmul.f32 %v540, %v1196
        %v1215 = vmul.f32 %v542, %v1192
        %v1216 = vmul.f32 %v544, %v1196
        %v1217 = vmul.f32 %v548, %v1192
        %v1218 = vmul.f32 %v550, %v1196
        %v1219 = vmul.f32 %v552, %v1192
        %v1220 = vmul.f32 %v554, %v1196
        %v1221 = vmul.f32 %v558, %v1192
        %v1222 = vmul.f32 %v560, %v1196
        %v1223 = vmul.f32 %v562, %v1192
        %v1224 = vmul.f32 %v564, %v1196
        %v1225 = vmul.f32 %v568, %v1192
        %v1226 = vmul.f32 %v570, %v1196
        %v1227 = vmul.f32 %v572, %v1192
        %v1228 = vmul.f32 %v574, %v1196
        %v1229 = vmul.f32 %v578, %v1192
        %v1230 = vmul.f32 %v580, %v1196
        %v1231 = vmul.f32 %v582, %v1192
        %v1232 = vmul.f32 %v584, %v1196
        %v1233 = vmul.f32 %v588, %v1192
        %v1234 = vmul.f32 %v590, %v1196
        %v1235 = vmul.f32 %v592, %v1192
        %v1236 = vmul.f32 %v594, %v1196
        %v1237 = vmul.f32 %v598, %v1192
        %v1238 = vmul.f32 %v600, %v1196
        %v1239 = vmul.f32 %v602, %v1192
        %v1240 = vmul.f32 %v604, %v1196
        %v1241 = vmul.f32 %v608, %v1192
        %v1242 = vmul.f32 %v610, %v1196
        %v1243 = vmul.f32 %v612, %v1192
        %v1244 = vmul.f32 %v614, %v1196
        %v1245 = vmul.f32 %v618, %v1192
        %v1246 = vmul.f32 %v620, %v1196
        %v1247 = vmul.f32 %v622, %v1192
        %v1248 = vmul.f32 %v624, %v1196
        %v1249 = vmul.f32 %v628, %v1192
        %v1250 = vmul.f32 %v630, %v1196
        %v1251 = vmul.f32 %v632, %v1192
        %v1252 = vmul.f32 %v634, %v1196
        %v1253 = vmul.f32 %v638, %v1192
        %v1254 = vmul.f32 %v640, %v1196
        %v1255 = vmul.f32 %v642, %v1192
        %v1256 = vmul.f32 %v644, %v1196
        %v1257 = vmul.f32 %v648, %v1192
        %v1258 = vmul.f32 %v650, %v1196
        %v1259 = vmul.f32 %v652, %v1192
        %v1260 = vmul.f32 %v654, %v1196
        %v1262 = vlaneseq
        %v1263 = vshrl.u32 %v1262, 7
        %v1264 = vsub.s32 0, %v1263
        %v1265 = vrot.slane %v1188, %v1264
        %v1266 = vlaneseq
        %v1267 = vshrl.u32 %v1266, 7
        %v1268 = vsub.s32 1, %v1267
        %v1269 = vrot.slane %v1188, %v1268
        %v1272 = vadd.f32 %v1197, %v1265
        %v1273 = vadd.f32 %v1198, %v1269
        %v1274 = vadd.f32 %v1199, %v1265
        %v1275 = vadd.f32 %v1200, %v1269
        %v1276 = vadd.f32 %v1201, %v1265
        %v1277 = vadd.f32 %v1202, %v1269
        %v1278 = vadd.f32 %v1203, %v1265
        %v1279 = vadd.f32 %v1204, %v1269
        %v1280 = vadd.f32 %v1205, %v1265
        %v1281 = vadd.f32 %v1206, %v1269
        %v1282 = vadd.f32 %v1207, %v1265
        %v1283 = vadd.f32 %v1208, %v1269
        %v1284 = vadd.f32 %v1209, %v1265
        %v1285 = vadd.f32 %v1210, %v1269
        %v1286 = vadd.f32 %v1211, %v1265
        %v1287 = vadd.f32 %v1212, %v1269
        %v1288 = vadd.f32 %v1213, %v1265
        %v1289 = vadd.f32 %v1214, %v1269
        %v1290 = vadd.f32 %v1215, %v1265
        %v1291 = vadd.f32 %v1216, %v1269
        %v1292 = vadd.f32 %v1217, %v1265
        %v1293 = vadd.f32 %v1218, %v1269
        %v1294 = vadd.f32 %v1219, %v1265
        %v1295 = vadd.f32 %v1220, %v1269
        %v1296 = vadd.f32 %v1221, %v1265
        %v1297 = vadd.f32 %v1222, %v1269
        %v1298 = vadd.f32 %v1223, %v1265
        %v1299 = vadd.f32 %v1224, %v1269
        %v1300 = vadd.f32 %v1225, %v1265
        %v1301 = vadd.f32 %v1226, %v1269
        %v1302 = vadd.f32 %v1227, %v1265
        %v1303 = vadd.f32 %v1228, %v1269
        %v1304 = vadd.f32 %v1229, %v1265
        %v1305 = vadd.f32 %v1230, %v1269
        %v1306 = vadd.f32 %v1231, %v1265
        %v1307 = vadd.f32 %v1232, %v1269
        %v1308 = vadd.f32 %v1233, %v1265
        %v1309 = vadd.f32 %v1234, %v1269
        %v1310 = vadd.f32 %v1235, %v1265
        %v1311 = vadd.f32 %v1236, %v1269
        %v1312 = vadd.f32 %v1237, %v1265
        %v1313 = vadd.f32 %v1238, %v1269
        %v1314 = vadd.f32 %v1239, %v1265
        %v1315 = vadd.f32 %v1240, %v1269
        %v1316 = vadd.f32 %v1241, %v1265
        %v1317 = vadd.f32 %v1242, %v1269
        %v1318 = vadd.f32 %v1243, %v1265
        %v1319 = vadd.f32 %v1244, %v1269
        %v1320 = vadd.f32 %v1245, %v1265
        %v1321 = vadd.f32 %v1246, %v1269
        %v1322 = vadd.f32 %v1247, %v1265
        %v1323 = vadd.f32 %v1248, %v1269
        %v1324 = vadd.f32 %v1249, %v1265
        %v1325 = vadd.f32 %v1250, %v1269
        %v1326 = vadd.f32 %v1251, %v1265
        %v1327 = vadd.f32 %v1252, %v1269
        %v1328 = vadd.f32 %v1253, %v1265
        %v1329 = vadd.f32 %v1254, %v1269
        %v1330 = vadd.f32 %v1255, %v1265
        %v1331 = vadd.f32 %v1256, %v1269
        %v1332 = vadd.f32 %v1257, %v1265
        %v1333 = vadd.f32 %v1258, %v1269
        %v1334 = vadd.f32 %v1259, %v1265
        %v1335 = vadd.f32 %v1260, %v1269
        %v1336 = vpack.c.bf16 %v1274, %v1272
        %v1337 = vpack.c.bf16 %v1275, %v1273
        %v1338 = vpack.c.bf16 %v1278, %v1276
        %v1339 = vpack.c.bf16 %v1279, %v1277
        %v1340 = vpack.c.bf16 %v1282, %v1280
        %v1341 = vpack.c.bf16 %v1283, %v1281
        %v1342 = vpack.c.bf16 %v1286, %v1284
        %v1343 = vpack.c.bf16 %v1287, %v1285
        %v1344 = vpack.c.bf16 %v1290, %v1288
        %v1345 = vpack.c.bf16 %v1291, %v1289
        %v1346 = vpack.c.bf16 %v1294, %v1292
        %v1347 = vpack.c.bf16 %v1295, %v1293
        %v1348 = vpack.c.bf16 %v1298, %v1296
        %v1349 = vpack.c.bf16 %v1299, %v1297
        %v1350 = vpack.c.bf16 %v1302, %v1300
        %v1351 = vpack.c.bf16 %v1303, %v1301
        %v1352 = vpack.c.bf16 %v1306, %v1304
        %v1353 = vpack.c.bf16 %v1307, %v1305
        %v1354 = vpack.c.bf16 %v1310, %v1308
        %v1355 = vpack.c.bf16 %v1311, %v1309
        %v1356 = vpack.c.bf16 %v1314, %v1312
        %v1357 = vpack.c.bf16 %v1315, %v1313
        %v1358 = vpack.c.bf16 %v1318, %v1316
        %v1359 = vpack.c.bf16 %v1319, %v1317
        %v1360 = vpack.c.bf16 %v1322, %v1320
        %v1361 = vpack.c.bf16 %v1323, %v1321
        %v1362 = vpack.c.bf16 %v1326, %v1324
        %v1363 = vpack.c.bf16 %v1327, %v1325
        %v1364 = vpack.c.bf16 %v1330, %v1328
        %v1365 = vpack.c.bf16 %v1331, %v1329
        %v1366 = vpack.c.bf16 %v1334, %v1332
        %v1367 = vpack.c.bf16 %v1335, %v1333
        %v1400 = vunpack.c.l.b16 %v1336
        %v1401 = vunpack.c.l.b16 %v1337
        %v1402 = vunpack.c.h.b16 %v1336
        %v1403 = vunpack.c.h.b16 %v1337
        %v1404 = vunpack.c.l.b16 %v1338
        %v1405 = vunpack.c.l.b16 %v1339
        %v1406 = vunpack.c.h.b16 %v1338
        %v1407 = vunpack.c.h.b16 %v1339
        %v1408 = vunpack.c.l.b16 %v1340
        %v1409 = vunpack.c.l.b16 %v1341
        %v1410 = vunpack.c.h.b16 %v1340
        %v1411 = vunpack.c.h.b16 %v1341
        %v1412 = vunpack.c.l.b16 %v1342
        %v1413 = vunpack.c.l.b16 %v1343
        %v1414 = vunpack.c.h.b16 %v1342
        %v1415 = vunpack.c.h.b16 %v1343
        %v1416 = vunpack.c.l.b16 %v1344
        %v1417 = vunpack.c.l.b16 %v1345
        %v1418 = vunpack.c.h.b16 %v1344
        %v1419 = vunpack.c.h.b16 %v1345
        %v1420 = vunpack.c.l.b16 %v1346
        %v1421 = vunpack.c.l.b16 %v1347
        %v1422 = vunpack.c.h.b16 %v1346
        %v1423 = vunpack.c.h.b16 %v1347
        %v1424 = vunpack.c.l.b16 %v1348
        %v1425 = vunpack.c.l.b16 %v1349
        %v1426 = vunpack.c.h.b16 %v1348
        %v1427 = vunpack.c.h.b16 %v1349
        %v1428 = vunpack.c.l.b16 %v1350
        %v1429 = vunpack.c.l.b16 %v1351
        %v1430 = vunpack.c.h.b16 %v1350
        %v1431 = vunpack.c.h.b16 %v1351
        %v1432 = vunpack.c.l.b16 %v1352
        %v1433 = vunpack.c.l.b16 %v1353
        %v1434 = vunpack.c.h.b16 %v1352
        %v1435 = vunpack.c.h.b16 %v1353
        %v1436 = vunpack.c.l.b16 %v1354
        %v1437 = vunpack.c.l.b16 %v1355
        %v1438 = vunpack.c.h.b16 %v1354
        %v1439 = vunpack.c.h.b16 %v1355
        %v1440 = vunpack.c.l.b16 %v1356
        %v1441 = vunpack.c.l.b16 %v1357
        %v1442 = vunpack.c.h.b16 %v1356
        %v1443 = vunpack.c.h.b16 %v1357
        %v1444 = vunpack.c.l.b16 %v1358
        %v1445 = vunpack.c.l.b16 %v1359
        %v1446 = vunpack.c.h.b16 %v1358
        %v1447 = vunpack.c.h.b16 %v1359
        %v1448 = vunpack.c.l.b16 %v1360
        %v1449 = vunpack.c.l.b16 %v1361
        %v1450 = vunpack.c.h.b16 %v1360
        %v1451 = vunpack.c.h.b16 %v1361
        %v1452 = vunpack.c.l.b16 %v1362
        %v1453 = vunpack.c.l.b16 %v1363
        %v1454 = vunpack.c.h.b16 %v1362
        %v1455 = vunpack.c.h.b16 %v1363
        %v1456 = vunpack.c.l.b16 %v1364
        %v1457 = vunpack.c.l.b16 %v1365
        %v1458 = vunpack.c.h.b16 %v1364
        %v1459 = vunpack.c.h.b16 %v1365
        %v1460 = vunpack.c.l.b16 %v1366
        %v1461 = vunpack.c.l.b16 %v1367
        %v1462 = vunpack.c.h.b16 %v1366
        %v1463 = vunpack.c.h.b16 %v1367
        %v1464 = vpack.c.b16 %v1401, %v1400
        %v1465 = vpack.c.b16 %v1403, %v1402
        %v1466 = vpack.c.b16 %v1405, %v1404
        %v1467 = vpack.c.b16 %v1407, %v1406
        %v1468 = vpack.c.b16 %v1409, %v1408
        %v1469 = vpack.c.b16 %v1411, %v1410
        %v1470 = vpack.c.b16 %v1413, %v1412
        %v1471 = vpack.c.b16 %v1415, %v1414
        %v1472 = vpack.c.b16 %v1417, %v1416
        %v1473 = vpack.c.b16 %v1419, %v1418
        %v1474 = vpack.c.b16 %v1421, %v1420
        %v1475 = vpack.c.b16 %v1423, %v1422
        %v1476 = vpack.c.b16 %v1425, %v1424
        %v1477 = vpack.c.b16 %v1427, %v1426
        %v1478 = vpack.c.b16 %v1429, %v1428
        %v1479 = vpack.c.b16 %v1431, %v1430
        %v1480 = vpack.c.b16 %v1433, %v1432
        %v1481 = vpack.c.b16 %v1435, %v1434
        %v1482 = vpack.c.b16 %v1437, %v1436
        %v1483 = vpack.c.b16 %v1439, %v1438
        %v1484 = vpack.c.b16 %v1441, %v1440
        %v1485 = vpack.c.b16 %v1443, %v1442
        %v1486 = vpack.c.b16 %v1445, %v1444
        %v1487 = vpack.c.b16 %v1447, %v1446
        %v1488 = vpack.c.b16 %v1449, %v1448
        %v1489 = vpack.c.b16 %v1451, %v1450
        %v1490 = vpack.c.b16 %v1453, %v1452
        %v1491 = vpack.c.b16 %v1455, %v1454
        %v1492 = vpack.c.b16 %v1457, %v1456
        %v1493 = vpack.c.b16 %v1459, %v1458
        %v1494 = vpack.c.b16 %v1461, %v1460
        %v1495 = vpack.c.b16 %v1463, %v1462
        %1528 = vst [vmem:[%s271] sm:$0xff] %v1464
        %1529 = vst [vmem:[%s271 + $0x8] sm:$0xff] %v1465
        %1530 = vst [vmem:[%s271 + $0x10] sm:$0xff] %v1466
        %1531 = vst [vmem:[%s271 + $0x18] sm:$0xff] %v1467
        %1532 = vst [vmem:[%s271 + $0x20] sm:$0xff] %v1468
        %1533 = vst [vmem:[%s271 + $0x28] sm:$0xff] %v1469
        %1534 = vst [vmem:[%s271 + $0x30] sm:$0xff] %v1470
        %1535 = vst [vmem:[%s271 + $0x38] sm:$0xff] %v1471
        %1536 = vst [vmem:[%s271 + $0x40] sm:$0xff] %v1472
        %1537 = vst [vmem:[%s271 + $0x48] sm:$0xff] %v1473
        %1538 = vst [vmem:[%s271 + $0x50] sm:$0xff] %v1474
        %1539 = vst [vmem:[%s271 + $0x58] sm:$0xff] %v1475
        %1540 = vst [vmem:[%s271 + $0x60] sm:$0xff] %v1476
        %1541 = vst [vmem:[%s271 + $0x68] sm:$0xff] %v1477
        %1542 = vst [vmem:[%s271 + $0x70] sm:$0xff] %v1478
        %1543 = vst [vmem:[%s271 + $0x78] sm:$0xff] %v1479
        %1544 = vst [vmem:[%s271 + $0x80] sm:$0xff] %v1480
        %1545 = vst [vmem:[%s271 + $0x88] sm:$0xff] %v1481
        %1546 = vst [vmem:[%s271 + $0x90] sm:$0xff] %v1482
        %1547 = vst [vmem:[%s271 + $0x98] sm:$0xff] %v1483
        %1548 = vst [vmem:[%s271 + $0xa0] sm:$0xff] %v1484
        %1549 = vst [vmem:[%s271 + $0xa8] sm:$0xff] %v1485
        %1550 = vst [vmem:[%s271 + $0xb0] sm:$0xff] %v1486
        %1551 = vst [vmem:[%s271 + $0xb8] sm:$0xff] %v1487
        %1552 = vst [vmem:[%s271 + $0xc0] sm:$0xff] %v1488
        %1553 = vst [vmem:[%s271 + $0xc8] sm:$0xff] %v1489
        %1554 = vst [vmem:[%s271 + $0xd0] sm:$0xff] %v1490
        %1555 = vst [vmem:[%s271 + $0xd8] sm:$0xff] %v1491
        %1556 = vst [vmem:[%s271 + $0xe0] sm:$0xff] %v1492
        %1557 = vst [vmem:[%s271 + $0xe8] sm:$0xff] %v1493
        %1558 = vst [vmem:[%s271 + $0xf0] sm:$0xff] %v1494
        %1559 = vst [vmem:[%s271 + $0xf8] sm:$0xff] %v1495
        %s1560 = sand.u32 %s181, 1
        %s1561 = scalar_lea.sflag [#allocation3], %s1560
        %s1562 = sand.u32 %s181, 1
        %s1563 = smul.addr %s1562, 256
        %s1564 = scalar_lea.vmem [#allocation2], %s1563
        // Predicated region
        $region49: #{vis_open_det_forward.4} parent=47 // pred_check
          %p1565 = pneg %p191
        $region50: #{vis_open_det_forward.4} parent=47 // pred_check_branch
          %1567 = sbr.rel (%p1565) target = $region52
        $region51: #{vis_open_det_forward.4} parent=47 // pred_region
          %s1569 = ssub.s32 4096, 4096
          %1570 = vsyncadd %s1561, %s1569
          %s1571 = smul.addr %s21, 64
          %s1572 = smul.addr %s1571, 64
          %s1573 = scalar_lea.hbm %s7, %s1572
          %s1574 = sshll.u32 %s1564, 4
          %s1575 = int_to_ptr.vmem [resolvable:$true] %s1574
          %1580 = dma.vmem_to_hbm [thread:$0]  %s1575, 4096, %s1573, %s1561, 128, 128, 8
        $region52: #{vis_open_det_forward.4} parent=47 // pred_fallthru
          _
      $region48: #{vis_open_det_forward.4} parent=5 // pred_fallthru
        _
      %p1581 = scmp.le.s32.totalorder 2, %s16
      // Predicated region
      $region53: #{vis_open_det_forward.4} parent=5 // pred_check
        %p1582 = pneg %p1581
      $region54: #{vis_open_det_forward.4} parent=5 // pred_check_branch
        %1584 = sbr.rel (%p1582) target = $region56
      $region55: #{vis_open_det_forward.4} parent=5 // pred_region
        %s1585 = ssub.s32 %s16, 2
        // Predicated region
        $region57: #{vis_open_det_forward.4} parent=55 // pred_check
          %p1586 = pneg %p197
        $region58: #{vis_open_det_forward.4} parent=55 // pred_check_branch
          %1588 = sbr.rel (%p1586) target = $region60
        $region59: #{vis_open_det_forward.4} parent=55 // pred_region
          %s1589 = sand.u32 %s182, 1
          %s1590 = scalar_lea.sflag [#allocation3], %s1589
          %s1591 = sand.u32 %s182, 1
          %s1592 = smul.addr %s1591, 256
          %s1593 = scalar_lea.vmem [#allocation2], %s1592
          %1594 = dma.done %s1590, 4096
        $region60: #{vis_open_det_forward.4} parent=55 // pred_fallthru
          _
      $region56: #{vis_open_det_forward.4} parent=5 // pred_fallthru
        _
    $region6: #{vis_open_det_forward.4} parent=1 // loop_footer
      %s20 = sadd.s32 1, %s16
    $region7: #{vis_open_det_forward.4} parent=1 // loop_footer_branch
      %15 = sbr.rel target = $region3
    $region8: #{vis_open_det_forward.4} parent=1 // loop_exit
      _
    %1595 = vsyncpa [#allocation3], 1
    %s1596 = scalar_lea.sflag [#allocation3], 1
    %1597 = vsyncpa %s1596, 1

// kernel: vis_open_det_forward.5
$region0: #{vis_open_det_forward.5}
  #allocation0 [shape = 'u32[]', space=smem, size = 0x4, offset = 0x4, fixed_abs, tag = 'smem constant byte address 0x4 - core index']
  #allocation1 [shape = 'u32[144,128]{1,0:T(1,128)}', space=vmem, size = 0x12000, scoped, tag = 'internal scratch']
  %s0 = inlined_call_operand.vmem [shape: bf16[2,64,64], index: 0, kind: input, shape index: {}]
  %s1 = inlined_call_operand.vmem [shape: bf16[64,256], index: 1, kind: input, shape index: {}]
  %s2 = inlined_call_operand.vmem [shape: f32[1,256], index: 2, kind: input, shape index: {}]
  %s3 = inlined_call_operand.vmem [shape: f32[1,256], index: 3, kind: input, shape index: {}]
  %s4 = inlined_call_operand.vmem [shape: f32[1,256], index: 4, kind: input, shape index: {}]
  %s5 = inlined_call_operand.vmem [shape: f32[256,32], index: 5, kind: input, shape index: {}]
  %s6 = inlined_call_operand.vmem [shape: f32[32,256], index: 6, kind: input, shape index: {}]
  %s7 = inlined_call_operand.hbm [shape: bf16[2,64,256], index: 7, kind: output, shape index: {}]
  %s8 = sld [smem:[#allocation0]]
  $region61: #{vis_open_det_forward.5} parent=0
    _
  %s10 = ssub.s32 1, %s8
  %s11 = scalar_select 0, %s10, %s8
  $region1: #{vis_open_det_forward.5} parent=0
    #allocation2 [shape = 'u8[65536]{0}', space=vmem, size = 0x10000, scoped, tag = 'output window, operand 0']
    #allocation3 [shape = 's32[2]{0}', space=sflag, size = 0x8, scoped, tag = 'scoped memory for vis_open_det_forward.5']
    %12 = vsyncpa [#allocation3], 0
    %s13 = scalar_lea.sflag [#allocation3], 1
    %14 = vsyncpa %s13, 0
    loop: start=0, step=1, limit=4
    $region2: #{vis_open_det_forward.5} parent=1 // loop_pre_header
      _
    $region3: #{vis_open_det_forward.5} parent=1 // loop_header
      %s16 = sphi 0, %s20
      %p17 = scmp.ge.s32.totalorder %s16, 4
      %s26 = sphi 0, %s28
      %s29 = sphi 0, %s26
      %s30 = sphi 0, %s29
      %s46 = sphi 0, %s30
      %s50 = sphi 0, %s50
      %s52 = sphi 0, %s50
      %s53 = sphi 0, %s52
      %s67 = sphi 0, %s53
      %s71 = sphi 0, %s71
      %s73 = sphi 0, %s71
      %s74 = sphi 0, %s73
      %s88 = sphi 0, %s74
      %s92 = sphi 0, %s92
      %s94 = sphi 0, %s92
      %s95 = sphi 0, %s94
      %s109 = sphi 0, %s95
      %s113 = sphi 0, %s113
      %s115 = sphi 0, %s113
      %s116 = sphi 0, %s115
      %s130 = sphi 0, %s116
      %s134 = sphi 0, %s134
      %s136 = sphi 0, %s134
      %s137 = sphi 0, %s136
      %s151 = sphi 0, %s137
      %s155 = sphi 0, %s155
      %s157 = sphi 0, %s155
      %s158 = sphi 0, %s157
      %s172 = sphi 0, %s158
      %s178 = sphi 0, %s180
      %s181 = sphi 0, %s178
      %s182 = sphi 0, %s181
      %s198 = sphi 0, %s182
    $region4: #{vis_open_det_forward.5} parent=1 // loop_header_branch
      %19 = sbr.rel (%p17) target = $region8
    $region5: #{vis_open_det_forward.5} parent=1 // loop_body
      %s21 = ssub.s32 %s16, 1
      %s22 = ssub.s32 %s16, 2
      %s23 = sadd.s32 %s16, 1
      %s24 = ssub.s32 %s16, %s23
      %p25 = scmp.eq.s32.totalorder %s24, 0
      %s27 = sadd.s32 %s26, 1
      %s28 = scalar_select %p25, %s26, %s27
      %p31 = pneg %p25
      %p32 = scmp.eq.s32.totalorder %s16, 1
      %p33 = por %p31, %p32
      %p34 = scmp.ne.s32.totalorder %s26, %s29
      %p35 = scmp.eq.s32.totalorder %s16, 0
      %p36 = por %p34, %p35
      %p37 = scmp.ne.s32.totalorder %s26, %s29
      %p38 = scmp.eq.s32.totalorder %s21, 1
      %p39 = por %p37, %p38
      %p40 = scmp.ne.s32.totalorder %s29, %s30
      %p41 = scmp.eq.s32.totalorder %s21, 0
      %p42 = por %p40, %p41
      %p43 = scmp.ne.s32.totalorder %s29, %s30
      %p44 = scmp.eq.s32.totalorder %s22, 1
      %p45 = por %p43, %p44
      %p47 = scmp.ne.s32.totalorder %s30, %s46
      %p48 = scmp.eq.s32.totalorder %s22, 0
      %p49 = por %p47, %p48
      %s51 = sadd.s32 %s50, 1
      %p54 = scmp.eq.s32.totalorder %s16, 1
      %p55 = scmp.ne.s32.totalorder %s50, %s52
      %p56 = scmp.eq.s32.totalorder %s16, 0
      %p57 = por %p55, %p56
      %p58 = scmp.ne.s32.totalorder %s50, %s52
      %p59 = scmp.eq.s32.totalorder %s21, 1
      %p60 = por %p58, %p59
      %p61 = scmp.ne.s32.totalorder %s52, %s53
      %p62 = scmp.eq.s32.totalorder %s21, 0
      %p63 = por %p61, %p62
      %p64 = scmp.ne.s32.totalorder %s52, %s53
      %p65 = scmp.eq.s32.totalorder %s22, 1
      %p66 = por %p64, %p65
      %p68 = scmp.ne.s32.totalorder %s53, %s67
      %p69 = scmp.eq.s32.totalorder %s22, 0
      %p70 = por %p68, %p69
      %s72 = sadd.s32 %s71, 1
      %p75 = scmp.eq.s32.totalorder %s16, 1
      %p76 = scmp.ne.s32.totalorder %s71, %s73
      %p77 = scmp.eq.s32.totalorder %s16, 0
      %p78 = por %p76, %p77
      %p79 = scmp.ne.s32.totalorder %s71, %s73
      %p80 = scmp.eq.s32.totalorder %s21, 1
      %p81 = por %p79, %p80
      %p82 = scmp.ne.s32.totalorder %s73, %s74
      %p83 = scmp.eq.s32.totalorder %s21, 0
      %p84 = por %p82, %p83
      %p85 = scmp.ne.s32.totalorder %s73, %s74
      %p86 = scmp.eq.s32.totalorder %s22, 1
      %p87 = por %p85, %p86
      %p89 = scmp.ne.s32.totalorder %s74, %s88
      %p90 = scmp.eq.s32.totalorder %s22, 0
      %p91 = por %p89, %p90
      %s93 = sadd.s32 %s92, 1
      %p96 = scmp.eq.s32.totalorder %s16, 1
      %p97 = scmp.ne.s32.totalorder %s92, %s94
      %p98 = scmp.eq.s32.totalorder %s16, 0
      %p99 = por %p97, %p98
      %p100 = scmp.ne.s32.totalorder %s92, %s94
      %p101 = scmp.eq.s32.totalorder %s21, 1
      %p102 = por %p100, %p101
      %p103 = scmp.ne.s32.totalorder %s94, %s95
      %p104 = scmp.eq.s32.totalorder %s21, 0
      %p105 = por %p103, %p104
      %p106 = scmp.ne.s32.totalorder %s94, %s95
      %p107 = scmp.eq.s32.totalorder %s22, 1
      %p108 = por %p106, %p107
      %p110 = scmp.ne.s32.totalorder %s95, %s109
      %p111 = scmp.eq.s32.totalorder %s22, 0
      %p112 = por %p110, %p111
      %s114 = sadd.s32 %s113, 1
      %p117 = scmp.eq.s32.totalorder %s16, 1
      %p118 = scmp.ne.s32.totalorder %s113, %s115
      %p119 = scmp.eq.s32.totalorder %s16, 0
      %p120 = por %p118, %p119
      %p121 = scmp.ne.s32.totalorder %s113, %s115
      %p122 = scmp.eq.s32.totalorder %s21, 1
      %p123 = por %p121, %p122
      %p124 = scmp.ne.s32.totalorder %s115, %s116
      %p125 = scmp.eq.s32.totalorder %s21, 0
      %p126 = por %p124, %p125
      %p127 = scmp.ne.s32.totalorder %s115, %s116
      %p128 = scmp.eq.s32.totalorder %s22, 1
      %p129 = por %p127, %p128
      %p131 = scmp.ne.s32.totalorder %s116, %s130
      %p132 = scmp.eq.s32.totalorder %s22, 0
      %p133 = por %p131, %p132
      %s135 = sadd.s32 %s134, 1
      %p138 = scmp.eq.s32.totalorder %s16, 1
      %p139 = scmp.ne.s32.totalorder %s134, %s136
      %p140 = scmp.eq.s32.totalorder %s16, 0
      %p141 = por %p139, %p140
      %p142 = scmp.ne.s32.totalorder %s134, %s136
      %p143 = scmp.eq.s32.totalorder %s21, 1
      %p144 = por %p142, %p143
      %p145 = scmp.ne.s32.totalorder %s136, %s137
      %p146 = scmp.eq.s32.totalorder %s21, 0
      %p147 = por %p145, %p146
      %p148 = scmp.ne.s32.totalorder %s136, %s137
      %p149 = scmp.eq.s32.totalorder %s22, 1
      %p150 = por %p148, %p149
      %p152 = scmp.ne.s32.totalorder %s137, %s151
      %p153 = scmp.eq.s32.totalorder %s22, 0
      %p154 = por %p152, %p153
      %s156 = sadd.s32 %s155, 1
      %p159 = scmp.eq.s32.totalorder %s16, 1
      %p160 = scmp.ne.s32.totalorder %s155, %s157
      %p161 = scmp.eq.s32.totalorder %s16, 0
      %p162 = por %p160, %p161
      %p163 = scmp.ne.s32.totalorder %s155, %s157
      %p164 = scmp.eq.s32.totalorder %s21, 1
      %p165 = por %p163, %p164
      %p166 = scmp.ne.s32.totalorder %s157, %s158
      %p167 = scmp.eq.s32.totalorder %s21, 0
      %p168 = por %p166, %p167
      %p169 = scmp.ne.s32.totalorder %s157, %s158
      %p170 = scmp.eq.s32.totalorder %s22, 1
      %p171 = por %p169, %p170
      %p173 = scmp.ne.s32.totalorder %s158, %s172
      %p174 = scmp.eq.s32.totalorder %s22, 0
      %p175 = por %p173, %p174
      %s176 = ssub.s32 %s16, %s23
      %p177 = scmp.eq.s32.totalorder %s176, 0
      %s179 = sadd.s32 %s178, 1
      %s180 = scalar_select %p177, %s178, %s179
      %p183 = pneg %p177
      %p184 = scmp.eq.s32.totalorder %s16, 1
      %p185 = por %p183, %p184
      %p186 = scmp.ne.s32.totalorder %s178, %s181
      %p187 = scmp.eq.s32.totalorder %s16, 0
      %p188 = por %p186, %p187
      %p189 = scmp.ne.s32.totalorder %s178, %s181
      %p190 = scmp.eq.s32.totalorder %s21, 1
      %p191 = por %p189, %p190
      %p192 = scmp.ne.s32.totalorder %s181, %s182
      %p193 = scmp.eq.s32.totalorder %s21, 0
      %p194 = por %p192, %p193
      %p195 = scmp.ne.s32.totalorder %s181, %s182
      %p196 = scmp.eq.s32.totalorder %s22, 1
      %p197 = por %p195, %p196
      %p199 = scmp.ne.s32.totalorder %s182, %s198
      %p200 = scmp.eq.s32.totalorder %s22, 0
      %p201 = por %p199, %p200
      %p202 = scmp.le.s32.totalorder 1, %s16
      %p203 = scmp.lt.s32.totalorder %s16, 3
      %p204 = pnand %p202, %p203
      %p205 = pneg %p204
      // Predicated region
      $region9: #{vis_open_det_forward.5} parent=5 // pred_check
        _
      $region10: #{vis_open_det_forward.5} parent=5 // pred_check_branch
        %207 = sbr.rel (%p204) target = $region12
      $region11: #{vis_open_det_forward.5} parent=5 // pred_region
        %s208 = ssub.s32 %s16, 1
        // Predicated region
        $region13: #{vis_open_det_forward.5} parent=11 // pred_check
          %p209 = pneg %p63
        $region14: #{vis_open_det_forward.5} parent=11 // pred_check_branch
          %211 = sbr.rel (%p209) target = $region16
        $region15: #{vis_open_det_forward.5} parent=11 // pred_region
          _
        $region16: #{vis_open_det_forward.5} parent=11 // pred_fallthru
          _
        // Predicated region
        $region17: #{vis_open_det_forward.5} parent=11 // pred_check
          %p212 = pneg %p84
        $region18: #{vis_open_det_forward.5} parent=11 // pred_check_branch
          %214 = sbr.rel (%p212) target = $region20
        $region19: #{vis_open_det_forward.5} parent=11 // pred_region
          _
        $region20: #{vis_open_det_forward.5} parent=11 // pred_fallthru
          _
        // Predicated region
        $region21: #{vis_open_det_forward.5} parent=11 // pred_check
          %p215 = pneg %p105
        $region22: #{vis_open_det_forward.5} parent=11 // pred_check_branch
          %217 = sbr.rel (%p215) target = $region24
        $region23: #{vis_open_det_forward.5} parent=11 // pred_region
          _
        $region24: #{vis_open_det_forward.5} parent=11 // pred_fallthru
          _
        // Predicated region
        $region25: #{vis_open_det_forward.5} parent=11 // pred_check
          %p218 = pneg %p126
        $region26: #{vis_open_det_forward.5} parent=11 // pred_check_branch
          %220 = sbr.rel (%p218) target = $region28
        $region27: #{vis_open_det_forward.5} parent=11 // pred_region
          _
        $region28: #{vis_open_det_forward.5} parent=11 // pred_fallthru
          _
        // Predicated region
        $region29: #{vis_open_det_forward.5} parent=11 // pred_check
          %p221 = pneg %p147
        $region30: #{vis_open_det_forward.5} parent=11 // pred_check_branch
          %223 = sbr.rel (%p221) target = $region32
        $region31: #{vis_open_det_forward.5} parent=11 // pred_region
          _
        $region32: #{vis_open_det_forward.5} parent=11 // pred_fallthru
          _
        // Predicated region
        $region33: #{vis_open_det_forward.5} parent=11 // pred_check
          %p224 = pneg %p168
        $region34: #{vis_open_det_forward.5} parent=11 // pred_check_branch
          %226 = sbr.rel (%p224) target = $region36
        $region35: #{vis_open_det_forward.5} parent=11 // pred_region
          _
        $region36: #{vis_open_det_forward.5} parent=11 // pred_fallthru
          _
      $region12: #{vis_open_det_forward.5} parent=5 // pred_fallthru
        _
      %p227 = scmp.lt.s32.totalorder %s16, 2
      // Predicated region
      $region37: #{vis_open_det_forward.5} parent=5 // pred_check
        %p228 = pneg %p227
      $region38: #{vis_open_det_forward.5} parent=5 // pred_check_branch
        %230 = sbr.rel (%p228) target = $region40
      $region39: #{vis_open_det_forward.5} parent=5 // pred_region
        // Predicated region
        $region41: #{vis_open_det_forward.5} parent=39 // pred_check
          %p231 = pneg %p36
        $region42: #{vis_open_det_forward.5} parent=39 // pred_check_branch
          %233 = sbr.rel (%p231) target = $region44
        $region43: #{vis_open_det_forward.5} parent=39 // pred_region
          %p234 = scmp.lt.s32.totalorder %s16, 1
          %s235 = scalar_select %p234, %s16, 1
          %s236 = smul.addr %s235, 8
          %s237 = smul.addr %s236, 4
          %s238 = scalar_lea.vmem %s0, %s237
        $region44: #{vis_open_det_forward.5} parent=39 // pred_fallthru
          _
      $region40: #{vis_open_det_forward.5} parent=5 // pred_fallthru
        _
      %p239 = scmp.le.s32.totalorder 1, %s16
      %p240 = scmp.lt.s32.totalorder %s16, 3
      %p241 = pnand %p239, %p240
      %p242 = pneg %p241
      // Predicated region
      $region45: #{vis_open_det_forward.5} parent=5 // pred_check
        _
      $region46: #{vis_open_det_forward.5} parent=5 // pred_check_branch
        %244 = sbr.rel (%p241) target = $region48
      $region47: #{vis_open_det_forward.5} parent=5 // pred_region
        %s245 = ssub.s32 %s16, 1
        %p246 = scmp.lt.s32.totalorder %s21, 1
        %s247 = scalar_select %p246, %s21, 1
        %s248 = smul.addr %s247, 8
        %s249 = smul.addr %s248, 4
        %s250 = scalar_lea.vmem %s0, %s249
        %p251 = pneg %p42
        %p252 = pneg %p39
        %p253 = pneg %p63
        %p254 = pneg %p60
        %p255 = pneg %p84
        %p256 = pneg %p81
        %p257 = pneg %p105
        %p258 = pneg %p102
        %p259 = pneg %p126
        %p260 = pneg %p123
        %p261 = pneg %p147
        %p262 = pneg %p144
        %p263 = pneg %p168
        %p264 = pneg %p165
        %p265 = pneg %p194
        %p266 = pneg %p191
        %s267 = sand.u32 %s181, 1
        %s268 = scalar_lea.sflag [#allocation3], %s267
        %s269 = sand.u32 %s181, 1
        %s270 = smul.addr %s269, 64
        %s271 = scalar_lea.vmem [#allocation2], %s270
        %p272 = scmp.lt.s32.totalorder %s21, 1
        %s273 = scalar_select %p272, %s21, 1
        %s274 = smul.addr %s273, 8
        %s275 = smul.addr %s274, 4
        %s276 = scalar_lea.vmem %s0, %s275
        %v278 = vld [vmem:[%s276] sm:$0xf]
        %v279 = vld [vmem:[%s276 + $0x4] sm:$0xf]
        %v280 = vld [vmem:[%s276 + $0x8] sm:$0xf]
        %v281 = vld [vmem:[%s276 + $0xc] sm:$0xf]
        %v282 = vld [vmem:[%s276 + $0x10] sm:$0xf]
        %v283 = vld [vmem:[%s276 + $0x14] sm:$0xf]
        %v284 = vld [vmem:[%s276 + $0x18] sm:$0xf]
        %v285 = vld [vmem:[%s276 + $0x1c] sm:$0xf]
        %v286 = vld [vmem:[%s1] sm:$0xff]
        %v287 = vld [vmem:[%s1 + $0x8] sm:$0xff]
        %v288 = vld [vmem:[%s1 + $0x10] sm:$0xff]
        %v289 = vld [vmem:[%s1 + $0x18] sm:$0xff]
        %v290 = vld [vmem:[%s1 + $0x20] sm:$0xff]
        %v291 = vld [vmem:[%s1 + $0x28] sm:$0xff]
        %v292 = vld [vmem:[%s1 + $0x30] sm:$0xff]
        %v293 = vld [vmem:[%s1 + $0x38] sm:$0xff]
        %v302 = vunpack.c.l.b16 %v278
        %v303 = vunpack.c.l.b16 %v279
        %v304 = vunpack.c.l.b16 %v280
        %v305 = vunpack.c.l.b16 %v281
        %v306 = vunpack.c.l.b16 %v282
        %v307 = vunpack.c.l.b16 %v283
        %v308 = vunpack.c.l.b16 %v284
        %v309 = vunpack.c.l.b16 %v285
        %v310 = vpack.c.b16 %v303, %v302
        %v311 = vpack.c.b16 %v305, %v304
        %v312 = vpack.c.b16 %v307, %v306
        %v313 = vpack.c.b16 %v309, %v308
        %v322 = vunpack.c.l.b16 %v286
        %v323 = vunpack.c.h.b16 %v286
        %v324 = vunpack.c.l.b16 %v287
        %v325 = vunpack.c.h.b16 %v287
        %v326 = vunpack.c.l.b16 %v288
        %v327 = vunpack.c.h.b16 %v288
        %v328 = vunpack.c.l.b16 %v289
        %v329 = vunpack.c.h.b16 %v289
        %v330 = vunpack.c.l.b16 %v290
        %v331 = vunpack.c.h.b16 %v290
        %v332 = vunpack.c.l.b16 %v291
        %v333 = vunpack.c.h.b16 %v291
        %v334 = vunpack.c.l.b16 %v292
        %v335 = vunpack.c.h.b16 %v292
        %v336 = vunpack.c.l.b16 %v293
        %v337 = vunpack.c.h.b16 %v293
        %v338 = vpack.c.b16 %v324, %v322
        %v339 = vpack.c.b16 %v325, %v323
        %v340 = vpack.c.b16 %v328, %v326
        %v341 = vpack.c.b16 %v329, %v327
        %v342 = vpack.c.b16 %v332, %v330
        %v343 = vpack.c.b16 %v333, %v331
        %v344 = vpack.c.b16 %v336, %v334
        %v345 = vpack.c.b16 %v337, %v335
        %vm354 = vcmask 523264
        %v356 = vsel %vm354, %v310, 0
        %v359 = vsel %vm354, %v311, 0
        %v362 = vsel %vm354, %v312, 0
        %v365 = vsel %vm354, %v313, 0
        %367 = vmatprep.subr.bf16.mxu0 %v339
        %368 = vmatpush1.bf16.msra.mxu0 %v338
        %369 = vmatprep.subr.bf16.mxu0 %v341
        %370 = vmatpush1.bf16.msra.mxu0 %v340
        %371 = vmatprep.subr.bf16.mxu0 %v343
        %372 = vmatpush1.bf16.msra.mxu0 %v342
        %373 = vmatprep.subr.bf16.mxu0 %v345
        %374 = vmatpush1.bf16.msra.mxu0 %v344
        %375 = vmatprep.subr.bf16.mxu0 0
        %376 = vmatpush1.bf16.msra.mxu0 0
        %377 = vmatprep.subr.bf16.mxu0 0
        %378 = vmatpush1.bf16.msra.mxu0 0
        %379 = vmatprep.subr.bf16.mxu0 0
        %380 = vmatpush1.bf16.msra.mxu0 0
        %381 = vmatprep.subr.bf16.mxu0 0
        %382 = vmatpush1.bf16.msra.mxu0 0
        %383 = vmatprep.subr.bf16.mxu0 0
        %384 = vmatpush1.bf16.msra.mxu0 0
        %385 = vmatprep.subr.bf16.mxu0 0
        %386 = vmatpush1.bf16.msra.mxu0 0
        %387 = vmatprep.subr.bf16.mxu0 0
        %388 = vmatpush1.bf16.msra.mxu0 0
        %389 = vmatprep.subr.bf16.mxu0 0
        %390 = vmatpush1.bf16.msra.mxu0 0
        %391 = vmatprep.subr.bf16.mxu0 0
        %392 = vmatpush1.bf16.msra.mxu0 0
        %393 = vmatprep.subr.bf16.mxu0 0
        %394 = vmatpush1.bf16.msra.mxu0 0
        %395 = vmatprep.subr.bf16.mxu0 0
        %396 = vmatpush1.bf16.msra.mxu0 0
        %397 = vmatprep.subr.bf16.mxu0 0
        %398 = vmatpush1.bf16.msra.mxu0 0
        %399 = vmatprep.mubr.bf16.mxu0 0
        %400 = vmatmul.mubr.bf16.gmra.mrb[0].mxu0 %v356
        %v401 = vpop.f32.mrb[0].mxu0
        %v402 = vadd.f32 0.0, %v401
        %v403 = vpop.f32.mrb[0].mxu0
        %v404 = vadd.f32 0.0, %v403
        %v405 = vpop.f32.mrb[0].mxu0
        %v406 = vadd.f32 0.0, %v405
        %v407 = vpop.f32.mrb[0].mxu0
        %v408 = vadd.f32 0.0, %v407
        %409 = vmatprep.mubr.bf16.mxu0 0
        %410 = vmatmul.mubr.bf16.gmra.mrb[0].mxu0 %v359
        %v411 = vpop.f32.mrb[0].mxu0
        %v412 = vadd.f32 0.0, %v411
        %v413 = vpop.f32.mrb[0].mxu0
        %v414 = vadd.f32 0.0, %v413
        %v415 = vpop.f32.mrb[0].mxu0
        %v416 = vadd.f32 0.0, %v415
        %v417 = vpop.f32.mrb[0].mxu0
        %v418 = vadd.f32 0.0, %v417
        %419 = vmatprep.mubr.bf16.mxu0 0
        %420 = vmatmul.mubr.bf16.gmra.mrb[0].mxu0 %v362
        %v421 = vpop.f32.mrb[0].mxu0
        %v422 = vadd.f32 0.0, %v421
        %v423 = vpop.f32.mrb[0].mxu0
        %v424 = vadd.f32 0.0, %v423
        %v425 = vpop.f32.mrb[0].mxu0
        %v426 = vadd.f32 0.0, %v425
        %v427 = vpop.f32.mrb[0].mxu0
        %v428 = vadd.f32 0.0, %v427
        %429 = vmatprep.mubr.bf16.mxu0 0
        %430 = vmatmul.mubr.bf16.gmra.mrb[0].mxu0 %v365
        %v431 = vpop.f32.mrb[0].mxu0
        %v432 = vadd.f32 0.0, %v431
        %v433 = vpop.f32.mrb[0].mxu0
        %v434 = vadd.f32 0.0, %v433
        %v435 = vpop.f32.mrb[0].mxu0
        %v436 = vadd.f32 0.0, %v435
        %v437 = vpop.f32.mrb[0].mxu0
        %v438 = vadd.f32 0.0, %v437
        %439 = vdwg.mxu0
        %v440 = vadd.f32 %v402, %v406
        %v441 = vadd.f32 %v440, %v412
        %v442 = vadd.f32 %v441, %v416
        %v443 = vadd.f32 %v442, %v422
        %v444 = vadd.f32 %v443, %v426
        %v445 = vadd.f32 %v444, %v432
        %v446 = vadd.f32 %v445, %v436
        %v447 = vrot.slane %v446, 4
        %v448 = vadd.f32 %v446, %v447
        %v449 = vrot.slane %v448, 2
        %v450 = vadd.f32 %v448, %v449
        %v451 = vrot.slane %v450, 1
        %v452 = vadd.f32 %v450, %v451
        %v453 = vadd.f32 %v404, %v408
        %v454 = vadd.f32 %v453, %v414
        %v455 = vadd.f32 %v454, %v418
        %v456 = vadd.f32 %v455, %v424
        %v457 = vadd.f32 %v456, %v428
        %v458 = vadd.f32 %v457, %v434
        %v459 = vadd.f32 %v458, %v438
        %v460 = vrot.slane %v459, 4
        %v461 = vadd.f32 %v459, %v460
        %v462 = vrot.slane %v461, 2
        %v463 = vadd.f32 %v461, %v462
        %v464 = vrot.slane %v463, 1
        %v465 = vadd.f32 %v463, %v464
        %v466 = vmul.f32 %v402, %v402
        %v467 = vmul.f32 %v404, %v404
        %v468 = vmul.f32 %v406, %v406
        %v469 = vmul.f32 %v408, %v408
        %v470 = vmul.f32 %v412, %v412
        %v471 = vmul.f32 %v414, %v414
        %v472 = vmul.f32 %v416, %v416
        %v473 = vmul.f32 %v418, %v418
        %v474 = vmul.f32 %v422, %v422
        %v475 = vmul.f32 %v424, %v424
        %v476 = vmul.f32 %v426, %v426
        %v477 = vmul.f32 %v428, %v428
        %v478 = vmul.f32 %v432, %v432
        %v479 = vmul.f32 %v434, %v434
        %v480 = vmul.f32 %v436, %v436
        %v481 = vmul.f32 %v438, %v438
        %v482 = vadd.f32 %v466, %v468
        %v483 = vadd.f32 %v482, %v470
        %v484 = vadd.f32 %v483, %v472
        %v485 = vadd.f32 %v484, %v474
        %v486 = vadd.f32 %v485, %v476
        %v487 = vadd.f32 %v486, %v478
        %v488 = vadd.f32 %v487, %v480
        %v489 = vrot.slane %v488, 4
        %v490 = vadd.f32 %v488, %v489
        %v491 = vrot.slane %v490, 2
        %v492 = vadd.f32 %v490, %v491
        %v493 = vrot.slane %v492, 1
        %v494 = vadd.f32 %v492, %v493
        %v495 = vadd.f32 %v467, %v469
        %v496 = vadd.f32 %v495, %v471
        %v497 = vadd.f32 %v496, %v473
        %v498 = vadd.f32 %v497, %v475
        %v499 = vadd.f32 %v498, %v477
        %v500 = vadd.f32 %v499, %v479
        %v501 = vadd.f32 %v500, %v481
        %v502 = vrot.slane %v501, 4
        %v503 = vadd.f32 %v501, %v502
        %v504 = vrot.slane %v503, 2
        %v505 = vadd.f32 %v503, %v504
        %v506 = vrot.slane %v505, 1
        %v507 = vadd.f32 %v505, %v506
        %v508 = vld [vmem:[%s2] sm:$0x3]
        %v509 = vld [vmem:[%s3] sm:$0x3]
        %v510 = vld [vmem:[%s4] sm:$0x3]
        %v511 = vld [vmem:[%s5] sm:$0xff]
        %v512 = vld [vmem:[%s5 + $0x8] sm:$0xff]
        %v513 = vld [vmem:[%s5 + $0x10] sm:$0xff]
        %v514 = vld [vmem:[%s5 + $0x18] sm:$0xff]
        %v515 = vld [vmem:[%s5 + $0x20] sm:$0xff]
        %v516 = vld [vmem:[%s5 + $0x28] sm:$0xff]
        %v517 = vld [vmem:[%s5 + $0x30] sm:$0xff]
        %v518 = vld [vmem:[%s5 + $0x38] sm:$0xff]
        %v519 = vld [vmem:[%s5 + $0x40] sm:$0xff]
        %v520 = vld [vmem:[%s5 + $0x48] sm:$0xff]
        %v521 = vld [vmem:[%s5 + $0x50] sm:$0xff]
        %v522 = vld [vmem:[%s5 + $0x58] sm:$0xff]
        %v523 = vld [vmem:[%s5 + $0x60] sm:$0xff]
        %v524 = vld [vmem:[%s5 + $0x68] sm:$0xff]
        %v525 = vld [vmem:[%s5 + $0x70] sm:$0xff]
        %v526 = vld [vmem:[%s5 + $0x78] sm:$0xff]
        %v527 = vld [vmem:[%s5 + $0x80] sm:$0xff]
        %v528 = vld [vmem:[%s5 + $0x88] sm:$0xff]
        %v529 = vld [vmem:[%s5 + $0x90] sm:$0xff]
        %v530 = vld [vmem:[%s5 + $0x98] sm:$0xff]
        %v531 = vld [vmem:[%s5 + $0xa0] sm:$0xff]
        %v532 = vld [vmem:[%s5 + $0xa8] sm:$0xff]
        %v533 = vld [vmem:[%s5 + $0xb0] sm:$0xff]
        %v534 = vld [vmem:[%s5 + $0xb8] sm:$0xff]
        %v535 = vld [vmem:[%s5 + $0xc0] sm:$0xff]
        %v536 = vld [vmem:[%s5 + $0xc8] sm:$0xff]
        %v537 = vld [vmem:[%s5 + $0xd0] sm:$0xff]
        %v538 = vld [vmem:[%s5 + $0xd8] sm:$0xff]
        %v539 = vld [vmem:[%s5 + $0xe0] sm:$0xff]
        %v540 = vld [vmem:[%s5 + $0xe8] sm:$0xff]
        %v541 = vld [vmem:[%s5 + $0xf0] sm:$0xff]
        %v542 = vld [vmem:[%s5 + $0xf8] sm:$0xff]
        %v543 = vld [vmem:[%s6] sm:$0xff]
        %v544 = vld [vmem:[%s6 + $0x8] sm:$0xff]
        %v545 = vld [vmem:[%s6 + $0x10] sm:$0xff]
        %v546 = vld [vmem:[%s6 + $0x18] sm:$0xff]
        %v547 = vld [vmem:[%s6 + $0x20] sm:$0xff]
        %v548 = vld [vmem:[%s6 + $0x28] sm:$0xff]
        %v549 = vld [vmem:[%s6 + $0x30] sm:$0xff]
        %v550 = vld [vmem:[%s6 + $0x38] sm:$0xff]
        %v551 = vmul.f32 %v508, 64.0
        %v553 = vlaneseq
        %v554 = vshrl.u32 %v553, 7
        %v555 = vsub.s32 0, %v554
        %v556 = vrot.slane %v551, %v555
        %v557 = vlaneseq
        %v558 = vshrl.u32 %v557, 7
        %v559 = vsub.s32 1, %v558
        %v560 = vrot.slane %v551, %v559
        %v563 = vadd.f32 %v452, %v556
        %v564 = vadd.f32 %v465, %v560
        %v565 = vmul.f32 %v508, 2.0
        %v568 = vcombine.low %v452, %v465
        %v570 = vunpack.c.l.s4 1966171168
        %v571 = vunpack.c.0.s8 %v570
        %v572 = vlaneseq
        %v573 = vshrl.u32 %v572, 7
        %v574 = vsub.s32 %v571, %v573
        %v575 = vrot.slane %v568, %v574
        %v577 = vunpack.c.l.s4 1966171168
        %v578 = vunpack.c.0.s8 %v577
        %v579 = vlaneseq
        %v580 = vshrl.u32 %v579, 7
        %v581 = vsub.s32 %v578, %v580
        %v582 = vrot.slane %v575, %v581
        %v584 = vmul.f32 %v565, %v582
        %v586 = vlaneseq
        %v587 = vshrl.u32 %v586, 7
        %v588 = vsub.s32 0, %v587
        %v589 = vrot.slane %v584, %v588
        %v590 = vlaneseq
        %v591 = vshrl.u32 %v590, 7
        %v592 = vsub.s32 1, %v591
        %v593 = vrot.slane %v584, %v592
        %v596 = vadd.f32 %v494, %v589
        %v597 = vadd.f32 %v507, %v593
        %v598 = vmul.f32 %v508, %v508
        %v599 = vmul.f32 %v598, 64.0
        %v601 = vlaneseq
        %v602 = vshrl.u32 %v601, 7
        %v603 = vsub.s32 0, %v602
        %v604 = vrot.slane %v599, %v603
        %v605 = vlaneseq
        %v606 = vshrl.u32 %v605, 7
        %v607 = vsub.s32 1, %v606
        %v608 = vrot.slane %v599, %v607
        %v611 = vadd.f32 %v596, %v604
        %v612 = vadd.f32 %v597, %v608
        %v615 = vrot.slane %v611, 7
        %v616 = vrot.slane %v612, 7
        %vm619 = vcmask 1040384
        %v620 = vsel %vm619, %v563, %v615
        %v621 = vsel %vm619, %v564, %v616
        %622 = vmatprep.subr.mxu0 0.0
        %623 = vmatpush1.msra.mxu0 %v511
        %624 = vmatprep.subr.mxu0 0.0
        %625 = vmatpush1.msra.mxu0 %v512
        %626 = vmatprep.subr.mxu0 0.0
        %627 = vmatpush1.msra.mxu0 %v513
        %628 = vmatprep.subr.mxu0 0.0
        %629 = vmatpush1.msra.mxu0 %v514
        %630 = vmatprep.subr.mxu0 0.0
        %631 = vmatpush1.msra.mxu0 %v515
        %632 = vmatprep.subr.mxu0 0.0
        %633 = vmatpush1.msra.mxu0 %v516
        %634 = vmatprep.subr.mxu0 0.0
        %635 = vmatpush1.msra.mxu0 %v517
        %636 = vmatprep.subr.mxu0 0.0
        %637 = vmatpush1.msra.mxu0 %v518
        %638 = vmatprep.subr.mxu0 0.0
        %639 = vmatpush1.msra.mxu0 %v519
        %640 = vmatprep.subr.mxu0 0.0
        %641 = vmatpush1.msra.mxu0 %v520
        %642 = vmatprep.subr.mxu0 0.0
        %643 = vmatpush1.msra.mxu0 %v521
        %644 = vmatprep.subr.mxu0 0.0
        %645 = vmatpush1.msra.mxu0 %v522
        %646 = vmatprep.subr.mxu0 0.0
        %647 = vmatpush1.msra.mxu0 %v523
        %648 = vmatprep.subr.mxu0 0.0
        %649 = vmatpush1.msra.mxu0 %v524
        %650 = vmatprep.subr.mxu0 0.0
        %651 = vmatpush1.msra.mxu0 %v525
        %652 = vmatprep.subr.mxu0 0.0
        %653 = vmatpush1.msra.mxu0 %v526
        %654 = vmatprep.subr.mxu0 0.0
        %655 = vmatpush1.msra.mxu0 %v527
        %656 = vmatprep.subr.mxu0 0.0
        %657 = vmatpush1.msra.mxu0 %v528
        %658 = vmatprep.subr.mxu0 0.0
        %659 = vmatpush1.msra.mxu0 %v529
        %660 = vmatprep.subr.mxu0 0.0
        %661 = vmatpush1.msra.mxu0 %v530
        %662 = vmatprep.subr.mxu0 0.0
        %663 = vmatpush1.msra.mxu0 %v531
        %664 = vmatprep.subr.mxu0 0.0
        %665 = vmatpush1.msra.mxu0 %v532
        %666 = vmatprep.subr.mxu0 0.0
        %667 = vmatpush1.msra.mxu0 %v533
        %668 = vmatprep.subr.mxu0 0.0
        %669 = vmatpush1.msra.mxu0 %v534
        %670 = vmatprep.subr.mxu0 0.0
        %671 = vmatpush1.msra.mxu0 %v535
        %672 = vmatprep.subr.mxu0 0.0
        %673 = vmatpush1.msra.mxu0 %v536
        %674 = vmatprep.subr.mxu0 0.0
        %675 = vmatpush1.msra.mxu0 %v537
        %676 = vmatprep.subr.mxu0 0.0
        %677 = vmatpush1.msra.mxu0 %v538
        %678 = vmatprep.subr.mxu0 0.0
        %679 = vmatpush1.msra.mxu0 %v539
        %680 = vmatprep.subr.mxu0 0.0
        %681 = vmatpush1.msra.mxu0 %v540
        %682 = vmatprep.subr.mxu0 0.0
        %683 = vmatpush1.msra.mxu0 %v541
        %684 = vmatprep.subr.mxu0 0.0
        %685 = vmatpush1.msra.mxu0 %v542
        %686 = vmatprep.mubr.f32.mxu0 %v621
        %687 = vmatmul.mubr.f32.gmra.mrb[0].mxu0 %v620
        %v688 = vpop.f32.mrb[0].mxu0
        %v689 = vadd.f32 0.0, %v688
        %v690 = vpop.f32.mrb[0].mxu0
        %691 = vdwg.mxu0
        %v692 = vmul.f32 %v689, 0.001953125
        %v693 = vmul.f32 %v692, %v692
        %v695 = vrot.slane %v693, 7
        %v697 = vsub.f32 %v692, %v695
        %v698 = vmax.f32 %v697, 0.0
        %v699 = vadd.f32 %v698, 1e-05
        %v700 = vrsqrt.pop %v699
        %v701 = vsel %vm619, %v692, %v700
        %vm702 = vcmask 261120
        %v704 = vsel %vm702, %v701, 0
        %706 = vmatprep.subr.mxu0 %v544
        %707 = vmatpush1.msra.mxu0 %v543
        %708 = vmatprep.subr.mxu0 %v546
        %709 = vmatpush1.msra.mxu0 %v545
        %710 = vmatprep.subr.mxu0 %v548
        %711 = vmatpush1.msra.mxu0 %v547
        %712 = vmatprep.subr.mxu0 %v550
        %713 = vmatpush1.msra.mxu0 %v549
        %714 = vmatprep.subr.mxu0 0.0
        %715 = vmatpush1.msra.mxu0 0.0
        %716 = vmatprep.subr.mxu0 0.0
        %717 = vmatpush1.msra.mxu0 0.0
        %718 = vmatprep.subr.mxu0 0.0
        %719 = vmatpush1.msra.mxu0 0.0
        %720 = vmatprep.subr.mxu0 0.0
        %721 = vmatpush1.msra.mxu0 0.0
        %722 = vmatprep.subr.mxu0 0.0
        %723 = vmatpush1.msra.mxu0 0.0
        %724 = vmatprep.subr.mxu0 0.0
        %725 = vmatpush1.msra.mxu0 0.0
        %726 = vmatprep.subr.mxu0 0.0
        %727 = vmatpush1.msra.mxu0 0.0
        %728 = vmatprep.subr.mxu0 0.0
        %729 = vmatpush1.msra.mxu0 0.0
        %730 = vmatprep.subr.mxu0 0.0
        %731 = vmatpush1.msra.mxu0 0.0
        %732 = vmatprep.subr.mxu0 0.0
        %733 = vmatpush1.msra.mxu0 0.0
        %734 = vmatprep.subr.mxu0 0.0
        %735 = vmatpush1.msra.mxu0 0.0
        %736 = vmatprep.subr.mxu0 0.0
        %737 = vmatpush1.msra.mxu0 0.0
        %738 = vmatprep.subr.mxu0 0.0
        %739 = vmatpush1.msra.mxu0 0.0
        %740 = vmatprep.subr.mxu0 0.0
        %741 = vmatpush1.msra.mxu0 0.0
        %742 = vmatprep.subr.mxu0 0.0
        %743 = vmatpush1.msra.mxu0 0.0
        %744 = vmatprep.subr.mxu0 0.0
        %745 = vmatpush1.msra.mxu0 0.0
        %746 = vmatprep.subr.mxu0 0.0
        %747 = vmatpush1.msra.mxu0 0.0
        %748 = vmatprep.subr.mxu0 0.0
        %749 = vmatpush1.msra.mxu0 0.0
        %750 = vmatprep.subr.mxu0 0.0
        %751 = vmatpush1.msra.mxu0 0.0
        %752 = vmatprep.subr.mxu0 0.0
        %753 = vmatpush1.msra.mxu0 0.0
        %754 = vmatprep.subr.mxu0 0.0
        %755 = vmatpush1.msra.mxu0 0.0
        %756 = vmatprep.subr.mxu0 0.0
        %757 = vmatpush1.msra.mxu0 0.0
        %758 = vmatprep.subr.mxu0 0.0
        %759 = vmatpush1.msra.mxu0 0.0
        %760 = vmatprep.subr.mxu0 0.0
        %761 = vmatpush1.msra.mxu0 0.0
        %762 = vmatprep.subr.mxu0 0.0
        %763 = vmatpush1.msra.mxu0 0.0
        %764 = vmatprep.subr.mxu0 0.0
        %765 = vmatpush1.msra.mxu0 0.0
        %766 = vmatprep.subr.mxu0 0.0
        %767 = vmatpush1.msra.mxu0 0.0
        %768 = vmatprep.subr.mxu0 0.0
        %769 = vmatpush1.msra.mxu0 0.0
        %770 = vmatprep.mubr.f32.mxu0 0.0
        %771 = vmatmul.mubr.f32.gmra.mrb[0].mxu0 %v704
        %v772 = vpop.f32.mrb[0].mxu0
        %v773 = vadd.f32 0.0, %v772
        %v774 = vpop.f32.mrb[0].mxu0
        %v775 = vadd.f32 0.0, %v774
        %776 = vdwg.mxu0
        %v778 = vlaneseq
        %v779 = vshrl.u32 %v778, 7
        %v780 = vsub.s32 0, %v779
        %v781 = vrot.slane %v509, %v780
        %v782 = vlaneseq
        %v783 = vshrl.u32 %v782, 7
        %v784 = vsub.s32 1, %v783
        %v785 = vrot.slane %v509, %v784
        %v788 = vmul.f32 %v773, %v781
        %v789 = vmul.f32 %v775, %v785
        %v792 = vcombine.low %v773, %v775
        %v794 = vunpack.c.l.s4 1966171168
        %v795 = vunpack.c.0.s8 %v794
        %v796 = vlaneseq
        %v797 = vshrl.u32 %v796, 7
        %v798 = vsub.s32 %v795, %v797
        %v799 = vrot.slane %v792, %v798
        %v801 = vunpack.c.l.s4 1966171168
        %v802 = vunpack.c.0.s8 %v801
        %v803 = vlaneseq
        %v804 = vshrl.u32 %v803, 7
        %v805 = vsub.s32 %v802, %v804
        %v806 = vrot.slane %v799, %v805
        %v808 = vsub.f32 %v508, %v806
        %v811 = vcombine.low %v788, %v789
        %v813 = vunpack.c.l.s4 1966171168
        %v814 = vunpack.c.0.s8 %v813
        %v815 = vlaneseq
        %v816 = vshrl.u32 %v815, 7
        %v817 = vsub.s32 %v814, %v816
        %v818 = vrot.slane %v811, %v817
        %v819 = vcombine.high %v818, %v818
        %v821 = vunpack.c.l.s4 1966171168
        %v822 = vunpack.c.0.s8 %v821
        %v823 = vlaneseq
        %v824 = vshrl.u32 %v823, 7
        %v825 = vsub.s32 %v822, %v824
        %v826 = vrot.slane %v819, %v825
        %v828 = vmul.f32 %v808, %v826
        %v829 = vadd.f32 %v510, %v828
        %v830 = vlaneseq
        %v831 = vshrl.u32 %v830, 7
        %v832 = vsub.s32 1, %v831
        %v833 = vrot.slane %v788, %v832
        %v834 = vlaneseq
        %v835 = vshrl.u32 %v834, 7
        %v836 = vsub.s32 1, %v835
        %v837 = vrot.slane %v789, %v836
        %v838 = vmul.f32 %v402, %v833
        %v839 = vmul.f32 %v404, %v837
        %v840 = vmul.f32 %v406, %v833
        %v841 = vmul.f32 %v408, %v837
        %v842 = vmul.f32 %v412, %v833
        %v843 = vmul.f32 %v414, %v837
        %v844 = vmul.f32 %v416, %v833
        %v845 = vmul.f32 %v418, %v837
        %v846 = vmul.f32 %v422, %v833
        %v847 = vmul.f32 %v424, %v837
        %v848 = vmul.f32 %v426, %v833
        %v849 = vmul.f32 %v428, %v837
        %v850 = vmul.f32 %v432, %v833
        %v851 = vmul.f32 %v434, %v837
        %v852 = vmul.f32 %v436, %v833
        %v853 = vmul.f32 %v438, %v837
        %v855 = vlaneseq
        %v856 = vshrl.u32 %v855, 7
        %v857 = vsub.s32 0, %v856
        %v858 = vrot.slane %v829, %v857
        %v859 = vlaneseq
        %v860 = vshrl.u32 %v859, 7
        %v861 = vsub.s32 1, %v860
        %v862 = vrot.slane %v829, %v861
        %v865 = vadd.f32 %v838, %v858
        %v866 = vadd.f32 %v839, %v862
        %v867 = vadd.f32 %v840, %v858
        %v868 = vadd.f32 %v841, %v862
        %v869 = vadd.f32 %v842, %v858
        %v870 = vadd.f32 %v843, %v862
        %v871 = vadd.f32 %v844, %v858
        %v872 = vadd.f32 %v845, %v862
        %v873 = vadd.f32 %v846, %v858
        %v874 = vadd.f32 %v847, %v862
        %v875 = vadd.f32 %v848, %v858
        %v876 = vadd.f32 %v849, %v862
        %v877 = vadd.f32 %v850, %v858
        %v878 = vadd.f32 %v851, %v862
        %v879 = vadd.f32 %v852, %v858
        %v880 = vadd.f32 %v853, %v862
        %v881 = vpack.c.bf16 %v867, %v865
        %v882 = vpack.c.bf16 %v868, %v866
        %v883 = vpack.c.bf16 %v871, %v869
        %v884 = vpack.c.bf16 %v872, %v870
        %v885 = vpack.c.bf16 %v875, %v873
        %v886 = vpack.c.bf16 %v876, %v874
        %v887 = vpack.c.bf16 %v879, %v877
        %v888 = vpack.c.bf16 %v880, %v878
        %v897 = vunpack.c.l.b16 %v881
        %v898 = vunpack.c.l.b16 %v882
        %v899 = vunpack.c.h.b16 %v881
        %v900 = vunpack.c.h.b16 %v882
        %v901 = vunpack.c.l.b16 %v883
        %v902 = vunpack.c.l.b16 %v884
        %v903 = vunpack.c.h.b16 %v883
        %v904 = vunpack.c.h.b16 %v884
        %v905 = vunpack.c.l.b16 %v885
        %v906 = vunpack.c.l.b16 %v886
        %v907 = vunpack.c.h.b16 %v885
        %v908 = vunpack.c.h.b16 %v886
        %v909 = vunpack.c.l.b16 %v887
        %v910 = vunpack.c.l.b16 %v888
        %v911 = vunpack.c.h.b16 %v887
        %v912 = vunpack.c.h.b16 %v888
        %v913 = vpack.c.b16 %v898, %v897
        %v914 = vpack.c.b16 %v900, %v899
        %v915 = vpack.c.b16 %v902, %v901
        %v916 = vpack.c.b16 %v904, %v903
        %v917 = vpack.c.b16 %v906, %v905
        %v918 = vpack.c.b16 %v908, %v907
        %v919 = vpack.c.b16 %v910, %v909
        %v920 = vpack.c.b16 %v912, %v911
        %929 = vst [vmem:[%s271] sm:$0xff] %v913
        %930 = vst [vmem:[%s271 + $0x8] sm:$0xff] %v914
        %931 = vst [vmem:[%s271 + $0x10] sm:$0xff] %v915
        %932 = vst [vmem:[%s271 + $0x18] sm:$0xff] %v916
        %933 = vst [vmem:[%s271 + $0x20] sm:$0xff] %v917
        %934 = vst [vmem:[%s271 + $0x28] sm:$0xff] %v918
        %935 = vst [vmem:[%s271 + $0x30] sm:$0xff] %v919
        %936 = vst [vmem:[%s271 + $0x38] sm:$0xff] %v920
        %s937 = sand.u32 %s181, 1
        %s938 = scalar_lea.sflag [#allocation3], %s937
        %s939 = sand.u32 %s181, 1
        %s940 = smul.addr %s939, 64
        %s941 = scalar_lea.vmem [#allocation2], %s940
        // Predicated region
        $region49: #{vis_open_det_forward.5} parent=47 // pred_check
          %p942 = pneg %p191
        $region50: #{vis_open_det_forward.5} parent=47 // pred_check_branch
          %944 = sbr.rel (%p942) target = $region52
        $region51: #{vis_open_det_forward.5} parent=47 // pred_region
          %s946 = ssub.s32 1024, 1024
          %947 = vsyncadd %s938, %s946
          %s948 = smul.addr %s21, 16
          %s949 = smul.addr %s948, 64
          %s950 = scalar_lea.hbm %s7, %s949
          %s951 = sshll.u32 %s941, 4
          %s952 = int_to_ptr.vmem [resolvable:$true] %s951
          %957 = dma.vmem_to_hbm [thread:$0]  %s952, 1024, %s950, %s938, 128, 128, 8
        $region52: #{vis_open_det_forward.5} parent=47 // pred_fallthru
          _
      $region48: #{vis_open_det_forward.5} parent=5 // pred_fallthru
        _
      %p958 = scmp.le.s32.totalorder 2, %s16
      // Predicated region
      $region53: #{vis_open_det_forward.5} parent=5 // pred_check
        %p959 = pneg %p958
      $region54: #{vis_open_det_forward.5} parent=5 // pred_check_branch
        %961 = sbr.rel (%p959) target = $region56
      $region55: #{vis_open_det_forward.5} parent=5 // pred_region
        %s962 = ssub.s32 %s16, 2
        // Predicated region
        $region57: #{vis_open_det_forward.5} parent=55 // pred_check
          %p963 = pneg %p197
        $region58: #{vis_open_det_forward.5} parent=55 // pred_check_branch
          %965 = sbr.rel (%p963) target = $region60
        $region59: #{vis_open_det_forward.5} parent=55 // pred_region
          %s966 = sand.u32 %s182, 1
          %s967 = scalar_lea.sflag [#allocation3], %s966
          %s968 = sand.u32 %s182, 1
          %s969 = smul.addr %s968, 64
          %s970 = scalar_lea.vmem [#allocation2], %s969
          %971 = dma.done %s967, 1024
        $region60: #{vis_open_det_forward.5} parent=55 // pred_fallthru
          _
      $region56: #{vis_open_det_forward.5} parent=5 // pred_fallthru
        _
    $region6: #{vis_open_det_forward.5} parent=1 // loop_footer
      %s20 = sadd.s32 1, %s16
    $region7: #{vis_open_det_forward.5} parent=1 // loop_footer_branch
      %15 = sbr.rel target = $region3
    $region8: #{vis_open_det_forward.5} parent=1 // loop_exit
      _
    %972 = vsyncpa [#allocation3], 1
    %s973 = scalar_lea.sflag [#allocation3], 1
    %974 = vsyncpa %s973, 1

// kernel: vis_open_det_forward.6
$region0: #{vis_open_det_forward.6}
  #allocation0 [shape = 'u32[]', space=smem, size = 0x4, offset = 0x4, fixed_abs, tag = 'smem constant byte address 0x4 - core index']
  #allocation1 [shape = 'u32[144,128]{1,0:T(1,128)}', space=vmem, size = 0x12000, scoped, tag = 'internal scratch']
  %s0 = inlined_call_operand.vmem [shape: bf16[2,16,128], index: 0, kind: input, shape index: {}]
  %s1 = inlined_call_operand.vmem [shape: bf16[128,256], index: 1, kind: input, shape index: {}]
  %s2 = inlined_call_operand.vmem [shape: f32[1,256], index: 2, kind: input, shape index: {}]
  %s3 = inlined_call_operand.vmem [shape: f32[1,256], index: 3, kind: input, shape index: {}]
  %s4 = inlined_call_operand.vmem [shape: f32[1,256], index: 4, kind: input, shape index: {}]
  %s5 = inlined_call_operand.vmem [shape: f32[256,32], index: 5, kind: input, shape index: {}]
  %s6 = inlined_call_operand.vmem [shape: f32[32,256], index: 6, kind: input, shape index: {}]
  %s7 = inlined_call_operand.vmem [shape: bf16[2,16,256], index: 7, kind: output, shape index: {}]
  %s8 = sld [smem:[#allocation0]]
  $region61: #{vis_open_det_forward.6} parent=0
    _
  %s10 = ssub.s32 1, %s8
  %s11 = scalar_select 0, %s10, %s8
  loop: start=0, step=1, limit=4
  $region2: #{vis_open_det_forward.6} parent=0 // loop_pre_header
    _
  $region3: #{vis_open_det_forward.6} parent=0 // loop_header
    %s13 = sphi 0, %s17
    %p14 = scmp.ge.s32.totalorder %s13, 4
    %s23 = sphi 0, %s25
    %s26 = sphi 0, %s23
    %s27 = sphi 0, %s26
    %s43 = sphi 0, %s27
    %s47 = sphi 0, %s47
    %s49 = sphi 0, %s47
    %s50 = sphi 0, %s49
    %s64 = sphi 0, %s50
    %s68 = sphi 0, %s68
    %s70 = sphi 0, %s68
    %s71 = sphi 0, %s70
    %s85 = sphi 0, %s71
    %s89 = sphi 0, %s89
    %s91 = sphi 0, %s89
    %s92 = sphi 0, %s91
    %s106 = sphi 0, %s92
    %s110 = sphi 0, %s110
    %s112 = sphi 0, %s110
    %s113 = sphi 0, %s112
    %s127 = sphi 0, %s113
    %s131 = sphi 0, %s131
    %s133 = sphi 0, %s131
    %s134 = sphi 0, %s133
    %s148 = sphi 0, %s134
    %s152 = sphi 0, %s152
    %s154 = sphi 0, %s152
    %s155 = sphi 0, %s154
    %s169 = sphi 0, %s155
    %s175 = sphi 0, %s177
    %s178 = sphi 0, %s175
    %s179 = sphi 0, %s178
    %s195 = sphi 0, %s179
  $region4: #{vis_open_det_forward.6} parent=0 // loop_header_branch
    %16 = sbr.rel (%p14) target = $region8
  $region5: #{vis_open_det_forward.6} parent=0 // loop_body
    %s18 = ssub.s32 %s13, 1
    %s19 = ssub.s32 %s13, 2
    %s20 = sadd.s32 %s13, 1
    %s21 = ssub.s32 %s13, %s20
    %p22 = scmp.eq.s32.totalorder %s21, 0
    %s24 = sadd.s32 %s23, 1
    %s25 = scalar_select %p22, %s23, %s24
    %p28 = pneg %p22
    %p29 = scmp.eq.s32.totalorder %s13, 1
    %p30 = por %p28, %p29
    %p31 = scmp.ne.s32.totalorder %s23, %s26
    %p32 = scmp.eq.s32.totalorder %s13, 0
    %p33 = por %p31, %p32
    %p34 = scmp.ne.s32.totalorder %s23, %s26
    %p35 = scmp.eq.s32.totalorder %s18, 1
    %p36 = por %p34, %p35
    %p37 = scmp.ne.s32.totalorder %s26, %s27
    %p38 = scmp.eq.s32.totalorder %s18, 0
    %p39 = por %p37, %p38
    %p40 = scmp.ne.s32.totalorder %s26, %s27
    %p41 = scmp.eq.s32.totalorder %s19, 1
    %p42 = por %p40, %p41
    %p44 = scmp.ne.s32.totalorder %s27, %s43
    %p45 = scmp.eq.s32.totalorder %s19, 0
    %p46 = por %p44, %p45
    %s48 = sadd.s32 %s47, 1
    %p51 = scmp.eq.s32.totalorder %s13, 1
    %p52 = scmp.ne.s32.totalorder %s47, %s49
    %p53 = scmp.eq.s32.totalorder %s13, 0
    %p54 = por %p52, %p53
    %p55 = scmp.ne.s32.totalorder %s47, %s49
    %p56 = scmp.eq.s32.totalorder %s18, 1
    %p57 = por %p55, %p56
    %p58 = scmp.ne.s32.totalorder %s49, %s50
    %p59 = scmp.eq.s32.totalorder %s18, 0
    %p60 = por %p58, %p59
    %p61 = scmp.ne.s32.totalorder %s49, %s50
    %p62 = scmp.eq.s32.totalorder %s19, 1
    %p63 = por %p61, %p62
    %p65 = scmp.ne.s32.totalorder %s50, %s64
    %p66 = scmp.eq.s32.totalorder %s19, 0
    %p67 = por %p65, %p66
    %s69 = sadd.s32 %s68, 1
    %p72 = scmp.eq.s32.totalorder %s13, 1
    %p73 = scmp.ne.s32.totalorder %s68, %s70
    %p74 = scmp.eq.s32.totalorder %s13, 0
    %p75 = por %p73, %p74
    %p76 = scmp.ne.s32.totalorder %s68, %s70
    %p77 = scmp.eq.s32.totalorder %s18, 1
    %p78 = por %p76, %p77
    %p79 = scmp.ne.s32.totalorder %s70, %s71
    %p80 = scmp.eq.s32.totalorder %s18, 0
    %p81 = por %p79, %p80
    %p82 = scmp.ne.s32.totalorder %s70, %s71
    %p83 = scmp.eq.s32.totalorder %s19, 1
    %p84 = por %p82, %p83
    %p86 = scmp.ne.s32.totalorder %s71, %s85
    %p87 = scmp.eq.s32.totalorder %s19, 0
    %p88 = por %p86, %p87
    %s90 = sadd.s32 %s89, 1
    %p93 = scmp.eq.s32.totalorder %s13, 1
    %p94 = scmp.ne.s32.totalorder %s89, %s91
    %p95 = scmp.eq.s32.totalorder %s13, 0
    %p96 = por %p94, %p95
    %p97 = scmp.ne.s32.totalorder %s89, %s91
    %p98 = scmp.eq.s32.totalorder %s18, 1
    %p99 = por %p97, %p98
    %p100 = scmp.ne.s32.totalorder %s91, %s92
    %p101 = scmp.eq.s32.totalorder %s18, 0
    %p102 = por %p100, %p101
    %p103 = scmp.ne.s32.totalorder %s91, %s92
    %p104 = scmp.eq.s32.totalorder %s19, 1
    %p105 = por %p103, %p104
    %p107 = scmp.ne.s32.totalorder %s92, %s106
    %p108 = scmp.eq.s32.totalorder %s19, 0
    %p109 = por %p107, %p108
    %s111 = sadd.s32 %s110, 1
    %p114 = scmp.eq.s32.totalorder %s13, 1
    %p115 = scmp.ne.s32.totalorder %s110, %s112
    %p116 = scmp.eq.s32.totalorder %s13, 0
    %p117 = por %p115, %p116
    %p118 = scmp.ne.s32.totalorder %s110, %s112
    %p119 = scmp.eq.s32.totalorder %s18, 1
    %p120 = por %p118, %p119
    %p121 = scmp.ne.s32.totalorder %s112, %s113
    %p122 = scmp.eq.s32.totalorder %s18, 0
    %p123 = por %p121, %p122
    %p124 = scmp.ne.s32.totalorder %s112, %s113
    %p125 = scmp.eq.s32.totalorder %s19, 1
    %p126 = por %p124, %p125
    %p128 = scmp.ne.s32.totalorder %s113, %s127
    %p129 = scmp.eq.s32.totalorder %s19, 0
    %p130 = por %p128, %p129
    %s132 = sadd.s32 %s131, 1
    %p135 = scmp.eq.s32.totalorder %s13, 1
    %p136 = scmp.ne.s32.totalorder %s131, %s133
    %p137 = scmp.eq.s32.totalorder %s13, 0
    %p138 = por %p136, %p137
    %p139 = scmp.ne.s32.totalorder %s131, %s133
    %p140 = scmp.eq.s32.totalorder %s18, 1
    %p141 = por %p139, %p140
    %p142 = scmp.ne.s32.totalorder %s133, %s134
    %p143 = scmp.eq.s32.totalorder %s18, 0
    %p144 = por %p142, %p143
    %p145 = scmp.ne.s32.totalorder %s133, %s134
    %p146 = scmp.eq.s32.totalorder %s19, 1
    %p147 = por %p145, %p146
    %p149 = scmp.ne.s32.totalorder %s134, %s148
    %p150 = scmp.eq.s32.totalorder %s19, 0
    %p151 = por %p149, %p150
    %s153 = sadd.s32 %s152, 1
    %p156 = scmp.eq.s32.totalorder %s13, 1
    %p157 = scmp.ne.s32.totalorder %s152, %s154
    %p158 = scmp.eq.s32.totalorder %s13, 0
    %p159 = por %p157, %p158
    %p160 = scmp.ne.s32.totalorder %s152, %s154
    %p161 = scmp.eq.s32.totalorder %s18, 1
    %p162 = por %p160, %p161
    %p163 = scmp.ne.s32.totalorder %s154, %s155
    %p164 = scmp.eq.s32.totalorder %s18, 0
    %p165 = por %p163, %p164
    %p166 = scmp.ne.s32.totalorder %s154, %s155
    %p167 = scmp.eq.s32.totalorder %s19, 1
    %p168 = por %p166, %p167
    %p170 = scmp.ne.s32.totalorder %s155, %s169
    %p171 = scmp.eq.s32.totalorder %s19, 0
    %p172 = por %p170, %p171
    %s173 = ssub.s32 %s13, %s20
    %p174 = scmp.eq.s32.totalorder %s173, 0
    %s176 = sadd.s32 %s175, 1
    %s177 = scalar_select %p174, %s175, %s176
    %p180 = pneg %p174
    %p181 = scmp.eq.s32.totalorder %s13, 1
    %p182 = por %p180, %p181
    %p183 = scmp.ne.s32.totalorder %s175, %s178
    %p184 = scmp.eq.s32.totalorder %s13, 0
    %p185 = por %p183, %p184
    %p186 = scmp.ne.s32.totalorder %s175, %s178
    %p187 = scmp.eq.s32.totalorder %s18, 1
    %p188 = por %p186, %p187
    %p189 = scmp.ne.s32.totalorder %s178, %s179
    %p190 = scmp.eq.s32.totalorder %s18, 0
    %p191 = por %p189, %p190
    %p192 = scmp.ne.s32.totalorder %s178, %s179
    %p193 = scmp.eq.s32.totalorder %s19, 1
    %p194 = por %p192, %p193
    %p196 = scmp.ne.s32.totalorder %s179, %s195
    %p197 = scmp.eq.s32.totalorder %s19, 0
    %p198 = por %p196, %p197
    %p199 = scmp.le.s32.totalorder 1, %s13
    %p200 = scmp.lt.s32.totalorder %s13, 3
    %p201 = pnand %p199, %p200
    %p202 = pneg %p201
    // Predicated region
    $region9: #{vis_open_det_forward.6} parent=5 // pred_check
      _
    $region10: #{vis_open_det_forward.6} parent=5 // pred_check_branch
      %204 = sbr.rel (%p201) target = $region12
    $region11: #{vis_open_det_forward.6} parent=5 // pred_region
      %s205 = ssub.s32 %s13, 1
      // Predicated region
      $region13: #{vis_open_det_forward.6} parent=11 // pred_check
        %p206 = pneg %p60
      $region14: #{vis_open_det_forward.6} parent=11 // pred_check_branch
        %208 = sbr.rel (%p206) target = $region16
      $region15: #{vis_open_det_forward.6} parent=11 // pred_region
        _
      $region16: #{vis_open_det_forward.6} parent=11 // pred_fallthru
        _
      // Predicated region
      $region17: #{vis_open_det_forward.6} parent=11 // pred_check
        %p209 = pneg %p81
      $region18: #{vis_open_det_forward.6} parent=11 // pred_check_branch
        %211 = sbr.rel (%p209) target = $region20
      $region19: #{vis_open_det_forward.6} parent=11 // pred_region
        _
      $region20: #{vis_open_det_forward.6} parent=11 // pred_fallthru
        _
      // Predicated region
      $region21: #{vis_open_det_forward.6} parent=11 // pred_check
        %p212 = pneg %p102
      $region22: #{vis_open_det_forward.6} parent=11 // pred_check_branch
        %214 = sbr.rel (%p212) target = $region24
      $region23: #{vis_open_det_forward.6} parent=11 // pred_region
        _
      $region24: #{vis_open_det_forward.6} parent=11 // pred_fallthru
        _
      // Predicated region
      $region25: #{vis_open_det_forward.6} parent=11 // pred_check
        %p215 = pneg %p123
      $region26: #{vis_open_det_forward.6} parent=11 // pred_check_branch
        %217 = sbr.rel (%p215) target = $region28
      $region27: #{vis_open_det_forward.6} parent=11 // pred_region
        _
      $region28: #{vis_open_det_forward.6} parent=11 // pred_fallthru
        _
      // Predicated region
      $region29: #{vis_open_det_forward.6} parent=11 // pred_check
        %p218 = pneg %p144
      $region30: #{vis_open_det_forward.6} parent=11 // pred_check_branch
        %220 = sbr.rel (%p218) target = $region32
      $region31: #{vis_open_det_forward.6} parent=11 // pred_region
        _
      $region32: #{vis_open_det_forward.6} parent=11 // pred_fallthru
        _
      // Predicated region
      $region33: #{vis_open_det_forward.6} parent=11 // pred_check
        %p221 = pneg %p165
      $region34: #{vis_open_det_forward.6} parent=11 // pred_check_branch
        %223 = sbr.rel (%p221) target = $region36
      $region35: #{vis_open_det_forward.6} parent=11 // pred_region
        _
      $region36: #{vis_open_det_forward.6} parent=11 // pred_fallthru
        _
    $region12: #{vis_open_det_forward.6} parent=5 // pred_fallthru
      _
    %p224 = scmp.lt.s32.totalorder %s13, 2
    // Predicated region
    $region37: #{vis_open_det_forward.6} parent=5 // pred_check
      %p225 = pneg %p224
    $region38: #{vis_open_det_forward.6} parent=5 // pred_check_branch
      %227 = sbr.rel (%p225) target = $region40
    $region39: #{vis_open_det_forward.6} parent=5 // pred_region
      // Predicated region
      $region41: #{vis_open_det_forward.6} parent=39 // pred_check
        %p228 = pneg %p33
      $region42: #{vis_open_det_forward.6} parent=39 // pred_check_branch
        %230 = sbr.rel (%p228) target = $region44
      $region43: #{vis_open_det_forward.6} parent=39 // pred_region
        %p231 = scmp.lt.s32.totalorder %s13, 1
        %s232 = scalar_select %p231, %s13, 1
        %s233 = smul.addr %s232, 2
        %s234 = smul.addr %s233, 4
        %s235 = scalar_lea.vmem %s0, %s234
      $region44: #{vis_open_det_forward.6} parent=39 // pred_fallthru
        _
    $region40: #{vis_open_det_forward.6} parent=5 // pred_fallthru
      _
    %p236 = scmp.le.s32.totalorder 1, %s13
    %p237 = scmp.lt.s32.totalorder %s13, 3
    %p238 = pnand %p236, %p237
    %p239 = pneg %p238
    // Predicated region
    $region45: #{vis_open_det_forward.6} parent=5 // pred_check
      _
    $region46: #{vis_open_det_forward.6} parent=5 // pred_check_branch
      %241 = sbr.rel (%p238) target = $region48
    $region47: #{vis_open_det_forward.6} parent=5 // pred_region
      %s242 = ssub.s32 %s13, 1
      %p243 = scmp.lt.s32.totalorder %s18, 1
      %s244 = scalar_select %p243, %s18, 1
      %s245 = smul.addr %s244, 2
      %s246 = smul.addr %s245, 4
      %s247 = scalar_lea.vmem %s0, %s246
      %p248 = pneg %p39
      %p249 = pneg %p36
      %p250 = pneg %p60
      %p251 = pneg %p57
      %p252 = pneg %p81
      %p253 = pneg %p78
      %p254 = pneg %p102
      %p255 = pneg %p99
      %p256 = pneg %p123
      %p257 = pneg %p120
      %p258 = pneg %p144
      %p259 = pneg %p141
      %p260 = pneg %p165
      %p261 = pneg %p162
      %p262 = pneg %p191
      %p263 = pneg %p188
      %p264 = scmp.lt.s32.totalorder %s18, 1
      %s265 = scalar_select %p264, %s18, 1
      %s266 = smul.addr %s265, 4
      %s267 = smul.addr %s266, 4
      %s268 = scalar_lea.vmem %s7, %s267
      %p269 = scmp.lt.s32.totalorder %s18, 1
      %s270 = scalar_select %p269, %s18, 1
      %s271 = smul.addr %s270, 2
      %s272 = smul.addr %s271, 4
      %s273 = scalar_lea.vmem %s0, %s272
      %p274 = scmp.lt.s32.totalorder %s18, 1
      %s275 = scalar_select %p274, %s18, 1
      %s276 = smul.addr %s275, 4
      %s277 = smul.addr %s276, 4
      %s278 = scalar_lea.vmem %s7, %s277
      %v280 = vld [vmem:[%s273] sm:$0xf]
      %v281 = vld [vmem:[%s273 + $0x4] sm:$0xf]
      %v282 = vld [vmem:[%s1] sm:$0xff]
      %v283 = vld [vmem:[%s1 + $0x8] sm:$0xff]
      %v284 = vld [vmem:[%s1 + $0x10] sm:$0xff]
      %v285 = vld [vmem:[%s1 + $0x18] sm:$0xff]
      %v286 = vld [vmem:[%s1 + $0x20] sm:$0xff]
      %v287 = vld [vmem:[%s1 + $0x28] sm:$0xff]
      %v288 = vld [vmem:[%s1 + $0x30] sm:$0xff]
      %v289 = vld [vmem:[%s1 + $0x38] sm:$0xff]
      %v290 = vld [vmem:[%s1 + $0x40] sm:$0xff]
      %v291 = vld [vmem:[%s1 + $0x48] sm:$0xff]
      %v292 = vld [vmem:[%s1 + $0x50] sm:$0xff]
      %v293 = vld [vmem:[%s1 + $0x58] sm:$0xff]
      %v294 = vld [vmem:[%s1 + $0x60] sm:$0xff]
      %v295 = vld [vmem:[%s1 + $0x68] sm:$0xff]
      %v296 = vld [vmem:[%s1 + $0x70] sm:$0xff]
      %v297 = vld [vmem:[%s1 + $0x78] sm:$0xff]
      %v300 = vunpack.c.l.b16 %v280
      %v301 = vunpack.c.l.b16 %v281
      %v302 = vpack.c.b16 %v301, %v300
      %v320 = vunpack.c.l.b16 %v282
      %v321 = vunpack.c.h.b16 %v282
      %v322 = vunpack.c.l.b16 %v283
      %v323 = vunpack.c.h.b16 %v283
      %v324 = vunpack.c.l.b16 %v284
      %v325 = vunpack.c.h.b16 %v284
      %v326 = vunpack.c.l.b16 %v285
      %v327 = vunpack.c.h.b16 %v285
      %v328 = vunpack.c.l.b16 %v286
      %v329 = vunpack.c.h.b16 %v286
      %v330 = vunpack.c.l.b16 %v287
      %v331 = vunpack.c.h.b16 %v287
      %v332 = vunpack.c.l.b16 %v288
      %v333 = vunpack.c.h.b16 %v288
      %v334 = vunpack.c.l.b16 %v289
      %v335 = vunpack.c.h.b16 %v289
      %v336 = vunpack.c.l.b16 %v290
      %v337 = vunpack.c.h.b16 %v290
      %v338 = vunpack.c.l.b16 %v291
      %v339 = vunpack.c.h.b16 %v291
      %v340 = vunpack.c.l.b16 %v292
      %v341 = vunpack.c.h.b16 %v292
      %v342 = vunpack.c.l.b16 %v293
      %v343 = vunpack.c.h.b16 %v293
      %v344 = vunpack.c.l.b16 %v294
      %v345 = vunpack.c.h.b16 %v294
      %v346 = vunpack.c.l.b16 %v295
      %v347 = vunpack.c.h.b16 %v295
      %v348 = vunpack.c.l.b16 %v296
      %v349 = vunpack.c.h.b16 %v296
      %v350 = vunpack.c.l.b16 %v297
      %v351 = vunpack.c.h.b16 %v297
      %v352 = vpack.c.b16 %v322, %v320
      %v353 = vpack.c.b16 %v323, %v321
      %v354 = vpack.c.b16 %v326, %v324
      %v355 = vpack.c.b16 %v327, %v325
      %v356 = vpack.c.b16 %v330, %v328
      %v357 = vpack.c.b16 %v331, %v329
      %v358 = vpack.c.b16 %v334, %v332
      %v359 = vpack.c.b16 %v335, %v333
      %v360 = vpack.c.b16 %v338, %v336
      %v361 = vpack.c.b16 %v339, %v337
      %v362 = vpack.c.b16 %v342, %v340
      %v363 = vpack.c.b16 %v343, %v341
      %v364 = vpack.c.b16 %v346, %v344
      %v365 = vpack.c.b16 %v347, %v345
      %v366 = vpack.c.b16 %v350, %v348
      %v367 = vpack.c.b16 %v351, %v349
      %384 = vmatprep.subr.bf16.mxu0 %v353
      %385 = vmatpush1.bf16.msra.mxu0 %v352
      %386 = vmatprep.subr.bf16.mxu0 %v355
      %387 = vmatpush1.bf16.msra.mxu0 %v354
      %388 = vmatprep.subr.bf16.mxu0 %v357
      %389 = vmatpush1.bf16.msra.mxu0 %v356
      %390 = vmatprep.subr.bf16.mxu0 %v359
      %391 = vmatpush1.bf16.msra.mxu0 %v358
      %392 = vmatprep.subr.bf16.mxu0 %v361
      %393 = vmatpush1.bf16.msra.mxu0 %v360
      %394 = vmatprep.subr.bf16.mxu0 %v363
      %395 = vmatpush1.bf16.msra.mxu0 %v362
      %396 = vmatprep.subr.bf16.mxu0 %v365
      %397 = vmatpush1.bf16.msra.mxu0 %v364
      %398 = vmatprep.subr.bf16.mxu0 %v367
      %399 = vmatpush1.bf16.msra.mxu0 %v366
      %400 = vmatprep.subr.bf16.mxu0 0
      %401 = vmatpush1.bf16.msra.mxu0 0
      %402 = vmatprep.subr.bf16.mxu0 0
      %403 = vmatpush1.bf16.msra.mxu0 0
      %404 = vmatprep.subr.bf16.mxu0 0
      %405 = vmatpush1.bf16.msra.mxu0 0
      %406 = vmatprep.subr.bf16.mxu0 0
      %407 = vmatpush1.bf16.msra.mxu0 0
      %408 = vmatprep.subr.bf16.mxu0 0
      %409 = vmatpush1.bf16.msra.mxu0 0
      %410 = vmatprep.subr.bf16.mxu0 0
      %411 = vmatpush1.bf16.msra.mxu0 0
      %412 = vmatprep.subr.bf16.mxu0 0
      %413 = vmatpush1.bf16.msra.mxu0 0
      %414 = vmatprep.subr.bf16.mxu0 0
      %415 = vmatpush1.bf16.msra.mxu0 0
      %416 = vmatprep.mubr.bf16.mxu0 0
      %417 = vmatmul.mubr.bf16.gmra.mrb[0].mxu0 %v302
      %v418 = vpop.f32.mrb[0].mxu0
      %v419 = vadd.f32 0.0, %v418
      %v420 = vpop.f32.mrb[0].mxu0
      %v421 = vadd.f32 0.0, %v420
      %v422 = vpop.f32.mrb[0].mxu0
      %v423 = vadd.f32 0.0, %v422
      %v424 = vpop.f32.mrb[0].mxu0
      %v425 = vadd.f32 0.0, %v424
      %426 = vdwg.mxu0
      %v427 = vadd.f32 %v419, %v423
      %v428 = vrot.slane %v427, 4
      %v429 = vadd.f32 %v427, %v428
      %v430 = vrot.slane %v429, 2
      %v431 = vadd.f32 %v429, %v430
      %v432 = vrot.slane %v431, 1
      %v433 = vadd.f32 %v431, %v432
      %v434 = vadd.f32 %v421, %v425
      %v435 = vrot.slane %v434, 4
      %v436 = vadd.f32 %v434, %v435
      %v437 = vrot.slane %v436, 2
      %v438 = vadd.f32 %v436, %v437
      %v439 = vrot.slane %v438, 1
      %v440 = vadd.f32 %v438, %v439
      %v441 = vmul.f32 %v419, %v419
      %v442 = vmul.f32 %v421, %v421
      %v443 = vmul.f32 %v423, %v423
      %v444 = vmul.f32 %v425, %v425
      %v445 = vadd.f32 %v441, %v443
      %v446 = vrot.slane %v445, 4
      %v447 = vadd.f32 %v445, %v446
      %v448 = vrot.slane %v447, 2
      %v449 = vadd.f32 %v447, %v448
      %v450 = vrot.slane %v449, 1
      %v451 = vadd.f32 %v449, %v450
      %v452 = vadd.f32 %v442, %v444
      %v453 = vrot.slane %v452, 4
      %v454 = vadd.f32 %v452, %v453
      %v455 = vrot.slane %v454, 2
      %v456 = vadd.f32 %v454, %v455
      %v457 = vrot.slane %v456, 1
      %v458 = vadd.f32 %v456, %v457
      %v459 = vld [vmem:[%s2] sm:$0x3]
      %v460 = vld [vmem:[%s3] sm:$0x3]
      %v461 = vld [vmem:[%s4] sm:$0x3]
      %v462 = vld [vmem:[%s5] sm:$0xff]
      %v463 = vld [vmem:[%s5 + $0x8] sm:$0xff]
      %v464 = vld [vmem:[%s5 + $0x10] sm:$0xff]
      %v465 = vld [vmem:[%s5 + $0x18] sm:$0xff]
      %v466 = vld [vmem:[%s5 + $0x20] sm:$0xff]
      %v467 = vld [vmem:[%s5 + $0x28] sm:$0xff]
      %v468 = vld [vmem:[%s5 + $0x30] sm:$0xff]
      %v469 = vld [vmem:[%s5 + $0x38] sm:$0xff]
      %v470 = vld [vmem:[%s5 + $0x40] sm:$0xff]
      %v471 = vld [vmem:[%s5 + $0x48] sm:$0xff]
      %v472 = vld [vmem:[%s5 + $0x50] sm:$0xff]
      %v473 = vld [vmem:[%s5 + $0x58] sm:$0xff]
      %v474 = vld [vmem:[%s5 + $0x60] sm:$0xff]
      %v475 = vld [vmem:[%s5 + $0x68] sm:$0xff]
      %v476 = vld [vmem:[%s5 + $0x70] sm:$0xff]
      %v477 = vld [vmem:[%s5 + $0x78] sm:$0xff]
      %v478 = vld [vmem:[%s5 + $0x80] sm:$0xff]
      %v479 = vld [vmem:[%s5 + $0x88] sm:$0xff]
      %v480 = vld [vmem:[%s5 + $0x90] sm:$0xff]
      %v481 = vld [vmem:[%s5 + $0x98] sm:$0xff]
      %v482 = vld [vmem:[%s5 + $0xa0] sm:$0xff]
      %v483 = vld [vmem:[%s5 + $0xa8] sm:$0xff]
      %v484 = vld [vmem:[%s5 + $0xb0] sm:$0xff]
      %v485 = vld [vmem:[%s5 + $0xb8] sm:$0xff]
      %v486 = vld [vmem:[%s5 + $0xc0] sm:$0xff]
      %v487 = vld [vmem:[%s5 + $0xc8] sm:$0xff]
      %v488 = vld [vmem:[%s5 + $0xd0] sm:$0xff]
      %v489 = vld [vmem:[%s5 + $0xd8] sm:$0xff]
      %v490 = vld [vmem:[%s5 + $0xe0] sm:$0xff]
      %v491 = vld [vmem:[%s5 + $0xe8] sm:$0xff]
      %v492 = vld [vmem:[%s5 + $0xf0] sm:$0xff]
      %v493 = vld [vmem:[%s5 + $0xf8] sm:$0xff]
      %v494 = vld [vmem:[%s6] sm:$0xff]
      %v495 = vld [vmem:[%s6 + $0x8] sm:$0xff]
      %v496 = vld [vmem:[%s6 + $0x10] sm:$0xff]
      %v497 = vld [vmem:[%s6 + $0x18] sm:$0xff]
      %v498 = vld [vmem:[%s6 + $0x20] sm:$0xff]
      %v499 = vld [vmem:[%s6 + $0x28] sm:$0xff]
      %v500 = vld [vmem:[%s6 + $0x30] sm:$0xff]
      %v501 = vld [vmem:[%s6 + $0x38] sm:$0xff]
      %v502 = vmul.f32 %v459, 16.0
      %v504 = vlaneseq
      %v505 = vshrl.u32 %v504, 7
      %v506 = vsub.s32 0, %v505
      %v507 = vrot.slane %v502, %v506
      %v508 = vlaneseq
      %v509 = vshrl.u32 %v508, 7
      %v510 = vsub.s32 1, %v509
      %v511 = vrot.slane %v502, %v510
      %v514 = vadd.f32 %v433, %v507
      %v515 = vadd.f32 %v440, %v511
      %v516 = vmul.f32 %v459, 2.0
      %v519 = vcombine.low %v433, %v440
      %v521 = vunpack.c.l.s4 1966171168
      %v522 = vunpack.c.0.s8 %v521
      %v523 = vlaneseq
      %v524 = vshrl.u32 %v523, 7
      %v525 = vsub.s32 %v522, %v524
      %v526 = vrot.slane %v519, %v525
      %v528 = vunpack.c.l.s4 1966171168
      %v529 = vunpack.c.0.s8 %v528
      %v530 = vlaneseq
      %v531 = vshrl.u32 %v530, 7
      %v532 = vsub.s32 %v529, %v531
      %v533 = vrot.slane %v526, %v532
      %v535 = vmul.f32 %v516, %v533
      %v537 = vlaneseq
      %v538 = vshrl.u32 %v537, 7
      %v539 = vsub.s32 0, %v538
      %v540 = vrot.slane %v535, %v539
      %v541 = vlaneseq
      %v542 = vshrl.u32 %v541, 7
      %v543 = vsub.s32 1, %v542
      %v544 = vrot.slane %v535, %v543
      %v547 = vadd.f32 %v451, %v540
      %v548 = vadd.f32 %v458, %v544
      %v549 = vmul.f32 %v459, %v459
      %v550 = vmul.f32 %v549, 16.0
      %v552 = vlaneseq
      %v553 = vshrl.u32 %v552, 7
      %v554 = vsub.s32 0, %v553
      %v555 = vrot.slane %v550, %v554
      %v556 = vlaneseq
      %v557 = vshrl.u32 %v556, 7
      %v558 = vsub.s32 1, %v557
      %v559 = vrot.slane %v550, %v558
      %v562 = vadd.f32 %v547, %v555
      %v563 = vadd.f32 %v548, %v559
      %v566 = vrot.slane %v562, 7
      %v567 = vrot.slane %v563, 7
      %vm570 = vcmask 1040384
      %v571 = vsel %vm570, %v514, %v566
      %v572 = vsel %vm570, %v515, %v567
      %573 = vmatprep.subr.mxu0 0.0
      %574 = vmatpush1.msra.mxu0 %v462
      %575 = vmatprep.subr.mxu0 0.0
      %576 = vmatpush1.msra.mxu0 %v463
      %577 = vmatprep.subr.mxu0 0.0
      %578 = vmatpush1.msra.mxu0 %v464
      %579 = vmatprep.subr.mxu0 0.0
      %580 = vmatpush1.msra.mxu0 %v465
      %581 = vmatprep.subr.mxu0 0.0
      %582 = vmatpush1.msra.mxu0 %v466
      %583 = vmatprep.subr.mxu0 0.0
      %584 = vmatpush1.msra.mxu0 %v467
      %585 = vmatprep.subr.mxu0 0.0
      %586 = vmatpush1.msra.mxu0 %v468
      %587 = vmatprep.subr.mxu0 0.0
      %588 = vmatpush1.msra.mxu0 %v469
      %589 = vmatprep.subr.mxu0 0.0
      %590 = vmatpush1.msra.mxu0 %v470
      %591 = vmatprep.subr.mxu0 0.0
      %592 = vmatpush1.msra.mxu0 %v471
      %593 = vmatprep.subr.mxu0 0.0
      %594 = vmatpush1.msra.mxu0 %v472
      %595 = vmatprep.subr.mxu0 0.0
      %596 = vmatpush1.msra.mxu0 %v473
      %597 = vmatprep.subr.mxu0 0.0
      %598 = vmatpush1.msra.mxu0 %v474
      %599 = vmatprep.subr.mxu0 0.0
      %600 = vmatpush1.msra.mxu0 %v475
      %601 = vmatprep.subr.mxu0 0.0
      %602 = vmatpush1.msra.mxu0 %v476
      %603 = vmatprep.subr.mxu0 0.0
      %604 = vmatpush1.msra.mxu0 %v477
      %605 = vmatprep.subr.mxu0 0.0
      %606 = vmatpush1.msra.mxu0 %v478
      %607 = vmatprep.subr.mxu0 0.0
      %608 = vmatpush1.msra.mxu0 %v479
      %609 = vmatprep.subr.mxu0 0.0
      %610 = vmatpush1.msra.mxu0 %v480
      %611 = vmatprep.subr.mxu0 0.0
      %612 = vmatpush1.msra.mxu0 %v481
      %613 = vmatprep.subr.mxu0 0.0
      %614 = vmatpush1.msra.mxu0 %v482
      %615 = vmatprep.subr.mxu0 0.0
      %616 = vmatpush1.msra.mxu0 %v483
      %617 = vmatprep.subr.mxu0 0.0
      %618 = vmatpush1.msra.mxu0 %v484
      %619 = vmatprep.subr.mxu0 0.0
      %620 = vmatpush1.msra.mxu0 %v485
      %621 = vmatprep.subr.mxu0 0.0
      %622 = vmatpush1.msra.mxu0 %v486
      %623 = vmatprep.subr.mxu0 0.0
      %624 = vmatpush1.msra.mxu0 %v487
      %625 = vmatprep.subr.mxu0 0.0
      %626 = vmatpush1.msra.mxu0 %v488
      %627 = vmatprep.subr.mxu0 0.0
      %628 = vmatpush1.msra.mxu0 %v489
      %629 = vmatprep.subr.mxu0 0.0
      %630 = vmatpush1.msra.mxu0 %v490
      %631 = vmatprep.subr.mxu0 0.0
      %632 = vmatpush1.msra.mxu0 %v491
      %633 = vmatprep.subr.mxu0 0.0
      %634 = vmatpush1.msra.mxu0 %v492
      %635 = vmatprep.subr.mxu0 0.0
      %636 = vmatpush1.msra.mxu0 %v493
      %637 = vmatprep.mubr.f32.mxu0 %v572
      %638 = vmatmul.mubr.f32.gmra.mrb[0].mxu0 %v571
      %v639 = vpop.f32.mrb[0].mxu0
      %v640 = vadd.f32 0.0, %v639
      %v641 = vpop.f32.mrb[0].mxu0
      %642 = vdwg.mxu0
      %v643 = vmul.f32 %v640, 0.0078125
      %v644 = vmul.f32 %v643, %v643
      %v646 = vrot.slane %v644, 7
      %v648 = vsub.f32 %v643, %v646
      %v649 = vmax.f32 %v648, 0.0
      %v650 = vadd.f32 %v649, 1e-05
      %v651 = vrsqrt.pop %v650
      %v652 = vsel %vm570, %v643, %v651
      %vm653 = vcmask 261120
      %v655 = vsel %vm653, %v652, 0
      %657 = vmatprep.subr.mxu0 %v495
      %658 = vmatpush1.msra.mxu0 %v494
      %659 = vmatprep.subr.mxu0 %v497
      %660 = vmatpush1.msra.mxu0 %v496
      %661 = vmatprep.subr.mxu0 %v499
      %662 = vmatpush1.msra.mxu0 %v498
      %663 = vmatprep.subr.mxu0 %v501
      %664 = vmatpush1.msra.mxu0 %v500
      %665 = vmatprep.subr.mxu0 0.0
      %666 = vmatpush1.msra.mxu0 0.0
      %667 = vmatprep.subr.mxu0 0.0
      %668 = vmatpush1.msra.mxu0 0.0
      %669 = vmatprep.subr.mxu0 0.0
      %670 = vmatpush1.msra.mxu0 0.0
      %671 = vmatprep.subr.mxu0 0.0
      %672 = vmatpush1.msra.mxu0 0.0
      %673 = vmatprep.subr.mxu0 0.0
      %674 = vmatpush1.msra.mxu0 0.0
      %675 = vmatprep.subr.mxu0 0.0
      %676 = vmatpush1.msra.mxu0 0.0
      %677 = vmatprep.subr.mxu0 0.0
      %678 = vmatpush1.msra.mxu0 0.0
      %679 = vmatprep.subr.mxu0 0.0
      %680 = vmatpush1.msra.mxu0 0.0
      %681 = vmatprep.subr.mxu0 0.0
      %682 = vmatpush1.msra.mxu0 0.0
      %683 = vmatprep.subr.mxu0 0.0
      %684 = vmatpush1.msra.mxu0 0.0
      %685 = vmatprep.subr.mxu0 0.0
      %686 = vmatpush1.msra.mxu0 0.0
      %687 = vmatprep.subr.mxu0 0.0
      %688 = vmatpush1.msra.mxu0 0.0
      %689 = vmatprep.subr.mxu0 0.0
      %690 = vmatpush1.msra.mxu0 0.0
      %691 = vmatprep.subr.mxu0 0.0
      %692 = vmatpush1.msra.mxu0 0.0
      %693 = vmatprep.subr.mxu0 0.0
      %694 = vmatpush1.msra.mxu0 0.0
      %695 = vmatprep.subr.mxu0 0.0
      %696 = vmatpush1.msra.mxu0 0.0
      %697 = vmatprep.subr.mxu0 0.0
      %698 = vmatpush1.msra.mxu0 0.0
      %699 = vmatprep.subr.mxu0 0.0
      %700 = vmatpush1.msra.mxu0 0.0
      %701 = vmatprep.subr.mxu0 0.0
      %702 = vmatpush1.msra.mxu0 0.0
      %703 = vmatprep.subr.mxu0 0.0
      %704 = vmatpush1.msra.mxu0 0.0
      %705 = vmatprep.subr.mxu0 0.0
      %706 = vmatpush1.msra.mxu0 0.0
      %707 = vmatprep.subr.mxu0 0.0
      %708 = vmatpush1.msra.mxu0 0.0
      %709 = vmatprep.subr.mxu0 0.0
      %710 = vmatpush1.msra.mxu0 0.0
      %711 = vmatprep.subr.mxu0 0.0
      %712 = vmatpush1.msra.mxu0 0.0
      %713 = vmatprep.subr.mxu0 0.0
      %714 = vmatpush1.msra.mxu0 0.0
      %715 = vmatprep.subr.mxu0 0.0
      %716 = vmatpush1.msra.mxu0 0.0
      %717 = vmatprep.subr.mxu0 0.0
      %718 = vmatpush1.msra.mxu0 0.0
      %719 = vmatprep.subr.mxu0 0.0
      %720 = vmatpush1.msra.mxu0 0.0
      %721 = vmatprep.mubr.f32.mxu0 0.0
      %722 = vmatmul.mubr.f32.gmra.mrb[0].mxu0 %v655
      %v723 = vpop.f32.mrb[0].mxu0
      %v724 = vadd.f32 0.0, %v723
      %v725 = vpop.f32.mrb[0].mxu0
      %v726 = vadd.f32 0.0, %v725
      %727 = vdwg.mxu0
      %v729 = vlaneseq
      %v730 = vshrl.u32 %v729, 7
      %v731 = vsub.s32 0, %v730
      %v732 = vrot.slane %v460, %v731
      %v733 = vlaneseq
      %v734 = vshrl.u32 %v733, 7
      %v735 = vsub.s32 1, %v734
      %v736 = vrot.slane %v460, %v735
      %v739 = vmul.f32 %v724, %v732
      %v740 = vmul.f32 %v726, %v736
      %v743 = vcombine.low %v724, %v726
      %v745 = vunpack.c.l.s4 1966171168
      %v746 = vunpack.c.0.s8 %v745
      %v747 = vlaneseq
      %v748 = vshrl.u32 %v747, 7
      %v749 = vsub.s32 %v746, %v748
      %v750 = vrot.slane %v743, %v749
      %v752 = vunpack.c.l.s4 1966171168
      %v753 = vunpack.c.0.s8 %v752
      %v754 = vlaneseq
      %v755 = vshrl.u32 %v754, 7
      %v756 = vsub.s32 %v753, %v755
      %v757 = vrot.slane %v750, %v756
      %v759 = vsub.f32 %v459, %v757
      %v762 = vcombine.low %v739, %v740
      %v764 = vunpack.c.l.s4 1966171168
      %v765 = vunpack.c.0.s8 %v764
      %v766 = vlaneseq
      %v767 = vshrl.u32 %v766, 7
      %v768 = vsub.s32 %v765, %v767
      %v769 = vrot.slane %v762, %v768
      %v770 = vcombine.high %v769, %v769
      %v772 = vunpack.c.l.s4 1966171168
      %v773 = vunpack.c.0.s8 %v772
      %v774 = vlaneseq
      %v775 = vshrl.u32 %v774, 7
      %v776 = vsub.s32 %v773, %v775
      %v777 = vrot.slane %v770, %v776
      %v779 = vmul.f32 %v759, %v777
      %v780 = vadd.f32 %v461, %v779
      %v781 = vlaneseq
      %v782 = vshrl.u32 %v781, 7
      %v783 = vsub.s32 1, %v782
      %v784 = vrot.slane %v739, %v783
      %v785 = vlaneseq
      %v786 = vshrl.u32 %v785, 7
      %v787 = vsub.s32 1, %v786
      %v788 = vrot.slane %v740, %v787
      %v789 = vmul.f32 %v419, %v784
      %v790 = vmul.f32 %v421, %v788
      %v791 = vmul.f32 %v423, %v784
      %v792 = vmul.f32 %v425, %v788
      %v794 = vlaneseq
      %v795 = vshrl.u32 %v794, 7
      %v796 = vsub.s32 0, %v795
      %v797 = vrot.slane %v780, %v796
      %v798 = vlaneseq
      %v799 = vshrl.u32 %v798, 7
      %v800 = vsub.s32 1, %v799
      %v801 = vrot.slane %v780, %v800
      %v804 = vadd.f32 %v789, %v797
      %v805 = vadd.f32 %v790, %v801
      %v806 = vadd.f32 %v791, %v797
      %v807 = vadd.f32 %v792, %v801
      %v808 = vpack.c.bf16 %v806, %v804
      %v809 = vpack.c.bf16 %v807, %v805
      %v812 = vunpack.c.l.b16 %v808
      %v813 = vunpack.c.l.b16 %v809
      %v814 = vunpack.c.h.b16 %v808
      %v815 = vunpack.c.h.b16 %v809
      %v816 = vpack.c.b16 %v813, %v812
      %v817 = vpack.c.b16 %v815, %v814
      %820 = vst [vmem:[%s278] sm:$0xff] %v816
      %821 = vst [vmem:[%s278 + $0x8] sm:$0xff] %v817
      %p822 = scmp.lt.s32.totalorder %s18, 1
      %s823 = scalar_select %p822, %s18, 1
      %s824 = smul.addr %s823, 4
      %s825 = smul.addr %s824, 4
      %s826 = scalar_lea.vmem %s7, %s825
      // Predicated region
      $region49: #{vis_open_det_forward.6} parent=47 // pred_check
        %p827 = pneg %p188
      $region50: #{vis_open_det_forward.6} parent=47 // pred_check_branch
        %829 = sbr.rel (%p827) target = $region52
      $region51: #{vis_open_det_forward.6} parent=47 // pred_region
        _
      $region52: #{vis_open_det_forward.6} parent=47 // pred_fallthru
        _
    $region48: #{vis_open_det_forward.6} parent=5 // pred_fallthru
      _
    %p830 = scmp.le.s32.totalorder 2, %s13
    // Predicated region
    $region53: #{vis_open_det_forward.6} parent=5 // pred_check
      %p831 = pneg %p830
    $region54: #{vis_open_det_forward.6} parent=5 // pred_check_branch
      %833 = sbr.rel (%p831) target = $region56
    $region55: #{vis_open_det_forward.6} parent=5 // pred_region
      %s834 = ssub.s32 %s13, 2
      // Predicated region
      $region57: #{vis_open_det_forward.6} parent=55 // pred_check
        %p835 = pneg %p194
      $region58: #{vis_open_det_forward.6} parent=55 // pred_check_branch
        %837 = sbr.rel (%p835) target = $region60
      $region59: #{vis_open_det_forward.6} parent=55 // pred_region
        %p838 = scmp.lt.s32.totalorder %s19, 1
        %s839 = scalar_select %p838, %s19, 1
        %s840 = smul.addr %s839, 4
        %s841 = smul.addr %s840, 4
        %s842 = scalar_lea.vmem %s7, %s841
      $region60: #{vis_open_det_forward.6} parent=55 // pred_fallthru
        _
    $region56: #{vis_open_det_forward.6} parent=5 // pred_fallthru
      _
  $region6: #{vis_open_det_forward.6} parent=0 // loop_footer
    %s17 = sadd.s32 1, %s13
  $region7: #{vis_open_det_forward.6} parent=0 // loop_footer_branch
    %12 = sbr.rel target = $region3
  $region8: #{vis_open_det_forward.6} parent=0 // loop_exit
    _

// kernel: vis_open_det_forward.7
$region0: #{vis_open_det_forward.7}
  #allocation0 [shape = 'u32[]', space=smem, size = 0x4, offset = 0x4, fixed_abs, tag = 'smem constant byte address 0x4 - core index']
  #allocation1 [shape = 'u32[144,128]{1,0:T(1,128)}', space=vmem, size = 0x12000, scoped, tag = 'internal scratch']
  %s0 = inlined_call_operand.vmem [shape: bf16[2,16,1152], index: 0, kind: input, shape index: {}]
  %s1 = inlined_call_operand.vmem [shape: bf16[1152,256], index: 1, kind: input, shape index: {}]
  %s2 = inlined_call_operand.vmem [shape: f32[1,256], index: 2, kind: input, shape index: {}]
  %s3 = inlined_call_operand.vmem [shape: f32[1,256], index: 3, kind: input, shape index: {}]
  %s4 = inlined_call_operand.vmem [shape: f32[1,256], index: 4, kind: input, shape index: {}]
  %s5 = inlined_call_operand.vmem [shape: f32[256,32], index: 5, kind: input, shape index: {}]
  %s6 = inlined_call_operand.vmem [shape: f32[32,256], index: 6, kind: input, shape index: {}]
  %s7 = inlined_call_operand.vmem [shape: bf16[2,16,256], index: 7, kind: output, shape index: {}]
  %s8 = sld [smem:[#allocation0]]
  $region61: #{vis_open_det_forward.7} parent=0
    _
  %s10 = ssub.s32 1, %s8
  %s11 = scalar_select 0, %s10, %s8
  loop: start=0, step=1, limit=4
  $region2: #{vis_open_det_forward.7} parent=0 // loop_pre_header
    _
  $region3: #{vis_open_det_forward.7} parent=0 // loop_header
    %s13 = sphi 0, %s17
    %p14 = scmp.ge.s32.totalorder %s13, 4
    %s23 = sphi 0, %s25
    %s26 = sphi 0, %s23
    %s27 = sphi 0, %s26
    %s43 = sphi 0, %s27
    %s47 = sphi 0, %s47
    %s49 = sphi 0, %s47
    %s50 = sphi 0, %s49
    %s64 = sphi 0, %s50
    %s68 = sphi 0, %s68
    %s70 = sphi 0, %s68
    %s71 = sphi 0, %s70
    %s85 = sphi 0, %s71
    %s89 = sphi 0, %s89
    %s91 = sphi 0, %s89
    %s92 = sphi 0, %s91
    %s106 = sphi 0, %s92
    %s110 = sphi 0, %s110
    %s112 = sphi 0, %s110
    %s113 = sphi 0, %s112
    %s127 = sphi 0, %s113
    %s131 = sphi 0, %s131
    %s133 = sphi 0, %s131
    %s134 = sphi 0, %s133
    %s148 = sphi 0, %s134
    %s152 = sphi 0, %s152
    %s154 = sphi 0, %s152
    %s155 = sphi 0, %s154
    %s169 = sphi 0, %s155
    %s175 = sphi 0, %s177
    %s178 = sphi 0, %s175
    %s179 = sphi 0, %s178
    %s195 = sphi 0, %s179
  $region4: #{vis_open_det_forward.7} parent=0 // loop_header_branch
    %16 = sbr.rel (%p14) target = $region8
  $region5: #{vis_open_det_forward.7} parent=0 // loop_body
    %s18 = ssub.s32 %s13, 1
    %s19 = ssub.s32 %s13, 2
    %s20 = sadd.s32 %s13, 1
    %s21 = ssub.s32 %s13, %s20
    %p22 = scmp.eq.s32.totalorder %s21, 0
    %s24 = sadd.s32 %s23, 1
    %s25 = scalar_select %p22, %s23, %s24
    %p28 = pneg %p22
    %p29 = scmp.eq.s32.totalorder %s13, 1
    %p30 = por %p28, %p29
    %p31 = scmp.ne.s32.totalorder %s23, %s26
    %p32 = scmp.eq.s32.totalorder %s13, 0
    %p33 = por %p31, %p32
    %p34 = scmp.ne.s32.totalorder %s23, %s26
    %p35 = scmp.eq.s32.totalorder %s18, 1
    %p36 = por %p34, %p35
    %p37 = scmp.ne.s32.totalorder %s26, %s27
    %p38 = scmp.eq.s32.totalorder %s18, 0
    %p39 = por %p37, %p38
    %p40 = scmp.ne.s32.totalorder %s26, %s27
    %p41 = scmp.eq.s32.totalorder %s19, 1
    %p42 = por %p40, %p41
    %p44 = scmp.ne.s32.totalorder %s27, %s43
    %p45 = scmp.eq.s32.totalorder %s19, 0
    %p46 = por %p44, %p45
    %s48 = sadd.s32 %s47, 1
    %p51 = scmp.eq.s32.totalorder %s13, 1
    %p52 = scmp.ne.s32.totalorder %s47, %s49
    %p53 = scmp.eq.s32.totalorder %s13, 0
    %p54 = por %p52, %p53
    %p55 = scmp.ne.s32.totalorder %s47, %s49
    %p56 = scmp.eq.s32.totalorder %s18, 1
    %p57 = por %p55, %p56
    %p58 = scmp.ne.s32.totalorder %s49, %s50
    %p59 = scmp.eq.s32.totalorder %s18, 0
    %p60 = por %p58, %p59
    %p61 = scmp.ne.s32.totalorder %s49, %s50
    %p62 = scmp.eq.s32.totalorder %s19, 1
    %p63 = por %p61, %p62
    %p65 = scmp.ne.s32.totalorder %s50, %s64
    %p66 = scmp.eq.s32.totalorder %s19, 0
    %p67 = por %p65, %p66
    %s69 = sadd.s32 %s68, 1
    %p72 = scmp.eq.s32.totalorder %s13, 1
    %p73 = scmp.ne.s32.totalorder %s68, %s70
    %p74 = scmp.eq.s32.totalorder %s13, 0
    %p75 = por %p73, %p74
    %p76 = scmp.ne.s32.totalorder %s68, %s70
    %p77 = scmp.eq.s32.totalorder %s18, 1
    %p78 = por %p76, %p77
    %p79 = scmp.ne.s32.totalorder %s70, %s71
    %p80 = scmp.eq.s32.totalorder %s18, 0
    %p81 = por %p79, %p80
    %p82 = scmp.ne.s32.totalorder %s70, %s71
    %p83 = scmp.eq.s32.totalorder %s19, 1
    %p84 = por %p82, %p83
    %p86 = scmp.ne.s32.totalorder %s71, %s85
    %p87 = scmp.eq.s32.totalorder %s19, 0
    %p88 = por %p86, %p87
    %s90 = sadd.s32 %s89, 1
    %p93 = scmp.eq.s32.totalorder %s13, 1
    %p94 = scmp.ne.s32.totalorder %s89, %s91
    %p95 = scmp.eq.s32.totalorder %s13, 0
    %p96 = por %p94, %p95
    %p97 = scmp.ne.s32.totalorder %s89, %s91
    %p98 = scmp.eq.s32.totalorder %s18, 1
    %p99 = por %p97, %p98
    %p100 = scmp.ne.s32.totalorder %s91, %s92
    %p101 = scmp.eq.s32.totalorder %s18, 0
    %p102 = por %p100, %p101
    %p103 = scmp.ne.s32.totalorder %s91, %s92
    %p104 = scmp.eq.s32.totalorder %s19, 1
    %p105 = por %p103, %p104
    %p107 = scmp.ne.s32.totalorder %s92, %s106
    %p108 = scmp.eq.s32.totalorder %s19, 0
    %p109 = por %p107, %p108
    %s111 = sadd.s32 %s110, 1
    %p114 = scmp.eq.s32.totalorder %s13, 1
    %p115 = scmp.ne.s32.totalorder %s110, %s112
    %p116 = scmp.eq.s32.totalorder %s13, 0
    %p117 = por %p115, %p116
    %p118 = scmp.ne.s32.totalorder %s110, %s112
    %p119 = scmp.eq.s32.totalorder %s18, 1
    %p120 = por %p118, %p119
    %p121 = scmp.ne.s32.totalorder %s112, %s113
    %p122 = scmp.eq.s32.totalorder %s18, 0
    %p123 = por %p121, %p122
    %p124 = scmp.ne.s32.totalorder %s112, %s113
    %p125 = scmp.eq.s32.totalorder %s19, 1
    %p126 = por %p124, %p125
    %p128 = scmp.ne.s32.totalorder %s113, %s127
    %p129 = scmp.eq.s32.totalorder %s19, 0
    %p130 = por %p128, %p129
    %s132 = sadd.s32 %s131, 1
    %p135 = scmp.eq.s32.totalorder %s13, 1
    %p136 = scmp.ne.s32.totalorder %s131, %s133
    %p137 = scmp.eq.s32.totalorder %s13, 0
    %p138 = por %p136, %p137
    %p139 = scmp.ne.s32.totalorder %s131, %s133
    %p140 = scmp.eq.s32.totalorder %s18, 1
    %p141 = por %p139, %p140
    %p142 = scmp.ne.s32.totalorder %s133, %s134
    %p143 = scmp.eq.s32.totalorder %s18, 0
    %p144 = por %p142, %p143
    %p145 = scmp.ne.s32.totalorder %s133, %s134
    %p146 = scmp.eq.s32.totalorder %s19, 1
    %p147 = por %p145, %p146
    %p149 = scmp.ne.s32.totalorder %s134, %s148
    %p150 = scmp.eq.s32.totalorder %s19, 0
    %p151 = por %p149, %p150
    %s153 = sadd.s32 %s152, 1
    %p156 = scmp.eq.s32.totalorder %s13, 1
    %p157 = scmp.ne.s32.totalorder %s152, %s154
    %p158 = scmp.eq.s32.totalorder %s13, 0
    %p159 = por %p157, %p158
    %p160 = scmp.ne.s32.totalorder %s152, %s154
    %p161 = scmp.eq.s32.totalorder %s18, 1
    %p162 = por %p160, %p161
    %p163 = scmp.ne.s32.totalorder %s154, %s155
    %p164 = scmp.eq.s32.totalorder %s18, 0
    %p165 = por %p163, %p164
    %p166 = scmp.ne.s32.totalorder %s154, %s155
    %p167 = scmp.eq.s32.totalorder %s19, 1
    %p168 = por %p166, %p167
    %p170 = scmp.ne.s32.totalorder %s155, %s169
    %p171 = scmp.eq.s32.totalorder %s19, 0
    %p172 = por %p170, %p171
    %s173 = ssub.s32 %s13, %s20
    %p174 = scmp.eq.s32.totalorder %s173, 0
    %s176 = sadd.s32 %s175, 1
    %s177 = scalar_select %p174, %s175, %s176
    %p180 = pneg %p174
    %p181 = scmp.eq.s32.totalorder %s13, 1
    %p182 = por %p180, %p181
    %p183 = scmp.ne.s32.totalorder %s175, %s178
    %p184 = scmp.eq.s32.totalorder %s13, 0
    %p185 = por %p183, %p184
    %p186 = scmp.ne.s32.totalorder %s175, %s178
    %p187 = scmp.eq.s32.totalorder %s18, 1
    %p188 = por %p186, %p187
    %p189 = scmp.ne.s32.totalorder %s178, %s179
    %p190 = scmp.eq.s32.totalorder %s18, 0
    %p191 = por %p189, %p190
    %p192 = scmp.ne.s32.totalorder %s178, %s179
    %p193 = scmp.eq.s32.totalorder %s19, 1
    %p194 = por %p192, %p193
    %p196 = scmp.ne.s32.totalorder %s179, %s195
    %p197 = scmp.eq.s32.totalorder %s19, 0
    %p198 = por %p196, %p197
    %p199 = scmp.le.s32.totalorder 1, %s13
    %p200 = scmp.lt.s32.totalorder %s13, 3
    %p201 = pnand %p199, %p200
    %p202 = pneg %p201
    // Predicated region
    $region9: #{vis_open_det_forward.7} parent=5 // pred_check
      _
    $region10: #{vis_open_det_forward.7} parent=5 // pred_check_branch
      %204 = sbr.rel (%p201) target = $region12
    $region11: #{vis_open_det_forward.7} parent=5 // pred_region
      %s205 = ssub.s32 %s13, 1
      // Predicated region
      $region13: #{vis_open_det_forward.7} parent=11 // pred_check
        %p206 = pneg %p60
      $region14: #{vis_open_det_forward.7} parent=11 // pred_check_branch
        %208 = sbr.rel (%p206) target = $region16
      $region15: #{vis_open_det_forward.7} parent=11 // pred_region
        _
      $region16: #{vis_open_det_forward.7} parent=11 // pred_fallthru
        _
      // Predicated region
      $region17: #{vis_open_det_forward.7} parent=11 // pred_check
        %p209 = pneg %p81
      $region18: #{vis_open_det_forward.7} parent=11 // pred_check_branch
        %211 = sbr.rel (%p209) target = $region20
      $region19: #{vis_open_det_forward.7} parent=11 // pred_region
        _
      $region20: #{vis_open_det_forward.7} parent=11 // pred_fallthru
        _
      // Predicated region
      $region21: #{vis_open_det_forward.7} parent=11 // pred_check
        %p212 = pneg %p102
      $region22: #{vis_open_det_forward.7} parent=11 // pred_check_branch
        %214 = sbr.rel (%p212) target = $region24
      $region23: #{vis_open_det_forward.7} parent=11 // pred_region
        _
      $region24: #{vis_open_det_forward.7} parent=11 // pred_fallthru
        _
      // Predicated region
      $region25: #{vis_open_det_forward.7} parent=11 // pred_check
        %p215 = pneg %p123
      $region26: #{vis_open_det_forward.7} parent=11 // pred_check_branch
        %217 = sbr.rel (%p215) target = $region28
      $region27: #{vis_open_det_forward.7} parent=11 // pred_region
        _
      $region28: #{vis_open_det_forward.7} parent=11 // pred_fallthru
        _
      // Predicated region
      $region29: #{vis_open_det_forward.7} parent=11 // pred_check
        %p218 = pneg %p144
      $region30: #{vis_open_det_forward.7} parent=11 // pred_check_branch
        %220 = sbr.rel (%p218) target = $region32
      $region31: #{vis_open_det_forward.7} parent=11 // pred_region
        _
      $region32: #{vis_open_det_forward.7} parent=11 // pred_fallthru
        _
      // Predicated region
      $region33: #{vis_open_det_forward.7} parent=11 // pred_check
        %p221 = pneg %p165
      $region34: #{vis_open_det_forward.7} parent=11 // pred_check_branch
        %223 = sbr.rel (%p221) target = $region36
      $region35: #{vis_open_det_forward.7} parent=11 // pred_region
        _
      $region36: #{vis_open_det_forward.7} parent=11 // pred_fallthru
        _
    $region12: #{vis_open_det_forward.7} parent=5 // pred_fallthru
      _
    %p224 = scmp.lt.s32.totalorder %s13, 2
    // Predicated region
    $region37: #{vis_open_det_forward.7} parent=5 // pred_check
      %p225 = pneg %p224
    $region38: #{vis_open_det_forward.7} parent=5 // pred_check_branch
      %227 = sbr.rel (%p225) target = $region40
    $region39: #{vis_open_det_forward.7} parent=5 // pred_region
      // Predicated region
      $region41: #{vis_open_det_forward.7} parent=39 // pred_check
        %p228 = pneg %p33
      $region42: #{vis_open_det_forward.7} parent=39 // pred_check_branch
        %230 = sbr.rel (%p228) target = $region44
      $region43: #{vis_open_det_forward.7} parent=39 // pred_region
        %p231 = scmp.lt.s32.totalorder %s13, 1
        %s232 = scalar_select %p231, %s13, 1
        %s233 = smul.addr %s232, 18
        %s234 = smul.addr %s233, 4
        %s235 = scalar_lea.vmem %s0, %s234
      $region44: #{vis_open_det_forward.7} parent=39 // pred_fallthru
        _
    $region40: #{vis_open_det_forward.7} parent=5 // pred_fallthru
      _
    %p236 = scmp.le.s32.totalorder 1, %s13
    %p237 = scmp.lt.s32.totalorder %s13, 3
    %p238 = pnand %p236, %p237
    %p239 = pneg %p238
    // Predicated region
    $region45: #{vis_open_det_forward.7} parent=5 // pred_check
      _
    $region46: #{vis_open_det_forward.7} parent=5 // pred_check_branch
      %241 = sbr.rel (%p238) target = $region48
    $region47: #{vis_open_det_forward.7} parent=5 // pred_region
      %s242 = ssub.s32 %s13, 1
      %p243 = scmp.lt.s32.totalorder %s18, 1
      %s244 = scalar_select %p243, %s18, 1
      %s245 = smul.addr %s244, 18
      %s246 = smul.addr %s245, 4
      %s247 = scalar_lea.vmem %s0, %s246
      %p248 = pneg %p39
      %p249 = pneg %p36
      %p250 = pneg %p60
      %p251 = pneg %p57
      %p252 = pneg %p81
      %p253 = pneg %p78
      %p254 = pneg %p102
      %p255 = pneg %p99
      %p256 = pneg %p123
      %p257 = pneg %p120
      %p258 = pneg %p144
      %p259 = pneg %p141
      %p260 = pneg %p165
      %p261 = pneg %p162
      %p262 = pneg %p191
      %p263 = pneg %p188
      %p264 = scmp.lt.s32.totalorder %s18, 1
      %s265 = scalar_select %p264, %s18, 1
      %s266 = smul.addr %s265, 4
      %s267 = smul.addr %s266, 4
      %s268 = scalar_lea.vmem %s7, %s267
      %p269 = scmp.lt.s32.totalorder %s18, 1
      %s270 = scalar_select %p269, %s18, 1
      %s271 = smul.addr %s270, 18
      %s272 = smul.addr %s271, 4
      %s273 = scalar_lea.vmem %s0, %s272
      %p274 = scmp.lt.s32.totalorder %s18, 1
      %s275 = scalar_select %p274, %s18, 1
      %s276 = smul.addr %s275, 4
      %s277 = smul.addr %s276, 4
      %s278 = scalar_lea.vmem %s7, %s277
      %v280 = vld [vmem:[%s273] sm:$0xff]
      %v281 = vld [vmem:[%s273 + $0x8] sm:$0xff]
      %v282 = vld [vmem:[%s273 + $0x10] sm:$0xff]
      %v283 = vld [vmem:[%s273 + $0x18] sm:$0xff]
      %v284 = vld [vmem:[%s273 + $0x20] sm:$0xf]
      %v285 = vld [vmem:[%s273 + $0x24] sm:$0xff]
      %v286 = vld [vmem:[%s273 + $0x2c] sm:$0xff]
      %v287 = vld [vmem:[%s273 + $0x34] sm:$0xff]
      %v288 = vld [vmem:[%s273 + $0x3c] sm:$0xff]
      %v289 = vld [vmem:[%s273 + $0x44] sm:$0xf]
      %v290 = vld [vmem:[%s1] sm:$0xff]
      %v291 = vld [vmem:[%s1 + $0x8] sm:$0xff]
      %v292 = vld [vmem:[%s1 + $0x10] sm:$0xff]
      %v293 = vld [vmem:[%s1 + $0x18] sm:$0xff]
      %v294 = vld [vmem:[%s1 + $0x20] sm:$0xff]
      %v295 = vld [vmem:[%s1 + $0x28] sm:$0xff]
      %v296 = vld [vmem:[%s1 + $0x30] sm:$0xff]
      %v297 = vld [vmem:[%s1 + $0x38] sm:$0xff]
      %v298 = vld [vmem:[%s1 + $0x40] sm:$0xff]
      %v299 = vld [vmem:[%s1 + $0x48] sm:$0xff]
      %v300 = vld [vmem:[%s1 + $0x50] sm:$0xff]
      %v301 = vld [vmem:[%s1 + $0x58] sm:$0xff]
      %v302 = vld [vmem:[%s1 + $0x60] sm:$0xff]
      %v303 = vld [vmem:[%s1 + $0x68] sm:$0xff]
      %v304 = vld [vmem:[%s1 + $0x70] sm:$0xff]
      %v305 = vld [vmem:[%s1 + $0x78] sm:$0xff]
      %v306 = vld [vmem:[%s1 + $0x80] sm:$0xff]
      %v307 = vld [vmem:[%s1 + $0x88] sm:$0xff]
      %v308 = vld [vmem:[%s1 + $0x90] sm:$0xff]
      %v309 = vld [vmem:[%s1 + $0x98] sm:$0xff]
      %v310 = vld [vmem:[%s1 + $0xa0] sm:$0xff]
      %v311 = vld [vmem:[%s1 + $0xa8] sm:$0xff]
      %v312 = vld [vmem:[%s1 + $0xb0] sm:$0xff]
      %v313 = vld [vmem:[%s1 + $0xb8] sm:$0xff]
      %v314 = vld [vmem:[%s1 + $0xc0] sm:$0xff]
      %v315 = vld [vmem:[%s1 + $0xc8] sm:$0xff]
      %v316 = vld [vmem:[%s1 + $0xd0] sm:$0xff]
      %v317 = vld [vmem:[%s1 + $0xd8] sm:$0xff]
      %v318 = vld [vmem:[%s1 + $0xe0] sm:$0xff]
      %v319 = vld [vmem:[%s1 + $0xe8] sm:$0xff]
      %v320 = vld [vmem:[%s1 + $0xf0] sm:$0xff]
      %v321 = vld [vmem:[%s1 + $0xf8] sm:$0xff]
      %v322 = vld [vmem:[%s1 + $0x100] sm:$0xff]
      %v323 = vld [vmem:[%s1 + $0x108] sm:$0xff]
      %v324 = vld [vmem:[%s1 + $0x110] sm:$0xff]
      %v325 = vld [vmem:[%s1 + $0x118] sm:$0xff]
      %v326 = vld [vmem:[%s1 + $0x120] sm:$0xff]
      %v327 = vld [vmem:[%s1 + $0x128] sm:$0xff]
      %v328 = vld [vmem:[%s1 + $0x130] sm:$0xff]
      %v329 = vld [vmem:[%s1 + $0x138] sm:$0xff]
      %v330 = vld [vmem:[%s1 + $0x140] sm:$0xff]
      %v331 = vld [vmem:[%s1 + $0x148] sm:$0xff]
      %v332 = vld [vmem:[%s1 + $0x150] sm:$0xff]
      %v333 = vld [vmem:[%s1 + $0x158] sm:$0xff]
      %v334 = vld [vmem:[%s1 + $0x160] sm:$0xff]
      %v335 = vld [vmem:[%s1 + $0x168] sm:$0xff]
      %v336 = vld [vmem:[%s1 + $0x170] sm:$0xff]
      %v337 = vld [vmem:[%s1 + $0x178] sm:$0xff]
      %v338 = vld [vmem:[%s1 + $0x180] sm:$0xff]
      %v339 = vld [vmem:[%s1 + $0x188] sm:$0xff]
      %v340 = vld [vmem:[%s1 + $0x190] sm:$0xff]
      %v341 = vld [vmem:[%s1 + $0x198] sm:$0xff]
      %v342 = vld [vmem:[%s1 + $0x1a0] sm:$0xff]
      %v343 = vld [vmem:[%s1 + $0x1a8] sm:$0xff]
      %v344 = vld [vmem:[%s1 + $0x1b0] sm:$0xff]
      %v345 = vld [vmem:[%s1 + $0x1b8] sm:$0xff]
      %v346 = vld [vmem:[%s1 + $0x1c0] sm:$0xff]
      %v347 = vld [vmem:[%s1 + $0x1c8] sm:$0xff]
      %v348 = vld [vmem:[%s1 + $0x1d0] sm:$0xff]
      %v349 = vld [vmem:[%s1 + $0x1d8] sm:$0xff]
      %v350 = vld [vmem:[%s1 + $0x1e0] sm:$0xff]
      %v351 = vld [vmem:[%s1 + $0x1e8] sm:$0xff]
      %v352 = vld [vmem:[%s1 + $0x1f0] sm:$0xff]
      %v353 = vld [vmem:[%s1 + $0x1f8] sm:$0xff]
      %v354 = vld [vmem:[%s1 + $0x200] sm:$0xff]
      %v355 = vld [vmem:[%s1 + $0x208] sm:$0xff]
      %v356 = vld [vmem:[%s1 + $0x210] sm:$0xff]
      %v357 = vld [vmem:[%s1 + $0x218] sm:$0xff]
      %v358 = vld [vmem:[%s1 + $0x220] sm:$0xff]
      %v359 = vld [vmem:[%s1 + $0x228] sm:$0xff]
      %v360 = vld [vmem:[%s1 + $0x230] sm:$0xff]
      %v361 = vld [vmem:[%s1 + $0x238] sm:$0xff]
      %v362 = vld [vmem:[%s1 + $0x240] sm:$0xff]
      %v363 = vld [vmem:[%s1 + $0x248] sm:$0xff]
      %v364 = vld [vmem:[%s1 + $0x250] sm:$0xff]
      %v365 = vld [vmem:[%s1 + $0x258] sm:$0xff]
      %v366 = vld [vmem:[%s1 + $0x260] sm:$0xff]
      %v367 = vld [vmem:[%s1 + $0x268] sm:$0xff]
      %v368 = vld [vmem:[%s1 + $0x270] sm:$0xff]
      %v369 = vld [vmem:[%s1 + $0x278] sm:$0xff]
      %v370 = vld [vmem:[%s1 + $0x280] sm:$0xff]
      %v371 = vld [vmem:[%s1 + $0x288] sm:$0xff]
      %v372 = vld [vmem:[%s1 + $0x290] sm:$0xff]
      %v373 = vld [vmem:[%s1 + $0x298] sm:$0xff]
      %v374 = vld [vmem:[%s1 + $0x2a0] sm:$0xff]
      %v375 = vld [vmem:[%s1 + $0x2a8] sm:$0xff]
      %v376 = vld [vmem:[%s1 + $0x2b0] sm:$0xff]
      %v377 = vld [vmem:[%s1 + $0x2b8] sm:$0xff]
      %v378 = vld [vmem:[%s1 + $0x2c0] sm:$0xff]
      %v379 = vld [vmem:[%s1 + $0x2c8] sm:$0xff]
      %v380 = vld [vmem:[%s1 + $0x2d0] sm:$0xff]
      %v381 = vld [vmem:[%s1 + $0x2d8] sm:$0xff]
      %v382 = vld [vmem:[%s1 + $0x2e0] sm:$0xff]
      %v383 = vld [vmem:[%s1 + $0x2e8] sm:$0xff]
      %v384 = vld [vmem:[%s1 + $0x2f0] sm:$0xff]
      %v385 = vld [vmem:[%s1 + $0x2f8] sm:$0xff]
      %v386 = vld [vmem:[%s1 + $0x300] sm:$0xff]
      %v387 = vld [vmem:[%s1 + $0x308] sm:$0xff]
      %v388 = vld [vmem:[%s1 + $0x310] sm:$0xff]
      %v389 = vld [vmem:[%s1 + $0x318] sm:$0xff]
      %v390 = vld [vmem:[%s1 + $0x320] sm:$0xff]
      %v391 = vld [vmem:[%s1 + $0x328] sm:$0xff]
      %v392 = vld [vmem:[%s1 + $0x330] sm:$0xff]
      %v393 = vld [vmem:[%s1 + $0x338] sm:$0xff]
      %v394 = vld [vmem:[%s1 + $0x340] sm:$0xff]
      %v395 = vld [vmem:[%s1 + $0x348] sm:$0xff]
      %v396 = vld [vmem:[%s1 + $0x350] sm:$0xff]
      %v397 = vld [vmem:[%s1 + $0x358] sm:$0xff]
      %v398 = vld [vmem:[%s1 + $0x360] sm:$0xff]
      %v399 = vld [vmem:[%s1 + $0x368] sm:$0xff]
      %v400 = vld [vmem:[%s1 + $0x370] sm:$0xff]
      %v401 = vld [vmem:[%s1 + $0x378] sm:$0xff]
      %v402 = vld [vmem:[%s1 + $0x380] sm:$0xff]
      %v403 = vld [vmem:[%s1 + $0x388] sm:$0xff]
      %v404 = vld [vmem:[%s1 + $0x390] sm:$0xff]
      %v405 = vld [vmem:[%s1 + $0x398] sm:$0xff]
      %v406 = vld [vmem:[%s1 + $0x3a0] sm:$0xff]
      %v407 = vld [vmem:[%s1 + $0x3a8] sm:$0xff]
      %v408 = vld [vmem:[%s1 + $0x3b0] sm:$0xff]
      %v409 = vld [vmem:[%s1 + $0x3b8] sm:$0xff]
      %v410 = vld [vmem:[%s1 + $0x3c0] sm:$0xff]
      %v411 = vld [vmem:[%s1 + $0x3c8] sm:$0xff]
      %v412 = vld [vmem:[%s1 + $0x3d0] sm:$0xff]
      %v413 = vld [vmem:[%s1 + $0x3d8] sm:$0xff]
      %v414 = vld [vmem:[%s1 + $0x3e0] sm:$0xff]
      %v415 = vld [vmem:[%s1 + $0x3e8] sm:$0xff]
      %v416 = vld [vmem:[%s1 + $0x3f0] sm:$0xff]
      %v417 = vld [vmem:[%s1 + $0x3f8] sm:$0xff]
      %v418 = vld [vmem:[%s1 + $0x400] sm:$0xff]
      %v419 = vld [vmem:[%s1 + $0x408] sm:$0xff]
      %v420 = vld [vmem:[%s1 + $0x410] sm:$0xff]
      %v421 = vld [vmem:[%s1 + $0x418] sm:$0xff]
      %v422 = vld [vmem:[%s1 + $0x420] sm:$0xff]
      %v423 = vld [vmem:[%s1 + $0x428] sm:$0xff]
      %v424 = vld [vmem:[%s1 + $0x430] sm:$0xff]
      %v425 = vld [vmem:[%s1 + $0x438] sm:$0xff]
      %v426 = vld [vmem:[%s1 + $0x440] sm:$0xff]
      %v427 = vld [vmem:[%s1 + $0x448] sm:$0xff]
      %v428 = vld [vmem:[%s1 + $0x450] sm:$0xff]
      %v429 = vld [vmem:[%s1 + $0x458] sm:$0xff]
      %v430 = vld [vmem:[%s1 + $0x460] sm:$0xff]
      %v431 = vld [vmem:[%s1 + $0x468] sm:$0xff]
      %v432 = vld [vmem:[%s1 + $0x470] sm:$0xff]
      %v433 = vld [vmem:[%s1 + $0x478] sm:$0xff]
      %v444 = vunpack.c.l.b16 %v280
      %v445 = vunpack.c.h.b16 %v280
      %v446 = vunpack.c.l.b16 %v281
      %v447 = vunpack.c.h.b16 %v281
      %v448 = vunpack.c.l.b16 %v282
      %v449 = vunpack.c.h.b16 %v282
      %v450 = vunpack.c.l.b16 %v283
      %v451 = vunpack.c.h.b16 %v283
      %v452 = vunpack.c.l.b16 %v284
      %v453 = vunpack.c.l.b16 %v285
      %v454 = vunpack.c.h.b16 %v285
      %v455 = vunpack.c.l.b16 %v286
      %v456 = vunpack.c.h.b16 %v286
      %v457 = vunpack.c.l.b16 %v287
      %v458 = vunpack.c.h.b16 %v287
      %v459 = vunpack.c.l.b16 %v288
      %v460 = vunpack.c.h.b16 %v288
      %v461 = vunpack.c.l.b16 %v289
      %v462 = vpack.c.b16 %v453, %v444
      %v463 = vpack.c.b16 %v454, %v445
      %v464 = vpack.c.b16 %v455, %v446
      %v465 = vpack.c.b16 %v456, %v447
      %v466 = vpack.c.b16 %v457, %v448
      %v467 = vpack.c.b16 %v458, %v449
      %v468 = vpack.c.b16 %v459, %v450
      %v469 = vpack.c.b16 %v460, %v451
      %v470 = vpack.c.b16 %v461, %v452
      %v624 = vunpack.c.l.b16 %v290
      %v625 = vunpack.c.h.b16 %v290
      %v626 = vunpack.c.l.b16 %v291
      %v627 = vunpack.c.h.b16 %v291
      %v628 = vunpack.c.l.b16 %v292
      %v629 = vunpack.c.h.b16 %v292
      %v630 = vunpack.c.l.b16 %v293
      %v631 = vunpack.c.h.b16 %v293
      %v632 = vunpack.c.l.b16 %v294
      %v633 = vunpack.c.h.b16 %v294
      %v634 = vunpack.c.l.b16 %v295
      %v635 = vunpack.c.h.b16 %v295
      %v636 = vunpack.c.l.b16 %v296
      %v637 = vunpack.c.h.b16 %v296
      %v638 = vunpack.c.l.b16 %v297
      %v639 = vunpack.c.h.b16 %v297
      %v640 = vunpack.c.l.b16 %v298
      %v641 = vunpack.c.h.b16 %v298
      %v642 = vunpack.c.l.b16 %v299
      %v643 = vunpack.c.h.b16 %v299
      %v644 = vunpack.c.l.b16 %v300
      %v645 = vunpack.c.h.b16 %v300
      %v646 = vunpack.c.l.b16 %v301
      %v647 = vunpack.c.h.b16 %v301
      %v648 = vunpack.c.l.b16 %v302
      %v649 = vunpack.c.h.b16 %v302
      %v650 = vunpack.c.l.b16 %v303
      %v651 = vunpack.c.h.b16 %v303
      %v652 = vunpack.c.l.b16 %v304
      %v653 = vunpack.c.h.b16 %v304
      %v654 = vunpack.c.l.b16 %v305
      %v655 = vunpack.c.h.b16 %v305
      %v656 = vunpack.c.l.b16 %v306
      %v657 = vunpack.c.h.b16 %v306
      %v658 = vunpack.c.l.b16 %v307
      %v659 = vunpack.c.h.b16 %v307
      %v660 = vunpack.c.l.b16 %v308
      %v661 = vunpack.c.h.b16 %v308
      %v662 = vunpack.c.l.b16 %v309
      %v663 = vunpack.c.h.b16 %v309
      %v664 = vunpack.c.l.b16 %v310
      %v665 = vunpack.c.h.b16 %v310
      %v666 = vunpack.c.l.b16 %v311
      %v667 = vunpack.c.h.b16 %v311
      %v668 = vunpack.c.l.b16 %v312
      %v669 = vunpack.c.h.b16 %v312
      %v670 = vunpack.c.l.b16 %v313
      %v671 = vunpack.c.h.b16 %v313
      %v672 = vunpack.c.l.b16 %v314
      %v673 = vunpack.c.h.b16 %v314
      %v674 = vunpack.c.l.b16 %v315
      %v675 = vunpack.c.h.b16 %v315
      %v676 = vunpack.c.l.b16 %v316
      %v677 = vunpack.c.h.b16 %v316
      %v678 = vunpack.c.l.b16 %v317
      %v679 = vunpack.c.h.b16 %v317
      %v680 = vunpack.c.l.b16 %v318
      %v681 = vunpack.c.h.b16 %v318
      %v682 = vunpack.c.l.b16 %v319
      %v683 = vunpack.c.h.b16 %v319
      %v684 = vunpack.c.l.b16 %v320
      %v685 = vunpack.c.h.b16 %v320
      %v686 = vunpack.c.l.b16 %v321
      %v687 = vunpack.c.h.b16 %v321
      %v688 = vunpack.c.l.b16 %v322
      %v689 = vunpack.c.h.b16 %v322
      %v690 = vunpack.c.l.b16 %v323
      %v691 = vunpack.c.h.b16 %v323
      %v692 = vunpack.c.l.b16 %v324
      %v693 = vunpack.c.h.b16 %v324
      %v694 = vunpack.c.l.b16 %v325
      %v695 = vunpack.c.h.b16 %v325
      %v696 = vunpack.c.l.b16 %v326
      %v697 = vunpack.c.h.b16 %v326
      %v698 = vunpack.c.l.b16 %v327
      %v699 = vunpack.c.h.b16 %v327
      %v700 = vunpack.c.l.b16 %v328
      %v701 = vunpack.c.h.b16 %v328
      %v702 = vunpack.c.l.b16 %v329
      %v703 = vunpack.c.h.b16 %v329
      %v704 = vunpack.c.l.b16 %v330
      %v705 = vunpack.c.h.b16 %v330
      %v706 = vunpack.c.l.b16 %v331
      %v707 = vunpack.c.h.b16 %v331
      %v708 = vunpack.c.l.b16 %v332
      %v709 = vunpack.c.h.b16 %v332
      %v710 = vunpack.c.l.b16 %v333
      %v711 = vunpack.c.h.b16 %v333
      %v712 = vunpack.c.l.b16 %v334
      %v713 = vunpack.c.h.b16 %v334
      %v714 = vunpack.c.l.b16 %v335
      %v715 = vunpack.c.h.b16 %v335
      %v716 = vunpack.c.l.b16 %v336
      %v717 = vunpack.c.h.b16 %v336
      %v718 = vunpack.c.l.b16 %v337
      %v719 = vunpack.c.h.b16 %v337
      %v720 = vunpack.c.l.b16 %v338
      %v721 = vunpack.c.h.b16 %v338
      %v722 = vunpack.c.l.b16 %v339
      %v723 = vunpack.c.h.b16 %v339
      %v724 = vunpack.c.l.b16 %v340
      %v725 = vunpack.c.h.b16 %v340
      %v726 = vunpack.c.l.b16 %v341
      %v727 = vunpack.c.h.b16 %v341
      %v728 = vunpack.c.l.b16 %v342
      %v729 = vunpack.c.h.b16 %v342
      %v730 = vunpack.c.l.b16 %v343
      %v731 = vunpack.c.h.b16 %v343
      %v732 = vunpack.c.l.b16 %v344
      %v733 = vunpack.c.h.b16 %v344
      %v734 = vunpack.c.l.b16 %v345
      %v735 = vunpack.c.h.b16 %v345
      %v736 = vunpack.c.l.b16 %v346
      %v737 = vunpack.c.h.b16 %v346
      %v738 = vunpack.c.l.b16 %v347
      %v739 = vunpack.c.h.b16 %v347
      %v740 = vunpack.c.l.b16 %v348
      %v741 = vunpack.c.h.b16 %v348
      %v742 = vunpack.c.l.b16 %v349
      %v743 = vunpack.c.h.b16 %v349
      %v744 = vunpack.c.l.b16 %v350
      %v745 = vunpack.c.h.b16 %v350
      %v746 = vunpack.c.l.b16 %v351
      %v747 = vunpack.c.h.b16 %v351
      %v748 = vunpack.c.l.b16 %v352
      %v749 = vunpack.c.h.b16 %v352
      %v750 = vunpack.c.l.b16 %v353
      %v751 = vunpack.c.h.b16 %v353
      %v752 = vunpack.c.l.b16 %v354
      %v753 = vunpack.c.h.b16 %v354
      %v754 = vunpack.c.l.b16 %v355
      %v755 = vunpack.c.h.b16 %v355
      %v756 = vunpack.c.l.b16 %v356
      %v757 = vunpack.c.h.b16 %v356
      %v758 = vunpack.c.l.b16 %v357
      %v759 = vunpack.c.h.b16 %v357
      %v760 = vunpack.c.l.b16 %v358
      %v761 = vunpack.c.h.b16 %v358
      %v762 = vunpack.c.l.b16 %v359
      %v763 = vunpack.c.h.b16 %v359
      %v764 = vunpack.c.l.b16 %v360
      %v765 = vunpack.c.h.b16 %v360
      %v766 = vunpack.c.l.b16 %v361
      %v767 = vunpack.c.h.b16 %v361
      %v768 = vunpack.c.l.b16 %v362
      %v769 = vunpack.c.h.b16 %v362
      %v770 = vunpack.c.l.b16 %v363
      %v771 = vunpack.c.h.b16 %v363
      %v772 = vunpack.c.l.b16 %v364
      %v773 = vunpack.c.h.b16 %v364
      %v774 = vunpack.c.l.b16 %v365
      %v775 = vunpack.c.h.b16 %v365
      %v776 = vunpack.c.l.b16 %v366
      %v777 = vunpack.c.h.b16 %v366
      %v778 = vunpack.c.l.b16 %v367
      %v779 = vunpack.c.h.b16 %v367
      %v780 = vunpack.c.l.b16 %v368
      %v781 = vunpack.c.h.b16 %v368
      %v782 = vunpack.c.l.b16 %v369
      %v783 = vunpack.c.h.b16 %v369
      %v784 = vunpack.c.l.b16 %v370
      %v785 = vunpack.c.h.b16 %v370
      %v786 = vunpack.c.l.b16 %v371
      %v787 = vunpack.c.h.b16 %v371
      %v788 = vunpack.c.l.b16 %v372
      %v789 = vunpack.c.h.b16 %v372
      %v790 = vunpack.c.l.b16 %v373
      %v791 = vunpack.c.h.b16 %v373
      %v792 = vunpack.c.l.b16 %v374
      %v793 = vunpack.c.h.b16 %v374
      %v794 = vunpack.c.l.b16 %v375
      %v795 = vunpack.c.h.b16 %v375
      %v796 = vunpack.c.l.b16 %v376
      %v797 = vunpack.c.h.b16 %v376
      %v798 = vunpack.c.l.b16 %v377
      %v799 = vunpack.c.h.b16 %v377
      %v800 = vunpack.c.l.b16 %v378
      %v801 = vunpack.c.h.b16 %v378
      %v802 = vunpack.c.l.b16 %v379
      %v803 = vunpack.c.h.b16 %v379
      %v804 = vunpack.c.l.b16 %v380
      %v805 = vunpack.c.h.b16 %v380
      %v806 = vunpack.c.l.b16 %v381
      %v807 = vunpack.c.h.b16 %v381
      %v808 = vunpack.c.l.b16 %v382
      %v809 = vunpack.c.h.b16 %v382
      %v810 = vunpack.c.l.b16 %v383
      %v811 = vunpack.c.h.b16 %v383
      %v812 = vunpack.c.l.b16 %v384
      %v813 = vunpack.c.h.b16 %v384
      %v814 = vunpack.c.l.b16 %v385
      %v815 = vunpack.c.h.b16 %v385
      %v816 = vunpack.c.l.b16 %v386
      %v817 = vunpack.c.h.b16 %v386
      %v818 = vunpack.c.l.b16 %v387
      %v819 = vunpack.c.h.b16 %v387
      %v820 = vunpack.c.l.b16 %v388
      %v821 = vunpack.c.h.b16 %v388
      %v822 = vunpack.c.l.b16 %v389
      %v823 = vunpack.c.h.b16 %v389
      %v824 = vunpack.c.l.b16 %v390
      %v825 = vunpack.c.h.b16 %v390
      %v826 = vunpack.c.l.b16 %v391
      %v827 = vunpack.c.h.b16 %v391
      %v828 = vunpack.c.l.b16 %v392
      %v829 = vunpack.c.h.b16 %v392
      %v830 = vunpack.c.l.b16 %v393
      %v831 = vunpack.c.h.b16 %v393
      %v832 = vunpack.c.l.b16 %v394
      %v833 = vunpack.c.h.b16 %v394
      %v834 = vunpack.c.l.b16 %v395
      %v835 = vunpack.c.h.b16 %v395
      %v836 = vunpack.c.l.b16 %v396
      %v837 = vunpack.c.h.b16 %v396
      %v838 = vunpack.c.l.b16 %v397
      %v839 = vunpack.c.h.b16 %v397
      %v840 = vunpack.c.l.b16 %v398
      %v841 = vunpack.c.h.b16 %v398
      %v842 = vunpack.c.l.b16 %v399
      %v843 = vunpack.c.h.b16 %v399
      %v844 = vunpack.c.l.b16 %v400
      %v845 = vunpack.c.h.b16 %v400
      %v846 = vunpack.c.l.b16 %v401
      %v847 = vunpack.c.h.b16 %v401
      %v848 = vunpack.c.l.b16 %v402
      %v849 = vunpack.c.h.b16 %v402
      %v850 = vunpack.c.l.b16 %v403
      %v851 = vunpack.c.h.b16 %v403
      %v852 = vunpack.c.l.b16 %v404
      %v853 = vunpack.c.h.b16 %v404
      %v854 = vunpack.c.l.b16 %v405
      %v855 = vunpack.c.h.b16 %v405
      %v856 = vunpack.c.l.b16 %v406
      %v857 = vunpack.c.h.b16 %v406
      %v858 = vunpack.c.l.b16 %v407
      %v859 = vunpack.c.h.b16 %v407
      %v860 = vunpack.c.l.b16 %v408
      %v861 = vunpack.c.h.b16 %v408
      %v862 = vunpack.c.l.b16 %v409
      %v863 = vunpack.c.h.b16 %v409
      %v864 = vunpack.c.l.b16 %v410
      %v865 = vunpack.c.h.b16 %v410
      %v866 = vunpack.c.l.b16 %v411
      %v867 = vunpack.c.h.b16 %v411
      %v868 = vunpack.c.l.b16 %v412
      %v869 = vunpack.c.h.b16 %v412
      %v870 = vunpack.c.l.b16 %v413
      %v871 = vunpack.c.h.b16 %v413
      %v872 = vunpack.c.l.b16 %v414
      %v873 = vunpack.c.h.b16 %v414
      %v874 = vunpack.c.l.b16 %v415
      %v875 = vunpack.c.h.b16 %v415
      %v876 = vunpack.c.l.b16 %v416
      %v877 = vunpack.c.h.b16 %v416
      %v878 = vunpack.c.l.b16 %v417
      %v879 = vunpack.c.h.b16 %v417
      %v880 = vunpack.c.l.b16 %v418
      %v881 = vunpack.c.h.b16 %v418
      %v882 = vunpack.c.l.b16 %v419
      %v883 = vunpack.c.h.b16 %v419
      %v884 = vunpack.c.l.b16 %v420
      %v885 = vunpack.c.h.b16 %v420
      %v886 = vunpack.c.l.b16 %v421
      %v887 = vunpack.c.h.b16 %v421
      %v888 = vunpack.c.l.b16 %v422
      %v889 = vunpack.c.h.b16 %v422
      %v890 = vunpack.c.l.b16 %v423
      %v891 = vunpack.c.h.b16 %v423
      %v892 = vunpack.c.l.b16 %v424
      %v893 = vunpack.c.h.b16 %v424
      %v894 = vunpack.c.l.b16 %v425
      %v895 = vunpack.c.h.b16 %v425
      %v896 = vunpack.c.l.b16 %v426
      %v897 = vunpack.c.h.b16 %v426
      %v898 = vunpack.c.l.b16 %v427
      %v899 = vunpack.c.h.b16 %v427
      %v900 = vunpack.c.l.b16 %v428
      %v901 = vunpack.c.h.b16 %v428
      %v902 = vunpack.c.l.b16 %v429
      %v903 = vunpack.c.h.b16 %v429
      %v904 = vunpack.c.l.b16 %v430
      %v905 = vunpack.c.h.b16 %v430
      %v906 = vunpack.c.l.b16 %v431
      %v907 = vunpack.c.h.b16 %v431
      %v908 = vunpack.c.l.b16 %v432
      %v909 = vunpack.c.h.b16 %v432
      %v910 = vunpack.c.l.b16 %v433
      %v911 = vunpack.c.h.b16 %v433
      %v912 = vpack.c.b16 %v626, %v624
      %v913 = vpack.c.b16 %v627, %v625
      %v914 = vpack.c.b16 %v630, %v628
      %v915 = vpack.c.b16 %v631, %v629
      %v916 = vpack.c.b16 %v634, %v632
      %v917 = vpack.c.b16 %v635, %v633
      %v918 = vpack.c.b16 %v638, %v636
      %v919 = vpack.c.b16 %v639, %v637
      %v920 = vpack.c.b16 %v642, %v640
      %v921 = vpack.c.b16 %v643, %v641
      %v922 = vpack.c.b16 %v646, %v644
      %v923 = vpack.c.b16 %v647, %v645
      %v924 = vpack.c.b16 %v650, %v648
      %v925 = vpack.c.b16 %v651, %v649
      %v926 = vpack.c.b16 %v654, %v652
      %v927 = vpack.c.b16 %v655, %v653
      %v928 = vpack.c.b16 %v658, %v656
      %v929 = vpack.c.b16 %v659, %v657
      %v930 = vpack.c.b16 %v662, %v660
      %v931 = vpack.c.b16 %v663, %v661
      %v932 = vpack.c.b16 %v666, %v664
      %v933 = vpack.c.b16 %v667, %v665
      %v934 = vpack.c.b16 %v670, %v668
      %v935 = vpack.c.b16 %v671, %v669
      %v936 = vpack.c.b16 %v674, %v672
      %v937 = vpack.c.b16 %v675, %v673
      %v938 = vpack.c.b16 %v678, %v676
      %v939 = vpack.c.b16 %v679, %v677
      %v940 = vpack.c.b16 %v682, %v680
      %v941 = vpack.c.b16 %v683, %v681
      %v942 = vpack.c.b16 %v686, %v684
      %v943 = vpack.c.b16 %v687, %v685
      %v944 = vpack.c.b16 %v690, %v688
      %v945 = vpack.c.b16 %v691, %v689
      %v946 = vpack.c.b16 %v694, %v692
      %v947 = vpack.c.b16 %v695, %v693
      %v948 = vpack.c.b16 %v698, %v696
      %v949 = vpack.c.b16 %v699, %v697
      %v950 = vpack.c.b16 %v702, %v700
      %v951 = vpack.c.b16 %v703, %v701
      %v952 = vpack.c.b16 %v706, %v704
      %v953 = vpack.c.b16 %v707, %v705
      %v954 = vpack.c.b16 %v710, %v708
      %v955 = vpack.c.b16 %v711, %v709
      %v956 = vpack.c.b16 %v714, %v712
      %v957 = vpack.c.b16 %v715, %v713
      %v958 = vpack.c.b16 %v718, %v716
      %v959 = vpack.c.b16 %v719, %v717
      %v960 = vpack.c.b16 %v722, %v720
      %v961 = vpack.c.b16 %v723, %v721
      %v962 = vpack.c.b16 %v726, %v724
      %v963 = vpack.c.b16 %v727, %v725
      %v964 = vpack.c.b16 %v730, %v728
      %v965 = vpack.c.b16 %v731, %v729
      %v966 = vpack.c.b16 %v734, %v732
      %v967 = vpack.c.b16 %v735, %v733
      %v968 = vpack.c.b16 %v738, %v736
      %v969 = vpack.c.b16 %v739, %v737
      %v970 = vpack.c.b16 %v742, %v740
      %v971 = vpack.c.b16 %v743, %v741
      %v972 = vpack.c.b16 %v746, %v744
      %v973 = vpack.c.b16 %v747, %v745
      %v974 = vpack.c.b16 %v750, %v748
      %v975 = vpack.c.b16 %v751, %v749
      %v976 = vpack.c.b16 %v754, %v752
      %v977 = vpack.c.b16 %v755, %v753
      %v978 = vpack.c.b16 %v758, %v756
      %v979 = vpack.c.b16 %v759, %v757
      %v980 = vpack.c.b16 %v762, %v760
      %v981 = vpack.c.b16 %v763, %v761
      %v982 = vpack.c.b16 %v766, %v764
      %v983 = vpack.c.b16 %v767, %v765
      %v984 = vpack.c.b16 %v770, %v768
      %v985 = vpack.c.b16 %v771, %v769
      %v986 = vpack.c.b16 %v774, %v772
      %v987 = vpack.c.b16 %v775, %v773
      %v988 = vpack.c.b16 %v778, %v776
      %v989 = vpack.c.b16 %v779, %v777
      %v990 = vpack.c.b16 %v782, %v780
      %v991 = vpack.c.b16 %v783, %v781
      %v992 = vpack.c.b16 %v786, %v784
      %v993 = vpack.c.b16 %v787, %v785
      %v994 = vpack.c.b16 %v790, %v788
      %v995 = vpack.c.b16 %v791, %v789
      %v996 = vpack.c.b16 %v794, %v792
      %v997 = vpack.c.b16 %v795, %v793
      %v998 = vpack.c.b16 %v798, %v796
      %v999 = vpack.c.b16 %v799, %v797
      %v1000 = vpack.c.b16 %v802, %v800
      %v1001 = vpack.c.b16 %v803, %v801
      %v1002 = vpack.c.b16 %v806, %v804
      %v1003 = vpack.c.b16 %v807, %v805
      %v1004 = vpack.c.b16 %v810, %v808
      %v1005 = vpack.c.b16 %v811, %v809
      %v1006 = vpack.c.b16 %v814, %v812
      %v1007 = vpack.c.b16 %v815, %v813
      %v1008 = vpack.c.b16 %v818, %v816
      %v1009 = vpack.c.b16 %v819, %v817
      %v1010 = vpack.c.b16 %v822, %v820
      %v1011 = vpack.c.b16 %v823, %v821
      %v1012 = vpack.c.b16 %v826, %v824
      %v1013 = vpack.c.b16 %v827, %v825
      %v1014 = vpack.c.b16 %v830, %v828
      %v1015 = vpack.c.b16 %v831, %v829
      %v1016 = vpack.c.b16 %v834, %v832
      %v1017 = vpack.c.b16 %v835, %v833
      %v1018 = vpack.c.b16 %v838, %v836
      %v1019 = vpack.c.b16 %v839, %v837
      %v1020 = vpack.c.b16 %v842, %v840
      %v1021 = vpack.c.b16 %v843, %v841
      %v1022 = vpack.c.b16 %v846, %v844
      %v1023 = vpack.c.b16 %v847, %v845
      %v1024 = vpack.c.b16 %v850, %v848
      %v1025 = vpack.c.b16 %v851, %v849
      %v1026 = vpack.c.b16 %v854, %v852
      %v1027 = vpack.c.b16 %v855, %v853
      %v1028 = vpack.c.b16 %v858, %v856
      %v1029 = vpack.c.b16 %v859, %v857
      %v1030 = vpack.c.b16 %v862, %v860
      %v1031 = vpack.c.b16 %v863, %v861
      %v1032 = vpack.c.b16 %v866, %v864
      %v1033 = vpack.c.b16 %v867, %v865
      %v1034 = vpack.c.b16 %v870, %v868
      %v1035 = vpack.c.b16 %v871, %v869
      %v1036 = vpack.c.b16 %v874, %v872
      %v1037 = vpack.c.b16 %v875, %v873
      %v1038 = vpack.c.b16 %v878, %v876
      %v1039 = vpack.c.b16 %v879, %v877
      %v1040 = vpack.c.b16 %v882, %v880
      %v1041 = vpack.c.b16 %v883, %v881
      %v1042 = vpack.c.b16 %v886, %v884
      %v1043 = vpack.c.b16 %v887, %v885
      %v1044 = vpack.c.b16 %v890, %v888
      %v1045 = vpack.c.b16 %v891, %v889
      %v1046 = vpack.c.b16 %v894, %v892
      %v1047 = vpack.c.b16 %v895, %v893
      %v1048 = vpack.c.b16 %v898, %v896
      %v1049 = vpack.c.b16 %v899, %v897
      %v1050 = vpack.c.b16 %v902, %v900
      %v1051 = vpack.c.b16 %v903, %v901
      %v1052 = vpack.c.b16 %v906, %v904
      %v1053 = vpack.c.b16 %v907, %v905
      %v1054 = vpack.c.b16 %v910, %v908
      %v1055 = vpack.c.b16 %v911, %v909
      %1200 = vmatprep.subr.bf16.mxu0 %v913
      %1201 = vmatpush1.bf16.msra.mxu0 %v912
      %1202 = vmatprep.subr.bf16.mxu0 %v915
      %1203 = vmatpush1.bf16.msra.mxu0 %v914
      %1204 = vmatprep.subr.bf16.mxu0 %v917
      %1205 = vmatpush1.bf16.msra.mxu0 %v916
      %1206 = vmatprep.subr.bf16.mxu0 %v919
      %1207 = vmatpush1.bf16.msra.mxu0 %v918
      %1208 = vmatprep.subr.bf16.mxu0 %v921
      %1209 = vmatpush1.bf16.msra.mxu0 %v920
      %1210 = vmatprep.subr.bf16.mxu0 %v923
      %1211 = vmatpush1.bf16.msra.mxu0 %v922
      %1212 = vmatprep.subr.bf16.mxu0 %v925
      %1213 = vmatpush1.bf16.msra.mxu0 %v924
      %1214 = vmatprep.subr.bf16.mxu0 %v927
      %1215 = vmatpush1.bf16.msra.mxu0 %v926
      %1216 = vmatprep.subr.bf16.mxu0 %v929
      %1217 = vmatpush1.bf16.msra.mxu0 %v928
      %1218 = vmatprep.subr.bf16.mxu0 %v931
      %1219 = vmatpush1.bf16.msra.mxu0 %v930
      %1220 = vmatprep.subr.bf16.mxu0 %v933
      %1221 = vmatpush1.bf16.msra.mxu0 %v932
      %1222 = vmatprep.subr.bf16.mxu0 %v935
      %1223 = vmatpush1.bf16.msra.mxu0 %v934
      %1224 = vmatprep.subr.bf16.mxu0 %v937
      %1225 = vmatpush1.bf16.msra.mxu0 %v936
      %1226 = vmatprep.subr.bf16.mxu0 %v939
      %1227 = vmatpush1.bf16.msra.mxu0 %v938
      %1228 = vmatprep.subr.bf16.mxu0 %v941
      %1229 = vmatpush1.bf16.msra.mxu0 %v940
      %1230 = vmatprep.subr.bf16.mxu0 %v943
      %1231 = vmatpush1.bf16.msra.mxu0 %v942
      %1232 = vmatprep.mubr.bf16.mxu0 %v463
      %1233 = vmatmul.mubr.bf16.gmra.mrb[0].mxu0 %v462
      %v1234 = vpop.f32.mrb[0].mxu0
      %v1235 = vadd.f32 0.0, %v1234
      %v1236 = vpop.f32.mrb[0].mxu0
      %v1237 = vadd.f32 0.0, %v1236
      %v1238 = vpop.f32.mrb[0].mxu0
      %v1239 = vadd.f32 0.0, %v1238
      %v1240 = vpop.f32.mrb[0].mxu0
      %v1241 = vadd.f32 0.0, %v1240
      %1242 = vdwg.mxu0
      %1243 = vmatprep.subr.bf16.mxu0 %v945
      %1244 = vmatpush1.bf16.msra.mxu0 %v944
      %1245 = vmatprep.subr.bf16.mxu0 %v947
      %1246 = vmatpush1.bf16.msra.mxu0 %v946
      %1247 = vmatprep.subr.bf16.mxu0 %v949
      %1248 = vmatpush1.bf16.msra.mxu0 %v948
      %1249 = vmatprep.subr.bf16.mxu0 %v951
      %1250 = vmatpush1.bf16.msra.mxu0 %v950
      %1251 = vmatprep.subr.bf16.mxu0 %v953
      %1252 = vmatpush1.bf16.msra.mxu0 %v952
      %1253 = vmatprep.subr.bf16.mxu0 %v955
      %1254 = vmatpush1.bf16.msra.mxu0 %v954
      %1255 = vmatprep.subr.bf16.mxu0 %v957
      %1256 = vmatpush1.bf16.msra.mxu0 %v956
      %1257 = vmatprep.subr.bf16.mxu0 %v959
      %1258 = vmatpush1.bf16.msra.mxu0 %v958
      %1259 = vmatprep.subr.bf16.mxu0 %v961
      %1260 = vmatpush1.bf16.msra.mxu0 %v960
      %1261 = vmatprep.subr.bf16.mxu0 %v963
      %1262 = vmatpush1.bf16.msra.mxu0 %v962
      %1263 = vmatprep.subr.bf16.mxu0 %v965
      %1264 = vmatpush1.bf16.msra.mxu0 %v964
      %1265 = vmatprep.subr.bf16.mxu0 %v967
      %1266 = vmatpush1.bf16.msra.mxu0 %v966
      %1267 = vmatprep.subr.bf16.mxu0 %v969
      %1268 = vmatpush1.bf16.msra.mxu0 %v968
      %1269 = vmatprep.subr.bf16.mxu0 %v971
      %1270 = vmatpush1.bf16.msra.mxu0 %v970
      %1271 = vmatprep.subr.bf16.mxu0 %v973
      %1272 = vmatpush1.bf16.msra.mxu0 %v972
      %1273 = vmatprep.subr.bf16.mxu0 %v975
      %1274 = vmatpush1.bf16.msra.mxu0 %v974
      %1275 = vmatprep.mubr.bf16.mxu0 %v465
      %1276 = vmatmul.mubr.bf16.gmra.mrb[0].mxu0 %v464
      %v1277 = vpop.f32.mrb[0].mxu0
      %v1278 = vadd.f32 %v1235, %v1277
      %v1279 = vpop.f32.mrb[0].mxu0
      %v1280 = vadd.f32 %v1237, %v1279
      %v1281 = vpop.f32.mrb[0].mxu0
      %v1282 = vadd.f32 %v1239, %v1281
      %v1283 = vpop.f32.mrb[0].mxu0
      %v1284 = vadd.f32 %v1241, %v1283
      %1285 = vdwg.mxu0
      %1286 = vmatprep.subr.bf16.mxu0 %v977
      %1287 = vmatpush1.bf16.msra.mxu0 %v976
      %1288 = vmatprep.subr.bf16.mxu0 %v979
      %1289 = vmatpush1.bf16.msra.mxu0 %v978
      %1290 = vmatprep.subr.bf16.mxu0 %v981
      %1291 = vmatpush1.bf16.msra.mxu0 %v980
      %1292 = vmatprep.subr.bf16.mxu0 %v983
      %1293 = vmatpush1.bf16.msra.mxu0 %v982
      %1294 = vmatprep.subr.bf16.mxu0 %v985
      %1295 = vmatpush1.bf16.msra.mxu0 %v984
      %1296 = vmatprep.subr.bf16.mxu0 %v987
      %1297 = vmatpush1.bf16.msra.mxu0 %v986
      %1298 = vmatprep.subr.bf16.mxu0 %v989
      %1299 = vmatpush1.bf16.msra.mxu0 %v988
      %1300 = vmatprep.subr.bf16.mxu0 %v991
      %1301 = vmatpush1.bf16.msra.mxu0 %v990
      %1302 = vmatprep.subr.bf16.mxu0 %v993
      %1303 = vmatpush1.bf16.msra.mxu0 %v992
      %1304 = vmatprep.subr.bf16.mxu0 %v995
      %1305 = vmatpush1.bf16.msra.mxu0 %v994
      %1306 = vmatprep.subr.bf16.mxu0 %v997
      %1307 = vmatpush1.bf16.msra.mxu0 %v996
      %1308 = vmatprep.subr.bf16.mxu0 %v999
      %1309 = vmatpush1.bf16.msra.mxu0 %v998
      %1310 = vmatprep.subr.bf16.mxu0 %v1001
      %1311 = vmatpush1.bf16.msra.mxu0 %v1000
      %1312 = vmatprep.subr.bf16.mxu0 %v1003
      %1313 = vmatpush1.bf16.msra.mxu0 %v1002
      %1314 = vmatprep.subr.bf16.mxu0 %v1005
      %1315 = vmatpush1.bf16.msra.mxu0 %v1004
      %1316 = vmatprep.subr.bf16.mxu0 %v1007
      %1317 = vmatpush1.bf16.msra.mxu0 %v1006
      %1318 = vmatprep.mubr.bf16.mxu0 %v467
      %1319 = vmatmul.mubr.bf16.gmra.mrb[0].mxu0 %v466
      %v1320 = vpop.f32.mrb[0].mxu0
      %v1321 = vadd.f32 %v1278, %v1320
      %v1322 = vpop.f32.mrb[0].mxu0
      %v1323 = vadd.f32 %v1280, %v1322
      %v1324 = vpop.f32.mrb[0].mxu0
      %v1325 = vadd.f32 %v1282, %v1324
      %v1326 = vpop.f32.mrb[0].mxu0
      %v1327 = vadd.f32 %v1284, %v1326
      %1328 = vdwg.mxu0
      %1329 = vmatprep.subr.bf16.mxu0 %v1009
      %1330 = vmatpush1.bf16.msra.mxu0 %v1008
      %1331 = vmatprep.subr.bf16.mxu0 %v1011
      %1332 = vmatpush1.bf16.msra.mxu0 %v1010
      %1333 = vmatprep.subr.bf16.mxu0 %v1013
      %1334 = vmatpush1.bf16.msra.mxu0 %v1012
      %1335 = vmatprep.subr.bf16.mxu0 %v1015
      %1336 = vmatpush1.bf16.msra.mxu0 %v1014
      %1337 = vmatprep.subr.bf16.mxu0 %v1017
      %1338 = vmatpush1.bf16.msra.mxu0 %v1016
      %1339 = vmatprep.subr.bf16.mxu0 %v1019
      %1340 = vmatpush1.bf16.msra.mxu0 %v1018
      %1341 = vmatprep.subr.bf16.mxu0 %v1021
      %1342 = vmatpush1.bf16.msra.mxu0 %v1020
      %1343 = vmatprep.subr.bf16.mxu0 %v1023
      %1344 = vmatpush1.bf16.msra.mxu0 %v1022
      %1345 = vmatprep.subr.bf16.mxu0 %v1025
      %1346 = vmatpush1.bf16.msra.mxu0 %v1024
      %1347 = vmatprep.subr.bf16.mxu0 %v1027
      %1348 = vmatpush1.bf16.msra.mxu0 %v1026
      %1349 = vmatprep.subr.bf16.mxu0 %v1029
      %1350 = vmatpush1.bf16.msra.mxu0 %v1028
      %1351 = vmatprep.subr.bf16.mxu0 %v1031
      %1352 = vmatpush1.bf16.msra.mxu0 %v1030
      %1353 = vmatprep.subr.bf16.mxu0 %v1033
      %1354 = vmatpush1.bf16.msra.mxu0 %v1032
      %1355 = vmatprep.subr.bf16.mxu0 %v1035
      %1356 = vmatpush1.bf16.msra.mxu0 %v1034
      %1357 = vmatprep.subr.bf16.mxu0 %v1037
      %1358 = vmatpush1.bf16.msra.mxu0 %v1036
      %1359 = vmatprep.subr.bf16.mxu0 %v1039
      %1360 = vmatpush1.bf16.msra.mxu0 %v1038
      %1361 = vmatprep.mubr.bf16.mxu0 %v469
      %1362 = vmatmul.mubr.bf16.gmra.mrb[0].mxu0 %v468
      %v1363 = vpop.f32.mrb[0].mxu0
      %v1364 = vadd.f32 %v1321, %v1363
      %v1365 = vpop.f32.mrb[0].mxu0
      %v1366 = vadd.f32 %v1323, %v1365
      %v1367 = vpop.f32.mrb[0].mxu0
      %v1368 = vadd.f32 %v1325, %v1367
      %v1369 = vpop.f32.mrb[0].mxu0
      %v1370 = vadd.f32 %v1327, %v1369
      %1371 = vdwg.mxu0
      %1372 = vmatprep.subr.bf16.mxu0 %v1041
      %1373 = vmatpush1.bf16.msra.mxu0 %v1040
      %1374 = vmatprep.subr.bf16.mxu0 %v1043
      %1375 = vmatpush1.bf16.msra.mxu0 %v1042
      %1376 = vmatprep.subr.bf16.mxu0 %v1045
      %1377 = vmatpush1.bf16.msra.mxu0 %v1044
      %1378 = vmatprep.subr.bf16.mxu0 %v1047
      %1379 = vmatpush1.bf16.msra.mxu0 %v1046
      %1380 = vmatprep.subr.bf16.mxu0 %v1049
      %1381 = vmatpush1.bf16.msra.mxu0 %v1048
      %1382 = vmatprep.subr.bf16.mxu0 %v1051
      %1383 = vmatpush1.bf16.msra.mxu0 %v1050
      %1384 = vmatprep.subr.bf16.mxu0 %v1053
      %1385 = vmatpush1.bf16.msra.mxu0 %v1052
      %1386 = vmatprep.subr.bf16.mxu0 %v1055
      %1387 = vmatpush1.bf16.msra.mxu0 %v1054
      %1388 = vmatprep.subr.bf16.mxu0 0
      %1389 = vmatpush1.bf16.msra.mxu0 0
      %1390 = vmatprep.subr.bf16.mxu0 0
      %1391 = vmatpush1.bf16.msra.mxu0 0
      %1392 = vmatprep.subr.bf16.mxu0 0
      %1393 = vmatpush1.bf16.msra.mxu0 0
      %1394 = vmatprep.subr.bf16.mxu0 0
      %1395 = vmatpush1.bf16.msra.mxu0 0
      %1396 = vmatprep.subr.bf16.mxu0 0
      %1397 = vmatpush1.bf16.msra.mxu0 0
      %1398 = vmatprep.subr.bf16.mxu0 0
      %1399 = vmatpush1.bf16.msra.mxu0 0
      %1400 = vmatprep.subr.bf16.mxu0 0
      %1401 = vmatpush1.bf16.msra.mxu0 0
      %1402 = vmatprep.subr.bf16.mxu0 0
      %1403 = vmatpush1.bf16.msra.mxu0 0
      %1404 = vmatprep.mubr.bf16.mxu0 0
      %1405 = vmatmul.mubr.bf16.gmra.mrb[0].mxu0 %v470
      %v1406 = vpop.f32.mrb[0].mxu0
      %v1407 = vadd.f32 %v1364, %v1406
      %v1408 = vpop.f32.mrb[0].mxu0
      %v1409 = vadd.f32 %v1366, %v1408
      %v1410 = vpop.f32.mrb[0].mxu0
      %v1411 = vadd.f32 %v1368, %v1410
      %v1412 = vpop.f32.mrb[0].mxu0
      %v1413 = vadd.f32 %v1370, %v1412
      %1414 = vdwg.mxu0
      %v1415 = vadd.f32 %v1407, %v1411
      %v1416 = vrot.slane %v1415, 4
      %v1417 = vadd.f32 %v1415, %v1416
      %v1418 = vrot.slane %v1417, 2
      %v1419 = vadd.f32 %v1417, %v1418
      %v1420 = vrot.slane %v1419, 1
      %v1421 = vadd.f32 %v1419, %v1420
      %v1422 = vadd.f32 %v1409, %v1413
      %v1423 = vrot.slane %v1422, 4
      %v1424 = vadd.f32 %v1422, %v1423
      %v1425 = vrot.slane %v1424, 2
      %v1426 = vadd.f32 %v1424, %v1425
      %v1427 = vrot.slane %v1426, 1
      %v1428 = vadd.f32 %v1426, %v1427
      %v1429 = vmul.f32 %v1407, %v1407
      %v1430 = vmul.f32 %v1409, %v1409
      %v1431 = vmul.f32 %v1411, %v1411
      %v1432 = vmul.f32 %v1413, %v1413
      %v1433 = vadd.f32 %v1429, %v1431
      %v1434 = vrot.slane %v1433, 4
      %v1435 = vadd.f32 %v1433, %v1434
      %v1436 = vrot.slane %v1435, 2
      %v1437 = vadd.f32 %v1435, %v1436
      %v1438 = vrot.slane %v1437, 1
      %v1439 = vadd.f32 %v1437, %v1438
      %v1440 = vadd.f32 %v1430, %v1432
      %v1441 = vrot.slane %v1440, 4
      %v1442 = vadd.f32 %v1440, %v1441
      %v1443 = vrot.slane %v1442, 2
      %v1444 = vadd.f32 %v1442, %v1443
      %v1445 = vrot.slane %v1444, 1
      %v1446 = vadd.f32 %v1444, %v1445
      %v1447 = vld [vmem:[%s2] sm:$0x3]
      %v1448 = vld [vmem:[%s3] sm:$0x3]
      %v1449 = vld [vmem:[%s4] sm:$0x3]
      %v1450 = vld [vmem:[%s5] sm:$0xff]
      %v1451 = vld [vmem:[%s5 + $0x8] sm:$0xff]
      %v1452 = vld [vmem:[%s5 + $0x10] sm:$0xff]
      %v1453 = vld [vmem:[%s5 + $0x18] sm:$0xff]
      %v1454 = vld [vmem:[%s5 + $0x20] sm:$0xff]
      %v1455 = vld [vmem:[%s5 + $0x28] sm:$0xff]
      %v1456 = vld [vmem:[%s5 + $0x30] sm:$0xff]
      %v1457 = vld [vmem:[%s5 + $0x38] sm:$0xff]
      %v1458 = vld [vmem:[%s5 + $0x40] sm:$0xff]
      %v1459 = vld [vmem:[%s5 + $0x48] sm:$0xff]
      %v1460 = vld [vmem:[%s5 + $0x50] sm:$0xff]
      %v1461 = vld [vmem:[%s5 + $0x58] sm:$0xff]
      %v1462 = vld [vmem:[%s5 + $0x60] sm:$0xff]
      %v1463 = vld [vmem:[%s5 + $0x68] sm:$0xff]
      %v1464 = vld [vmem:[%s5 + $0x70] sm:$0xff]
      %v1465 = vld [vmem:[%s5 + $0x78] sm:$0xff]
      %v1466 = vld [vmem:[%s5 + $0x80] sm:$0xff]
      %v1467 = vld [vmem:[%s5 + $0x88] sm:$0xff]
      %v1468 = vld [vmem:[%s5 + $0x90] sm:$0xff]
      %v1469 = vld [vmem:[%s5 + $0x98] sm:$0xff]
      %v1470 = vld [vmem:[%s5 + $0xa0] sm:$0xff]
      %v1471 = vld [vmem:[%s5 + $0xa8] sm:$0xff]
      %v1472 = vld [vmem:[%s5 + $0xb0] sm:$0xff]
      %v1473 = vld [vmem:[%s5 + $0xb8] sm:$0xff]
      %v1474 = vld [vmem:[%s5 + $0xc0] sm:$0xff]
      %v1475 = vld [vmem:[%s5 + $0xc8] sm:$0xff]
      %v1476 = vld [vmem:[%s5 + $0xd0] sm:$0xff]
      %v1477 = vld [vmem:[%s5 + $0xd8] sm:$0xff]
      %v1478 = vld [vmem:[%s5 + $0xe0] sm:$0xff]
      %v1479 = vld [vmem:[%s5 + $0xe8] sm:$0xff]
      %v1480 = vld [vmem:[%s5 + $0xf0] sm:$0xff]
      %v1481 = vld [vmem:[%s5 + $0xf8] sm:$0xff]
      %v1482 = vld [vmem:[%s6] sm:$0xff]
      %v1483 = vld [vmem:[%s6 + $0x8] sm:$0xff]
      %v1484 = vld [vmem:[%s6 + $0x10] sm:$0xff]
      %v1485 = vld [vmem:[%s6 + $0x18] sm:$0xff]
      %v1486 = vld [vmem:[%s6 + $0x20] sm:$0xff]
      %v1487 = vld [vmem:[%s6 + $0x28] sm:$0xff]
      %v1488 = vld [vmem:[%s6 + $0x30] sm:$0xff]
      %v1489 = vld [vmem:[%s6 + $0x38] sm:$0xff]
      %v1490 = vmul.f32 %v1447, 4.0
      %v1492 = vlaneseq
      %v1493 = vshrl.u32 %v1492, 7
      %v1494 = vsub.s32 0, %v1493
      %v1495 = vrot.slane %v1490, %v1494
      %v1496 = vlaneseq
      %v1497 = vshrl.u32 %v1496, 7
      %v1498 = vsub.s32 1, %v1497
      %v1499 = vrot.slane %v1490, %v1498
      %v1502 = vadd.f32 %v1421, %v1495
      %v1503 = vadd.f32 %v1428, %v1499
      %v1504 = vmul.f32 %v1447, 2.0
      %v1507 = vcombine.low %v1421, %v1428
      %v1509 = vunpack.c.l.s4 1966171168
      %v1510 = vunpack.c.0.s8 %v1509
      %v1511 = vlaneseq
      %v1512 = vshrl.u32 %v1511, 7
      %v1513 = vsub.s32 %v1510, %v1512
      %v1514 = vrot.slane %v1507, %v1513
      %v1516 = vunpack.c.l.s4 1966171168
      %v1517 = vunpack.c.0.s8 %v1516
      %v1518 = vlaneseq
      %v1519 = vshrl.u32 %v1518, 7
      %v1520 = vsub.s32 %v1517, %v1519
      %v1521 = vrot.slane %v1514, %v1520
      %v1523 = vmul.f32 %v1504, %v1521
      %v1525 = vlaneseq
      %v1526 = vshrl.u32 %v1525, 7
      %v1527 = vsub.s32 0, %v1526
      %v1528 = vrot.slane %v1523, %v1527
      %v1529 = vlaneseq
      %v1530 = vshrl.u32 %v1529, 7
      %v1531 = vsub.s32 1, %v1530
      %v1532 = vrot.slane %v1523, %v1531
      %v1535 = vadd.f32 %v1439, %v1528
      %v1536 = vadd.f32 %v1446, %v1532
      %v1537 = vmul.f32 %v1447, %v1447
      %v1538 = vmul.f32 %v1537, 4.0
      %v1540 = vlaneseq
      %v1541 = vshrl.u32 %v1540, 7
      %v1542 = vsub.s32 0, %v1541
      %v1543 = vrot.slane %v1538, %v1542
      %v1544 = vlaneseq
      %v1545 = vshrl.u32 %v1544, 7
      %v1546 = vsub.s32 1, %v1545
      %v1547 = vrot.slane %v1538, %v1546
      %v1550 = vadd.f32 %v1535, %v1543
      %v1551 = vadd.f32 %v1536, %v1547
      %v1554 = vrot.slane %v1550, 7
      %v1555 = vrot.slane %v1551, 7
      %vm1558 = vcmask 1040384
      %v1559 = vsel %vm1558, %v1502, %v1554
      %v1560 = vsel %vm1558, %v1503, %v1555
      %1561 = vmatprep.subr.mxu0 0.0
      %1562 = vmatpush1.msra.mxu0 %v1450
      %1563 = vmatprep.subr.mxu0 0.0
      %1564 = vmatpush1.msra.mxu0 %v1451
      %1565 = vmatprep.subr.mxu0 0.0
      %1566 = vmatpush1.msra.mxu0 %v1452
      %1567 = vmatprep.subr.mxu0 0.0
      %1568 = vmatpush1.msra.mxu0 %v1453
      %1569 = vmatprep.subr.mxu0 0.0
      %1570 = vmatpush1.msra.mxu0 %v1454
      %1571 = vmatprep.subr.mxu0 0.0
      %1572 = vmatpush1.msra.mxu0 %v1455
      %1573 = vmatprep.subr.mxu0 0.0
      %1574 = vmatpush1.msra.mxu0 %v1456
      %1575 = vmatprep.subr.mxu0 0.0
      %1576 = vmatpush1.msra.mxu0 %v1457
      %1577 = vmatprep.subr.mxu0 0.0
      %1578 = vmatpush1.msra.mxu0 %v1458
      %1579 = vmatprep.subr.mxu0 0.0
      %1580 = vmatpush1.msra.mxu0 %v1459
      %1581 = vmatprep.subr.mxu0 0.0
      %1582 = vmatpush1.msra.mxu0 %v1460
      %1583 = vmatprep.subr.mxu0 0.0
      %1584 = vmatpush1.msra.mxu0 %v1461
      %1585 = vmatprep.subr.mxu0 0.0
      %1586 = vmatpush1.msra.mxu0 %v1462
      %1587 = vmatprep.subr.mxu0 0.0
      %1588 = vmatpush1.msra.mxu0 %v1463
      %1589 = vmatprep.subr.mxu0 0.0
      %1590 = vmatpush1.msra.mxu0 %v1464
      %1591 = vmatprep.subr.mxu0 0.0
      %1592 = vmatpush1.msra.mxu0 %v1465
      %1593 = vmatprep.subr.mxu0 0.0
      %1594 = vmatpush1.msra.mxu0 %v1466
      %1595 = vmatprep.subr.mxu0 0.0
      %1596 = vmatpush1.msra.mxu0 %v1467
      %1597 = vmatprep.subr.mxu0 0.0
      %1598 = vmatpush1.msra.mxu0 %v1468
      %1599 = vmatprep.subr.mxu0 0.0
      %1600 = vmatpush1.msra.mxu0 %v1469
      %1601 = vmatprep.subr.mxu0 0.0
      %1602 = vmatpush1.msra.mxu0 %v1470
      %1603 = vmatprep.subr.mxu0 0.0
      %1604 = vmatpush1.msra.mxu0 %v1471
      %1605 = vmatprep.subr.mxu0 0.0
      %1606 = vmatpush1.msra.mxu0 %v1472
      %1607 = vmatprep.subr.mxu0 0.0
      %1608 = vmatpush1.msra.mxu0 %v1473
      %1609 = vmatprep.subr.mxu0 0.0
      %1610 = vmatpush1.msra.mxu0 %v1474
      %1611 = vmatprep.subr.mxu0 0.0
      %1612 = vmatpush1.msra.mxu0 %v1475
      %1613 = vmatprep.subr.mxu0 0.0
      %1614 = vmatpush1.msra.mxu0 %v1476
      %1615 = vmatprep.subr.mxu0 0.0
      %1616 = vmatpush1.msra.mxu0 %v1477
      %1617 = vmatprep.subr.mxu0 0.0
      %1618 = vmatpush1.msra.mxu0 %v1478
      %1619 = vmatprep.subr.mxu0 0.0
      %1620 = vmatpush1.msra.mxu0 %v1479
      %1621 = vmatprep.subr.mxu0 0.0
      %1622 = vmatpush1.msra.mxu0 %v1480
      %1623 = vmatprep.subr.mxu0 0.0
      %1624 = vmatpush1.msra.mxu0 %v1481
      %1625 = vmatprep.mubr.f32.mxu0 %v1560
      %1626 = vmatmul.mubr.f32.gmra.mrb[0].mxu0 %v1559
      %v1627 = vpop.f32.mrb[0].mxu0
      %v1628 = vadd.f32 0.0, %v1627
      %v1629 = vpop.f32.mrb[0].mxu0
      %1630 = vdwg.mxu0
      %v1631 = vmul.f32 %v1628, 0.03125
      %v1632 = vmul.f32 %v1631, %v1631
      %v1634 = vrot.slane %v1632, 7
      %v1636 = vsub.f32 %v1631, %v1634
      %v1637 = vmax.f32 %v1636, 0.0
      %v1638 = vadd.f32 %v1637, 1e-05
      %v1639 = vrsqrt.pop %v1638
      %v1640 = vsel %vm1558, %v1631, %v1639
      %vm1641 = vcmask 261120
      %v1643 = vsel %vm1641, %v1640, 0
      %1645 = vmatprep.subr.mxu0 %v1483
      %1646 = vmatpush1.msra.mxu0 %v1482
      %1647 = vmatprep.subr.mxu0 %v1485
      %1648 = vmatpush1.msra.mxu0 %v1484
      %1649 = vmatprep.subr.mxu0 %v1487
      %1650 = vmatpush1.msra.mxu0 %v1486
      %1651 = vmatprep.subr.mxu0 %v1489
      %1652 = vmatpush1.msra.mxu0 %v1488
      %1653 = vmatprep.subr.mxu0 0.0
      %1654 = vmatpush1.msra.mxu0 0.0
      %1655 = vmatprep.subr.mxu0 0.0
      %1656 = vmatpush1.msra.mxu0 0.0
      %1657 = vmatprep.subr.mxu0 0.0
      %1658 = vmatpush1.msra.mxu0 0.0
      %1659 = vmatprep.subr.mxu0 0.0
      %1660 = vmatpush1.msra.mxu0 0.0
      %1661 = vmatprep.subr.mxu0 0.0
      %1662 = vmatpush1.msra.mxu0 0.0
      %1663 = vmatprep.subr.mxu0 0.0
      %1664 = vmatpush1.msra.mxu0 0.0
      %1665 = vmatprep.subr.mxu0 0.0
      %1666 = vmatpush1.msra.mxu0 0.0
      %1667 = vmatprep.subr.mxu0 0.0
      %1668 = vmatpush1.msra.mxu0 0.0
      %1669 = vmatprep.subr.mxu0 0.0
      %1670 = vmatpush1.msra.mxu0 0.0
      %1671 = vmatprep.subr.mxu0 0.0
      %1672 = vmatpush1.msra.mxu0 0.0
      %1673 = vmatprep.subr.mxu0 0.0
      %1674 = vmatpush1.msra.mxu0 0.0
      %1675 = vmatprep.subr.mxu0 0.0
      %1676 = vmatpush1.msra.mxu0 0.0
      %1677 = vmatprep.subr.mxu0 0.0
      %1678 = vmatpush1.msra.mxu0 0.0
      %1679 = vmatprep.subr.mxu0 0.0
      %1680 = vmatpush1.msra.mxu0 0.0
      %1681 = vmatprep.subr.mxu0 0.0
      %1682 = vmatpush1.msra.mxu0 0.0
      %1683 = vmatprep.subr.mxu0 0.0
      %1684 = vmatpush1.msra.mxu0 0.0
      %1685 = vmatprep.subr.mxu0 0.0
      %1686 = vmatpush1.msra.mxu0 0.0
      %1687 = vmatprep.subr.mxu0 0.0
      %1688 = vmatpush1.msra.mxu0 0.0
      %1689 = vmatprep.subr.mxu0 0.0
      %1690 = vmatpush1.msra.mxu0 0.0
      %1691 = vmatprep.subr.mxu0 0.0
      %1692 = vmatpush1.msra.mxu0 0.0
      %1693 = vmatprep.subr.mxu0 0.0
      %1694 = vmatpush1.msra.mxu0 0.0
      %1695 = vmatprep.subr.mxu0 0.0
      %1696 = vmatpush1.msra.mxu0 0.0
      %1697 = vmatprep.subr.mxu0 0.0
      %1698 = vmatpush1.msra.mxu0 0.0
      %1699 = vmatprep.subr.mxu0 0.0
      %1700 = vmatpush1.msra.mxu0 0.0
      %1701 = vmatprep.subr.mxu0 0.0
      %1702 = vmatpush1.msra.mxu0 0.0
      %1703 = vmatprep.subr.mxu0 0.0
      %1704 = vmatpush1.msra.mxu0 0.0
      %1705 = vmatprep.subr.mxu0 0.0
      %1706 = vmatpush1.msra.mxu0 0.0
      %1707 = vmatprep.subr.mxu0 0.0
      %1708 = vmatpush1.msra.mxu0 0.0
      %1709 = vmatprep.mubr.f32.mxu0 0.0
      %1710 = vmatmul.mubr.f32.gmra.mrb[0].mxu0 %v1643
      %v1711 = vpop.f32.mrb[0].mxu0
      %v1712 = vadd.f32 0.0, %v1711
      %v1713 = vpop.f32.mrb[0].mxu0
      %v1714 = vadd.f32 0.0, %v1713
      %1715 = vdwg.mxu0
      %v1717 = vlaneseq
      %v1718 = vshrl.u32 %v1717, 7
      %v1719 = vsub.s32 0, %v1718
      %v1720 = vrot.slane %v1448, %v1719
      %v1721 = vlaneseq
      %v1722 = vshrl.u32 %v1721, 7
      %v1723 = vsub.s32 1, %v1722
      %v1724 = vrot.slane %v1448, %v1723
      %v1727 = vmul.f32 %v1712, %v1720
      %v1728 = vmul.f32 %v1714, %v1724
      %v1731 = vcombine.low %v1712, %v1714
      %v1733 = vunpack.c.l.s4 1966171168
      %v1734 = vunpack.c.0.s8 %v1733
      %v1735 = vlaneseq
      %v1736 = vshrl.u32 %v1735, 7
      %v1737 = vsub.s32 %v1734, %v1736
      %v1738 = vrot.slane %v1731, %v1737
      %v1740 = vunpack.c.l.s4 1966171168
      %v1741 = vunpack.c.0.s8 %v1740
      %v1742 = vlaneseq
      %v1743 = vshrl.u32 %v1742, 7
      %v1744 = vsub.s32 %v1741, %v1743
      %v1745 = vrot.slane %v1738, %v1744
      %v1747 = vsub.f32 %v1447, %v1745
      %v1750 = vcombine.low %v1727, %v1728
      %v1752 = vunpack.c.l.s4 1966171168
      %v1753 = vunpack.c.0.s8 %v1752
      %v1754 = vlaneseq
      %v1755 = vshrl.u32 %v1754, 7
      %v1756 = vsub.s32 %v1753, %v1755
      %v1757 = vrot.slane %v1750, %v1756
      %v1758 = vcombine.high %v1757, %v1757
      %v1760 = vunpack.c.l.s4 1966171168
      %v1761 = vunpack.c.0.s8 %v1760
      %v1762 = vlaneseq
      %v1763 = vshrl.u32 %v1762, 7
      %v1764 = vsub.s32 %v1761, %v1763
      %v1765 = vrot.slane %v1758, %v1764
      %v1767 = vmul.f32 %v1747, %v1765
      %v1768 = vadd.f32 %v1449, %v1767
      %v1769 = vlaneseq
      %v1770 = vshrl.u32 %v1769, 7
      %v1771 = vsub.s32 1, %v1770
      %v1772 = vrot.slane %v1727, %v1771
      %v1773 = vlaneseq
      %v1774 = vshrl.u32 %v1773, 7
      %v1775 = vsub.s32 1, %v1774
      %v1776 = vrot.slane %v1728, %v1775
      %v1777 = vmul.f32 %v1407, %v1772
      %v1778 = vmul.f32 %v1409, %v1776
      %v1779 = vmul.f32 %v1411, %v1772
      %v1780 = vmul.f32 %v1413, %v1776
      %v1782 = vlaneseq
      %v1783 = vshrl.u32 %v1782, 7
      %v1784 = vsub.s32 0, %v1783
      %v1785 = vrot.slane %v1768, %v1784
      %v1786 = vlaneseq
      %v1787 = vshrl.u32 %v1786, 7
      %v1788 = vsub.s32 1, %v1787
      %v1789 = vrot.slane %v1768, %v1788
      %v1792 = vadd.f32 %v1777, %v1785
      %v1793 = vadd.f32 %v1778, %v1789
      %v1794 = vadd.f32 %v1779, %v1785
      %v1795 = vadd.f32 %v1780, %v1789
      %v1796 = vpack.c.bf16 %v1794, %v1792
      %v1797 = vpack.c.bf16 %v1795, %v1793
      %v1800 = vunpack.c.l.b16 %v1796
      %v1801 = vunpack.c.l.b16 %v1797
      %v1802 = vunpack.c.h.b16 %v1796
      %v1803 = vunpack.c.h.b16 %v1797
      %v1804 = vpack.c.b16 %v1801, %v1800
      %v1805 = vpack.c.b16 %v1803, %v1802
      %1808 = vst [vmem:[%s278] sm:$0xff] %v1804
      %1809 = vst [vmem:[%s278 + $0x8] sm:$0xff] %v1805
      %p1810 = scmp.lt.s32.totalorder %s18, 1
      %s1811 = scalar_select %p1810, %s18, 1
      %s1812 = smul.addr %s1811, 4
      %s1813 = smul.addr %s1812, 4
      %s1814 = scalar_lea.vmem %s7, %s1813
      // Predicated region
      $region49: #{vis_open_det_forward.7} parent=47 // pred_check
        %p1815 = pneg %p188
      $region50: #{vis_open_det_forward.7} parent=47 // pred_check_branch
        %1817 = sbr.rel (%p1815) target = $region52
      $region51: #{vis_open_det_forward.7} parent=47 // pred_region
        _
      $region52: #{vis_open_det_forward.7} parent=47 // pred_fallthru
        _
    $region48: #{vis_open_det_forward.7} parent=5 // pred_fallthru
      _
    %p1818 = scmp.le.s32.totalorder 2, %s13
    // Predicated region
    $region53: #{vis_open_det_forward.7} parent=5 // pred_check
      %p1819 = pneg %p1818
    $region54: #{vis_open_det_forward.7} parent=5 // pred_check_branch
      %1821 = sbr.rel (%p1819) target = $region56
    $region55: #{vis_open_det_forward.7} parent=5 // pred_region
      %s1822 = ssub.s32 %s13, 2
      // Predicated region
      $region57: #{vis_open_det_forward.7} parent=55 // pred_check
        %p1823 = pneg %p194
      $region58: #{vis_open_det_forward.7} parent=55 // pred_check_branch
        %1825 = sbr.rel (%p1823) target = $region60
      $region59: #{vis_open_det_forward.7} parent=55 // pred_region
        %p1826 = scmp.lt.s32.totalorder %s19, 1
        %s1827 = scalar_select %p1826, %s19, 1
        %s1828 = smul.addr %s1827, 4
        %s1829 = smul.addr %s1828, 4
        %s1830 = scalar_lea.vmem %s7, %s1829
      $region60: #{vis_open_det_forward.7} parent=55 // pred_fallthru
        _
    $region56: #{vis_open_det_forward.7} parent=5 // pred_fallthru
      _
  $region6: #{vis_open_det_forward.7} parent=0 // loop_footer
    %s17 = sadd.s32 1, %s13
  $region7: #{vis_open_det_forward.7} parent=0 // loop_footer_branch
    %12 = sbr.rel target = $region3
  $region8: #{vis_open_det_forward.7} parent=0 // loop_exit
    _

</llo_original>
